<compile_context>
chip_gen: v7x
topology: tpu7x:2x2x1
jax: 0.10.0
libtpu: 0.0.40
codegen_flags: <defaults>
</compile_context>

<pallas_src>
import jax
import jax.numpy as jnp
from jax import lax
from jax.experimental import pallas as pl
from jax.experimental.pallas import tpu as pltpu

# ----------------------------- model dims (small) -----------------------------
B = 2            # batch
S = 8            # sequence length
H = 32           # hidden size
NH = 2           # attention heads
DH = H // NH     # head dim
FF = 64          # FFN intermediate
NLAYERS = 2      # transformer blocks
VOCAB = 64
MAXPOS = 16
CLS_HID = 256
NUM_LABELS = 2
LN_EPS = 1e-12
BS = B * S
VW = 128         # lane width of the packed per-layer bias/LN tile (one lane tile)

_NT_DIMS = (((1,), (1,)), ((), ()))   # a @ b.T without an explicit transpose op

# row indices inside the packed per-layer (8, VW) f32 vector tile
_R_BQKV, _R_BO, _R_GSA, _R_BSA, _R_B1, _R_B2, _R_GOUT, _R_BOUT = range(8)


# ------------------------------ in-kernel helpers ------------------------------
def _layer_norm(x, g, b):
    mu = jnp.mean(x, axis=-1, keepdims=True)
    var = jnp.mean((x - mu) ** 2, axis=-1, keepdims=True)
    return (x - mu) * lax.rsqrt(var + LN_EPS) * g + b


def _erf(x):
    # Abramowitz & Stegun 7.1.26 polynomial (|err| < 1.5e-7): exact-GELU
    # fidelity using only exp / mul / add / where (guaranteed Mosaic lowering).
    a1, a2, a3, a4, a5 = 0.254829592, -0.284496736, 1.421413741, -1.453152027, 1.061405429
    pcoef = 0.3275911
    sign = jnp.where(x >= 0.0, 1.0, -1.0)
    ax = jnp.abs(x)
    t = 1.0 / (1.0 + pcoef * ax)
    poly = ((((a5 * t + a4) * t + a3) * t + a2) * t + a1) * t
    return sign * (1.0 - poly * jnp.exp(-ax * ax))


def _gelu_exact(x):
    # HuggingFace DistilBERT uses the exact erf-based GELU.
    return 0.5 * x * (1.0 + _erf(x * 0.7071067811865476))


# --------------------------------- fused kernel --------------------------------
def _bert_imdb_kernel(
    ids_ref,          # (BS, 1)                 int32  token ids
    etab_ref,         # (VOCAB+MAXPOS+2, H)     f32    [word | pos | LN gamma | LN beta]
    w_qkvo_ref,       # (L, H, 4H)              bf16   [Wq | Wk | Wv | Wo]
    w_ff1_ref,        # (L, H, FF)              bf16
    w_ff2_ref,        # (L, FF, H)              bf16
    vec_ref,          # (L, 8, VW)              f32    packed biases / LN params
    cw1_ref,          # (H, CLS_HID)            bf16
    cw23_ref,         # (2, CLS_HID, CLS_HID)   bf16
    cw4_ref,          # (CLS_HID, NUM_LABELS)   bf16
    cb_ref,           # (4, CLS_HID)            f32    classifier biases (row 3 padded)
    o_ref,            # (B, NUM_LABELS)         f32
):
    f32 = jnp.float32
    bf16 = jnp.bfloat16

    # ---- embeddings: one-hot MXU gather + position rows + embedding LayerNorm
    ids = ids_ref[...]                                                       # (BS, 1)
    onehot = (lax.broadcasted_iota(jnp.int32, (BS, VOCAB), 1) == ids).astype(f32)
    word = jnp.dot(onehot, etab_ref[0:VOCAB, :], preferred_element_type=f32)  # (BS, H)
    pos = etab_ref[VOCAB:VOCAB + S, :]                                        # (S, H)
    pos_full = jnp.concatenate([pos] * B, axis=0)                             # (BS, H)
    g_emb = etab_ref[VOCAB + MAXPOS:VOCAB + MAXPOS + 1, :]                    # (1, H)
    b_emb = etab_ref[VOCAB + MAXPOS + 1:VOCAB + MAXPOS + 2, :]                # (1, H)
    x = _layer_norm(word + pos_full, g_emb, b_emb)                            # (BS, H)

    # ---- transformer blocks (static unrolled; all weights resident in VMEM) --
    for l in range(NLAYERS):
        w = w_qkvo_ref[l]                  # (H, 4H) bf16
        vec = vec_ref[l]                   # (8, VW) f32, one vreg

        xb = x.astype(bf16)
        # fused Q|K|V projection; 1/sqrt(DH) already folded into Wq / bq.
        qkv = (jnp.dot(xb, w[:, 0:3 * H], preferred_element_type=f32)
               + vec[_R_BQKV:_R_BQKV + 1, 0:3 * H])                           # (BS, 3H)
        q = qkv[:, 0:H]
        k = qkv[:, H:2 * H]
        v = qkv[:, 2 * H:3 * H]

        # scores for all B*NH heads, then ONE batched softmax over the stack.
        s_tiles = []
        for bi in range(B):
            for hd in range(NH):
                qh = q[bi * S:(bi + 1) * S, hd * DH:(hd + 1) * DH].astype(bf16)
                kh = k[bi * S:(bi + 1) * S, hd * DH:(hd + 1) * DH].astype(bf16)
                s_tiles.append(lax.dot_general(qh, kh, _NT_DIMS,
                                               preferred_element_type=f32))   # (S, S)
        s_all = jnp.concatenate(s_tiles, axis=0)                              # (B*NH*S, S)
        s_all = s_all - jnp.max(s_all, axis=-1, keepdims=True)
        p_all = jnp.exp(s_all)
        # EUP approx reciprocal (~2^-12 rel err in attention weights, free slot).
        p_all = p_all * pl.reciprocal(jnp.sum(p_all, axis=-1, keepdims=True),
                                      approx=True)

        # per-head context, lane-concatenated -> ONE output-projection matmul.
        ctx_rows = []
        for bi in range(B):
            heads = []
            for hd in range(NH):
                t = bi * NH + hd
                ph = p_all[t * S:(t + 1) * S, :].astype(bf16)                 # (S, S)
                vh = v[bi * S:(bi + 1) * S, hd * DH:(hd + 1) * DH].astype(bf16)
                heads.append(jnp.dot(ph, vh, preferred_element_type=f32))     # (S, DH)
            ctx_rows.append(jnp.concatenate(heads, axis=1))                   # (S, H)
        ctx = jnp.concatenate(ctx_rows, axis=0).astype(bf16)                  # (BS, H)
        attn = (jnp.dot(ctx, w[:, 3 * H:4 * H], preferred_element_type=f32)
                + vec[_R_BO:_R_BO + 1, 0:H])                                  # (BS, H)

        # residual + self-attention LayerNorm (f32)
        h1 = _layer_norm(x + attn,
                         vec[_R_GSA:_R_GSA + 1, 0:H], vec[_R_BSA:_R_BSA + 1, 0:H])

        # FFN with exact (erf) GELU
        f = (jnp.dot(h1.astype(bf16), w_ff1_ref[l], preferred_element_type=f32)
             + vec[_R_B1:_R_B1 + 1, 0:FF])
        f = _gelu_exact(f)
        f = (jnp.dot(f.astype(bf16), w_ff2_ref[l], preferred_element_type=f32)
             + vec[_R_B2:_R_B2 + 1, 0:H])

        # residual + output LayerNorm
        x = _layer_norm(h1 + f,
                        vec[_R_GOUT:_R_GOUT + 1, 0:H], vec[_R_BOUT:_R_BOUT + 1, 0:H])

    # ---- classifier on ALL rows (same MXU cost); store only the CLS rows -----
    # Dropout(0.18) layers are identity in eval mode.
    z = jnp.dot(x.astype(bf16), cw1_ref[...], preferred_element_type=f32) + cb_ref[0:1, :]
    z = jnp.dot(z.astype(bf16), cw23_ref[0], preferred_element_type=f32) + cb_ref[1:2, :]
    z = jnp.dot(z.astype(bf16), cw23_ref[1], preferred_element_type=f32) + cb_ref[2:3, :]
    logits = (jnp.dot(z.astype(bf16), cw4_ref[...], preferred_element_type=f32)
              + cb_ref[3:4, 0:NUM_LABELS])                                    # (BS, 2)
    for bi in range(B):
        o_ref[bi:bi + 1, :] = logits[bi * S:bi * S + 1, :]


# ------------------------------ parameter init ---------------------------------
def init_params(key):
    keys = iter(jax.random.split(key, 40))

    def nrm(shape, scale=0.02):
        return scale * jax.random.normal(next(keys), shape, dtype=jnp.float32)

    bf16 = jnp.bfloat16
    inv_sqrt_dh = 1.0 / float(DH) ** 0.5   # 0.25: exact in bf16

    # embedding table rows: [word(VOCAB) | pos(MAXPOS) | LN gamma | LN beta]
    etab = jnp.concatenate(
        [nrm((VOCAB, H)), nrm((MAXPOS, H)), jnp.ones((1, H)), jnp.zeros((1, H))],
        axis=0)

    w_qkvo, w_ff1, w_ff2, vecs = [], [], [], []
    for _ in range(NLAYERS):
        wq = nrm((H, H)) * inv_sqrt_dh     # attention scale folded into Wq / bq
        bq = nrm((H,)) * inv_sqrt_dh
        wk, bk = nrm((H, H)), nrm((H,))
        wv, bv = nrm((H, H)), nrm((H,))
        wo, bo = nrm((H, H)), nrm((H,))
        w1, b1 = nrm((H, FF)), nrm((FF,))
        w2, b2 = nrm((FF, H)), nrm((H,))
        w_qkvo.append(jnp.concatenate([wq, wk, wv, wo], axis=1))              # (H, 4H)
        w_ff1.append(w1)
        w_ff2.append(w2)
        vtile = jnp.zeros((8, VW), jnp.float32)
        vtile = vtile.at[_R_BQKV, 0:3 * H].set(jnp.concatenate([bq, bk, bv]))
        vtile = vtile.at[_R_BO, 0:H].set(bo)
        vtile = vtile.at[_R_GSA, 0:H].set(1.0)     # LN gammas = 1, betas = 0
        vtile = vtile.at[_R_B1, 0:FF].set(b1)
        vtile = vtile.at[_R_B2, 0:H].set(b2)
        vtile = vtile.at[_R_GOUT, 0:H].set(1.0)
        vecs.append(vtile)

    cb4 = jnp.zeros((CLS_HID,), jnp.float32).at[0:NUM_LABELS].set(nrm((NUM_LABELS,)))
    return {
        "etab": etab,
        "w_qkvo": jnp.stack(w_qkvo).astype(bf16),
        "w_ff1": jnp.stack(w_ff1).astype(bf16),
        "w_ff2": jnp.stack(w_ff2).astype(bf16),
        "vec": jnp.stack(vecs),
        "cw1": nrm((H, CLS_HID)).astype(bf16),
        "cw23": jnp.stack([nrm((CLS_HID, CLS_HID)),
                           nrm((CLS_HID, CLS_HID))]).astype(bf16),
        "cw4": nrm((CLS_HID, NUM_LABELS)).astype(bf16),
        "cb": jnp.stack([nrm((CLS_HID,)), nrm((CLS_HID,)), nrm((CLS_HID,)), cb4]),
    }


_ARG_ORDER = ("etab", "w_qkvo", "w_ff1", "w_ff2", "vec",
              "cw1", "cw23", "cw4", "cb")


# -------------------------------- forward --------------------------------------
@jax.jit
def bert_imdb_forward(params, input_ids):
    # Everything — embedding gather (one-hot MXU), embedding LayerNorm, both
    # encoder blocks, and the 4-layer MLP classifier — runs in ONE gridless
    # pallas_call with all weights resident in VMEM (10 packed operands).
    # TODO(synk): attention_mask (all-ones assumed) and dropout (eval mode) are
    # not modeled.
    ids = input_ids.reshape(BS, 1).astype(jnp.int32)   # fold batch into rows
    args = (ids,) + tuple(params[k] for k in _ARG_ORDER)
    return pl.pallas_call(
        _bert_imdb_kernel,
        out_shape=jax.ShapeDtypeStruct((B, NUM_LABELS), jnp.float32),
        in_specs=[pl.BlockSpec(memory_space=pltpu.MemorySpace.VMEM) for _ in args],
        out_specs=pl.BlockSpec(memory_space=pltpu.MemorySpace.VMEM),
    )(*args)


# ---------------------------------- main ----------------------------------------
if __name__ == "__main__":
    key = jax.random.PRNGKey(0)
    k_param, k_ids = jax.random.split(key)
    params = init_params(k_param)
    input_ids = jax.random.randint(k_ids, (B, S), 0, VOCAB, dtype=jnp.int32)

    logits = bert_imdb_forward(params, input_ids)
    jax.block_until_ready(logits)
    assert logits.shape == (B, NUM_LABELS) and logits.dtype == jnp.float32
    print("KERNEL_OK")
</pallas_src>

<mosaic_0001>
module attributes {stable_mosaic.version = 11 : i64} {
  func.func @_bert_imdb_kernel(%arg0: memref<16x1xi32, #tpu.memory_space<vmem>>, %arg1: memref<82x32xf32, #tpu.memory_space<vmem>>, %arg2: memref<2x32x128xbf16, #tpu.memory_space<vmem>>, %arg3: memref<2x32x64xbf16, #tpu.memory_space<vmem>>, %arg4: memref<2x64x32xbf16, #tpu.memory_space<vmem>>, %arg5: memref<2x8x128xf32, #tpu.memory_space<vmem>>, %arg6: memref<32x256xbf16, #tpu.memory_space<vmem>>, %arg7: memref<2x256x256xbf16, #tpu.memory_space<vmem>>, %arg8: memref<256x2xbf16, #tpu.memory_space<vmem>>, %arg9: memref<4x256xf32, #tpu.memory_space<vmem>>, %arg10: memref<2x2xf32, #tpu.memory_space<vmem>>) attributes {dimension_semantics = [], scalar_prefetch = 0 : i64, scratch_operands = 0 : i64, tpu.core_type = #tpu.core_type<tc>} {
    %c0 = arith.constant 0 : index
    %c0_0 = arith.constant 0 : index
    %0 = vector.load %arg0[%c0, %c0_0] : memref<16x1xi32, #tpu.memory_space<vmem>>, vector<16x1xi32>
    %1 = tpu.iota {dimensions = array<i32: 1>} : vector<16x64xi32>
    %2 = vector.broadcast %0 : vector<16x1xi32> to vector<16x64xi32>
    %3 = arith.cmpi eq, %1, %2 : vector<16x64xi32>
    %4 = arith.extui %3 : vector<16x64xi1> to vector<16x64xi32>
    %5 = arith.sitofp %4 : vector<16x64xi32> to vector<16x64xf32>
    %c0_1 = arith.constant 0 : index
    %c0_2 = arith.constant 0 : index
    %6 = vector.load %arg1[%c0_1, %c0_2] : memref<82x32xf32, #tpu.memory_space<vmem>>, vector<64x32xf32>
    %cst = arith.constant dense<0.000000e+00> : vector<16x32xf32>
    %7 = tpu.matmul %5, %6, %cst {dimension_numbers = #tpu.dot_dimension_numbers<[1], [0], [0], [1], [0, 0, 1, 1], [], []>} : vector<16x64xf32>, vector<64x32xf32>, vector<16x32xf32> -> vector<16x32xf32>
    %c64 = arith.constant 64 : index
    %c0_3 = arith.constant 0 : index
    %8 = vector.load %arg1[%c64, %c0_3] : memref<82x32xf32, #tpu.memory_space<vmem>>, vector<8x32xf32>
    %9 = tpu.concatenate %8, %8 in 0 : vector<8x32xf32>, vector<8x32xf32> -> vector<16x32xf32>
    %c80 = arith.constant 80 : index
    %c0_4 = arith.constant 0 : index
    %10 = vector.load %arg1[%c80, %c0_4] : memref<82x32xf32, #tpu.memory_space<vmem>>, vector<1x32xf32>
    %c81 = arith.constant 81 : index
    %c0_5 = arith.constant 0 : index
    %11 = vector.load %arg1[%c81, %c0_5] : memref<82x32xf32, #tpu.memory_space<vmem>>, vector<1x32xf32>
    %12 = arith.addf %7, %9 : vector<16x32xf32>
    %cst_6 = arith.constant dense<0.000000e+00> : vector<16xf32>
    %13 = vector.multi_reduction <add>, %12, %cst_6 [1] : vector<16x32xf32> to vector<16xf32>
    %14 = vector.shape_cast %13 : vector<16xf32> to vector<16x1xf32>
    %cst_7 = arith.constant 3.200000e+01 : f32
    %15 = vector.broadcast %cst_7 : f32 to vector<16x1xf32>
    %16 = arith.divf %14, %15 : vector<16x1xf32>
    %17 = vector.broadcast %16 : vector<16x1xf32> to vector<16x32xf32>
    %18 = arith.subf %12, %17 : vector<16x32xf32>
    %19 = arith.mulf %18, %18 : vector<16x32xf32>
    %cst_8 = arith.constant dense<0.000000e+00> : vector<16xf32>
    %20 = vector.multi_reduction <add>, %19, %cst_8 [1] : vector<16x32xf32> to vector<16xf32>
    %21 = vector.shape_cast %20 : vector<16xf32> to vector<16x1xf32>
    %cst_9 = arith.constant 3.200000e+01 : f32
    %22 = vector.broadcast %cst_9 : f32 to vector<16x1xf32>
    %23 = arith.divf %21, %22 : vector<16x1xf32>
    %24 = vector.broadcast %16 : vector<16x1xf32> to vector<16x32xf32>
    %25 = arith.subf %12, %24 : vector<16x32xf32>
    %cst_10 = arith.constant 9.99999996E-13 : f32
    %26 = vector.broadcast %cst_10 : f32 to vector<16x1xf32>
    %27 = arith.addf %23, %26 : vector<16x1xf32>
    %28 = math.rsqrt %27 : vector<16x1xf32>
    %29 = vector.broadcast %28 : vector<16x1xf32> to vector<16x32xf32>
    %30 = arith.mulf %25, %29 : vector<16x32xf32>
    %31 = vector.broadcast %10 : vector<1x32xf32> to vector<16x32xf32>
    %32 = arith.mulf %30, %31 : vector<16x32xf32>
    %33 = vector.broadcast %11 : vector<1x32xf32> to vector<16x32xf32>
    %34 = arith.addf %32, %33 : vector<16x32xf32>
    %c0_11 = arith.constant 0 : index
    %c0_12 = arith.constant 0 : index
    %c0_13 = arith.constant 0 : index
    %35 = vector.load %arg2[%c0_11, %c0_12, %c0_13] : memref<2x32x128xbf16, #tpu.memory_space<vmem>>, vector<1x32x128xbf16>
    %36 = vector.shape_cast %35 : vector<1x32x128xbf16> to vector<32x128xbf16>
    %c0_14 = arith.constant 0 : index
    %c0_15 = arith.constant 0 : index
    %c0_16 = arith.constant 0 : index
    %37 = vector.load %arg5[%c0_14, %c0_15, %c0_16] : memref<2x8x128xf32, #tpu.memory_space<vmem>>, vector<1x8x128xf32>
    %38 = vector.shape_cast %37 : vector<1x8x128xf32> to vector<8x128xf32>
    %39 = arith.truncf %34 : vector<16x32xf32> to vector<16x32xbf16>
    %40 = vector.extract_strided_slice %36 {offsets = [0, 0], sizes = [32, 96], strides = [1, 1]} : vector<32x128xbf16> to vector<32x96xbf16>
    %cst_17 = arith.constant dense<0.000000e+00> : vector<16x96xf32>
    %41 = tpu.matmul %39, %40, %cst_17 {dimension_numbers = #tpu.dot_dimension_numbers<[1], [0], [0], [1], [0, 0, 1, 1], [], []>} : vector<16x32xbf16>, vector<32x96xbf16>, vector<16x96xf32> -> vector<16x96xf32>
    %42 = vector.extract_strided_slice %38 {offsets = [0, 0], sizes = [1, 96], strides = [1, 1]} : vector<8x128xf32> to vector<1x96xf32>
    %43 = vector.broadcast %42 : vector<1x96xf32> to vector<16x96xf32>
    %44 = arith.addf %41, %43 : vector<16x96xf32>
    %45 = vector.extract_strided_slice %44 {offsets = [0, 0], sizes = [16, 32], strides = [1, 1]} : vector<16x96xf32> to vector<16x32xf32>
    %46 = vector.extract_strided_slice %44 {offsets = [0, 32], sizes = [16, 32], strides = [1, 1]} : vector<16x96xf32> to vector<16x32xf32>
    %47 = vector.extract_strided_slice %44 {offsets = [0, 64], sizes = [16, 32], strides = [1, 1]} : vector<16x96xf32> to vector<16x32xf32>
    %48 = vector.extract_strided_slice %45 {offsets = [0, 0], sizes = [8, 16], strides = [1, 1]} : vector<16x32xf32> to vector<8x16xf32>
    %49 = arith.truncf %48 : vector<8x16xf32> to vector<8x16xbf16>
    %50 = vector.extract_strided_slice %46 {offsets = [0, 0], sizes = [8, 16], strides = [1, 1]} : vector<16x32xf32> to vector<8x16xf32>
    %51 = arith.truncf %50 : vector<8x16xf32> to vector<8x16xbf16>
    %cst_18 = arith.constant dense<0.000000e+00> : vector<8x8xf32>
    %52 = tpu.matmul %49, %51, %cst_18 {dimension_numbers = #tpu.dot_dimension_numbers<[1], [1], [0], [0], [0, 0, 1, 0], [], []>} : vector<8x16xbf16>, vector<8x16xbf16>, vector<8x8xf32> -> vector<8x8xf32>
    %53 = vector.extract_strided_slice %45 {offsets = [0, 16], sizes = [8, 16], strides = [1, 1]} : vector<16x32xf32> to vector<8x16xf32>
    %54 = arith.truncf %53 : vector<8x16xf32> to vector<8x16xbf16>
    %55 = vector.extract_strided_slice %46 {offsets = [0, 16], sizes = [8, 16], strides = [1, 1]} : vector<16x32xf32> to vector<8x16xf32>
    %56 = arith.truncf %55 : vector<8x16xf32> to vector<8x16xbf16>
    %cst_19 = arith.constant dense<0.000000e+00> : vector<8x8xf32>
    %57 = tpu.matmul %54, %56, %cst_19 {dimension_numbers = #tpu.dot_dimension_numbers<[1], [1], [0], [0], [0, 0, 1, 0], [], []>} : vector<8x16xbf16>, vector<8x16xbf16>, vector<8x8xf32> -> vector<8x8xf32>
    %58 = vector.extract_strided_slice %45 {offsets = [8, 0], sizes = [8, 16], strides = [1, 1]} : vector<16x32xf32> to vector<8x16xf32>
    %59 = arith.truncf %58 : vector<8x16xf32> to vector<8x16xbf16>
    %60 = vector.extract_strided_slice %46 {offsets = [8, 0], sizes = [8, 16], strides = [1, 1]} : vector<16x32xf32> to vector<8x16xf32>
    %61 = arith.truncf %60 : vector<8x16xf32> to vector<8x16xbf16>
    %cst_20 = arith.constant dense<0.000000e+00> : vector<8x8xf32>
    %62 = tpu.matmul %59, %61, %cst_20 {dimension_numbers = #tpu.dot_dimension_numbers<[1], [1], [0], [0], [0, 0, 1, 0], [], []>} : vector<8x16xbf16>, vector<8x16xbf16>, vector<8x8xf32> -> vector<8x8xf32>
    %63 = vector.extract_strided_slice %45 {offsets = [8, 16], sizes = [8, 16], strides = [1, 1]} : vector<16x32xf32> to vector<8x16xf32>
    %64 = arith.truncf %63 : vector<8x16xf32> to vector<8x16xbf16>
    %65 = vector.extract_strided_slice %46 {offsets = [8, 16], sizes = [8, 16], strides = [1, 1]} : vector<16x32xf32> to vector<8x16xf32>
    %66 = arith.truncf %65 : vector<8x16xf32> to vector<8x16xbf16>
    %cst_21 = arith.constant dense<0.000000e+00> : vector<8x8xf32>
    %67 = tpu.matmul %64, %66, %cst_21 {dimension_numbers = #tpu.dot_dimension_numbers<[1], [1], [0], [0], [0, 0, 1, 0], [], []>} : vector<8x16xbf16>, vector<8x16xbf16>, vector<8x8xf32> -> vector<8x8xf32>
    %68 = tpu.concatenate %52, %57, %62, %67 in 0 : vector<8x8xf32>, vector<8x8xf32>, vector<8x8xf32>, vector<8x8xf32> -> vector<32x8xf32>
    %cst_22 = arith.constant dense<0xFF800000> : vector<32xf32>
    %69 = vector.multi_reduction <maximumf>, %68, %cst_22 [1] : vector<32x8xf32> to vector<32xf32>
    %70 = vector.shape_cast %69 : vector<32xf32> to vector<32x1xf32>
    %71 = vector.broadcast %70 : vector<32x1xf32> to vector<32x8xf32>
    %72 = arith.subf %68, %71 : vector<32x8xf32>
    %73 = math.exp %72 : vector<32x8xf32>
    %cst_23 = arith.constant dense<0.000000e+00> : vector<32xf32>
    %74 = vector.multi_reduction <add>, %73, %cst_23 [1] : vector<32x8xf32> to vector<32xf32>
    %75 = vector.shape_cast %74 : vector<32xf32> to vector<32x1xf32>
    %76 = tpu.reciprocal %75 {approx = true} : vector<32x1xf32> -> vector<32x1xf32>
    %77 = vector.broadcast %76 : vector<32x1xf32> to vector<32x8xf32>
    %78 = arith.mulf %73, %77 : vector<32x8xf32>
    %79 = vector.extract_strided_slice %78 {offsets = [0, 0], sizes = [8, 8], strides = [1, 1]} : vector<32x8xf32> to vector<8x8xf32>
    %80 = arith.truncf %79 : vector<8x8xf32> to vector<8x8xbf16>
    %81 = vector.extract_strided_slice %47 {offsets = [0, 0], sizes = [8, 16], strides = [1, 1]} : vector<16x32xf32> to vector<8x16xf32>
    %82 = arith.truncf %81 : vector<8x16xf32> to vector<8x16xbf16>
    %cst_24 = arith.constant dense<0.000000e+00> : vector<8x16xf32>
    %83 = tpu.matmul %80, %82, %cst_24 {dimension_numbers = #tpu.dot_dimension_numbers<[1], [0], [0], [1], [0, 0, 1, 1], [], []>} : vector<8x8xbf16>, vector<8x16xbf16>, vector<8x16xf32> -> vector<8x16xf32>
    %84 = vector.extract_strided_slice %78 {offsets = [8, 0], sizes = [8, 8], strides = [1, 1]} : vector<32x8xf32> to vector<8x8xf32>
    %85 = arith.truncf %84 : vector<8x8xf32> to vector<8x8xbf16>
    %86 = vector.extract_strided_slice %47 {offsets = [0, 16], sizes = [8, 16], strides = [1, 1]} : vector<16x32xf32> to vector<8x16xf32>
    %87 = arith.truncf %86 : vector<8x16xf32> to vector<8x16xbf16>
    %cst_25 = arith.constant dense<0.000000e+00> : vector<8x16xf32>
    %88 = tpu.matmul %85, %87, %cst_25 {dimension_numbers = #tpu.dot_dimension_numbers<[1], [0], [0], [1], [0, 0, 1, 1], [], []>} : vector<8x8xbf16>, vector<8x16xbf16>, vector<8x16xf32> -> vector<8x16xf32>
    %89 = tpu.concatenate %83, %88 in 1 : vector<8x16xf32>, vector<8x16xf32> -> vector<8x32xf32>
    %90 = vector.extract_strided_slice %78 {offsets = [16, 0], sizes = [8, 8], strides = [1, 1]} : vector<32x8xf32> to vector<8x8xf32>
    %91 = arith.truncf %90 : vector<8x8xf32> to vector<8x8xbf16>
    %92 = vector.extract_strided_slice %47 {offsets = [8, 0], sizes = [8, 16], strides = [1, 1]} : vector<16x32xf32> to vector<8x16xf32>
    %93 = arith.truncf %92 : vector<8x16xf32> to vector<8x16xbf16>
    %cst_26 = arith.constant dense<0.000000e+00> : vector<8x16xf32>
    %94 = tpu.matmul %91, %93, %cst_26 {dimension_numbers = #tpu.dot_dimension_numbers<[1], [0], [0], [1], [0, 0, 1, 1], [], []>} : vector<8x8xbf16>, vector<8x16xbf16>, vector<8x16xf32> -> vector<8x16xf32>
    %95 = vector.extract_strided_slice %78 {offsets = [24, 0], sizes = [8, 8], strides = [1, 1]} : vector<32x8xf32> to vector<8x8xf32>
    %96 = arith.truncf %95 : vector<8x8xf32> to vector<8x8xbf16>
    %97 = vector.extract_strided_slice %47 {offsets = [8, 16], sizes = [8, 16], strides = [1, 1]} : vector<16x32xf32> to vector<8x16xf32>
    %98 = arith.truncf %97 : vector<8x16xf32> to vector<8x16xbf16>
    %cst_27 = arith.constant dense<0.000000e+00> : vector<8x16xf32>
    %99 = tpu.matmul %96, %98, %cst_27 {dimension_numbers = #tpu.dot_dimension_numbers<[1], [0], [0], [1], [0, 0, 1, 1], [], []>} : vector<8x8xbf16>, vector<8x16xbf16>, vector<8x16xf32> -> vector<8x16xf32>
    %100 = tpu.concatenate %94, %99 in 1 : vector<8x16xf32>, vector<8x16xf32> -> vector<8x32xf32>
    %101 = tpu.concatenate %89, %100 in 0 : vector<8x32xf32>, vector<8x32xf32> -> vector<16x32xf32>
    %102 = arith.truncf %101 : vector<16x32xf32> to vector<16x32xbf16>
    %103 = vector.extract_strided_slice %36 {offsets = [0, 96], sizes = [32, 32], strides = [1, 1]} : vector<32x128xbf16> to vector<32x32xbf16>
    %cst_28 = arith.constant dense<0.000000e+00> : vector<16x32xf32>
    %104 = tpu.matmul %102, %103, %cst_28 {dimension_numbers = #tpu.dot_dimension_numbers<[1], [0], [0], [1], [0, 0, 1, 1], [], []>} : vector<16x32xbf16>, vector<32x32xbf16>, vector<16x32xf32> -> vector<16x32xf32>
    %105 = vector.extract_strided_slice %38 {offsets = [1, 0], sizes = [1, 32], strides = [1, 1]} : vector<8x128xf32> to vector<1x32xf32>
    %106 = vector.broadcast %105 : vector<1x32xf32> to vector<16x32xf32>
    %107 = arith.addf %104, %106 : vector<16x32xf32>
    %108 = arith.addf %34, %107 : vector<16x32xf32>
    %109 = vector.extract_strided_slice %38 {offsets = [2, 0], sizes = [1, 32], strides = [1, 1]} : vector<8x128xf32> to vector<1x32xf32>
    %110 = vector.extract_strided_slice %38 {offsets = [3, 0], sizes = [1, 32], strides = [1, 1]} : vector<8x128xf32> to vector<1x32xf32>
    %cst_29 = arith.constant dense<0.000000e+00> : vector<16xf32>
    %111 = vector.multi_reduction <add>, %108, %cst_29 [1] : vector<16x32xf32> to vector<16xf32>
    %112 = vector.shape_cast %111 : vector<16xf32> to vector<16x1xf32>
    %cst_30 = arith.constant 3.200000e+01 : f32
    %113 = vector.broadcast %cst_30 : f32 to vector<16x1xf32>
    %114 = arith.divf %112, %113 : vector<16x1xf32>
    %115 = vector.broadcast %114 : vector<16x1xf32> to vector<16x32xf32>
    %116 = arith.subf %108, %115 : vector<16x32xf32>
    %117 = arith.mulf %116, %116 : vector<16x32xf32>
    %cst_31 = arith.constant dense<0.000000e+00> : vector<16xf32>
    %118 = vector.multi_reduction <add>, %117, %cst_31 [1] : vector<16x32xf32> to vector<16xf32>
    %119 = vector.shape_cast %118 : vector<16xf32> to vector<16x1xf32>
    %cst_32 = arith.constant 3.200000e+01 : f32
    %120 = vector.broadcast %cst_32 : f32 to vector<16x1xf32>
    %121 = arith.divf %119, %120 : vector<16x1xf32>
    %122 = vector.broadcast %114 : vector<16x1xf32> to vector<16x32xf32>
    %123 = arith.subf %108, %122 : vector<16x32xf32>
    %cst_33 = arith.constant 9.99999996E-13 : f32
    %124 = vector.broadcast %cst_33 : f32 to vector<16x1xf32>
    %125 = arith.addf %121, %124 : vector<16x1xf32>
    %126 = math.rsqrt %125 : vector<16x1xf32>
    %127 = vector.broadcast %126 : vector<16x1xf32> to vector<16x32xf32>
    %128 = arith.mulf %123, %127 : vector<16x32xf32>
    %129 = vector.broadcast %109 : vector<1x32xf32> to vector<16x32xf32>
    %130 = arith.mulf %128, %129 : vector<16x32xf32>
    %131 = vector.broadcast %110 : vector<1x32xf32> to vector<16x32xf32>
    %132 = arith.addf %130, %131 : vector<16x32xf32>
    %133 = arith.truncf %132 : vector<16x32xf32> to vector<16x32xbf16>
    %c0_34 = arith.constant 0 : index
    %c0_35 = arith.constant 0 : index
    %c0_36 = arith.constant 0 : index
    %134 = vector.load %arg3[%c0_34, %c0_35, %c0_36] : memref<2x32x64xbf16, #tpu.memory_space<vmem>>, vector<1x32x64xbf16>
    %135 = vector.shape_cast %134 : vector<1x32x64xbf16> to vector<32x64xbf16>
    %cst_37 = arith.constant dense<0.000000e+00> : vector<16x64xf32>
    %136 = tpu.matmul %133, %135, %cst_37 {dimension_numbers = #tpu.dot_dimension_numbers<[1], [0], [0], [1], [0, 0, 1, 1], [], []>} : vector<16x32xbf16>, vector<32x64xbf16>, vector<16x64xf32> -> vector<16x64xf32>
    %137 = vector.extract_strided_slice %38 {offsets = [4, 0], sizes = [1, 64], strides = [1, 1]} : vector<8x128xf32> to vector<1x64xf32>
    %138 = vector.broadcast %137 : vector<1x64xf32> to vector<16x64xf32>
    %139 = arith.addf %136, %138 : vector<16x64xf32>
    %cst_38 = arith.constant 5.000000e-01 : f32
    %140 = vector.broadcast %cst_38 : f32 to vector<16x64xf32>
    %141 = arith.mulf %140, %139 : vector<16x64xf32>
    %cst_39 = arith.constant 0.707106769 : f32
    %142 = vector.broadcast %cst_39 : f32 to vector<16x64xf32>
    %143 = arith.mulf %139, %142 : vector<16x64xf32>
    %cst_40 = arith.constant 0.000000e+00 : f32
    %144 = vector.broadcast %cst_40 : f32 to vector<16x64xf32>
    %145 = arith.cmpf oge, %143, %144 : vector<16x64xf32>
    %cst_41 = arith.constant 1.000000e+00 : f32
    %cst_42 = arith.constant -1.000000e+00 : f32
    %146 = vector.broadcast %cst_41 : f32 to vector<16x64xf32>
    %147 = vector.broadcast %cst_42 : f32 to vector<16x64xf32>
    %148 = arith.select %145, %146, %147 : vector<16x64xi1>, vector<16x64xf32>
    %149 = math.absf %143 : vector<16x64xf32>
    %cst_43 = arith.constant 0.327591091 : f32
    %150 = vector.broadcast %cst_43 : f32 to vector<16x64xf32>
    %151 = arith.mulf %150, %149 : vector<16x64xf32>
    %cst_44 = arith.constant 1.000000e+00 : f32
    %152 = vector.broadcast %cst_44 : f32 to vector<16x64xf32>
    %153 = arith.addf %152, %151 : vector<16x64xf32>
    %cst_45 = arith.constant 1.000000e+00 : f32
    %154 = vector.broadcast %cst_45 : f32 to vector<16x64xf32>
    %155 = arith.divf %154, %153 : vector<16x64xf32>
    %cst_46 = arith.constant 1.06140542 : f32
    %156 = vector.broadcast %cst_46 : f32 to vector<16x64xf32>
    %157 = arith.mulf %156, %155 : vector<16x64xf32>
    %cst_47 = arith.constant -1.45315206 : f32
    %158 = vector.broadcast %cst_47 : f32 to vector<16x64xf32>
    %159 = arith.addf %157, %158 : vector<16x64xf32>
    %160 = arith.mulf %159, %155 : vector<16x64xf32>
    %cst_48 = arith.constant 1.42141378 : f32
    %161 = vector.broadcast %cst_48 : f32 to vector<16x64xf32>
    %162 = arith.addf %160, %161 : vector<16x64xf32>
    %163 = arith.mulf %162, %155 : vector<16x64xf32>
    %cst_49 = arith.constant -0.284496725 : f32
    %164 = vector.broadcast %cst_49 : f32 to vector<16x64xf32>
    %165 = arith.addf %163, %164 : vector<16x64xf32>
    %166 = arith.mulf %165, %155 : vector<16x64xf32>
    %cst_50 = arith.constant 0.254829586 : f32
    %167 = vector.broadcast %cst_50 : f32 to vector<16x64xf32>
    %168 = arith.addf %166, %167 : vector<16x64xf32>
    %169 = arith.mulf %168, %155 : vector<16x64xf32>
    %cst_51 = arith.constant 0.000000e+00 : f32
    %170 = vector.broadcast %cst_51 : f32 to vector<16x64xf32>
    %171 = arith.subf %170, %149 : vector<16x64xf32>
    %172 = arith.mulf %171, %149 : vector<16x64xf32>
    %173 = math.exp %172 : vector<16x64xf32>
    %174 = arith.mulf %169, %173 : vector<16x64xf32>
    %cst_52 = arith.constant 1.000000e+00 : f32
    %175 = vector.broadcast %cst_52 : f32 to vector<16x64xf32>
    %176 = arith.subf %175, %174 : vector<16x64xf32>
    %177 = arith.mulf %148, %176 : vector<16x64xf32>
    %cst_53 = arith.constant 1.000000e+00 : f32
    %178 = vector.broadcast %cst_53 : f32 to vector<16x64xf32>
    %179 = arith.addf %178, %177 : vector<16x64xf32>
    %180 = arith.mulf %141, %179 : vector<16x64xf32>
    %181 = arith.truncf %180 : vector<16x64xf32> to vector<16x64xbf16>
    %c0_54 = arith.constant 0 : index
    %c0_55 = arith.constant 0 : index
    %c0_56 = arith.constant 0 : index
    %182 = vector.load %arg4[%c0_54, %c0_55, %c0_56] : memref<2x64x32xbf16, #tpu.memory_space<vmem>>, vector<1x64x32xbf16>
    %183 = vector.shape_cast %182 : vector<1x64x32xbf16> to vector<64x32xbf16>
    %cst_57 = arith.constant dense<0.000000e+00> : vector<16x32xf32>
    %184 = tpu.matmul %181, %183, %cst_57 {dimension_numbers = #tpu.dot_dimension_numbers<[1], [0], [0], [1], [0, 0, 1, 1], [], []>} : vector<16x64xbf16>, vector<64x32xbf16>, vector<16x32xf32> -> vector<16x32xf32>
    %185 = vector.extract_strided_slice %38 {offsets = [5, 0], sizes = [1, 32], strides = [1, 1]} : vector<8x128xf32> to vector<1x32xf32>
    %186 = vector.broadcast %185 : vector<1x32xf32> to vector<16x32xf32>
    %187 = arith.addf %184, %186 : vector<16x32xf32>
    %188 = arith.addf %132, %187 : vector<16x32xf32>
    %189 = vector.extract_strided_slice %38 {offsets = [6, 0], sizes = [1, 32], strides = [1, 1]} : vector<8x128xf32> to vector<1x32xf32>
    %190 = vector.extract_strided_slice %38 {offsets = [7, 0], sizes = [1, 32], strides = [1, 1]} : vector<8x128xf32> to vector<1x32xf32>
    %cst_58 = arith.constant dense<0.000000e+00> : vector<16xf32>
    %191 = vector.multi_reduction <add>, %188, %cst_58 [1] : vector<16x32xf32> to vector<16xf32>
    %192 = vector.shape_cast %191 : vector<16xf32> to vector<16x1xf32>
    %cst_59 = arith.constant 3.200000e+01 : f32
    %193 = vector.broadcast %cst_59 : f32 to vector<16x1xf32>
    %194 = arith.divf %192, %193 : vector<16x1xf32>
    %195 = vector.broadcast %194 : vector<16x1xf32> to vector<16x32xf32>
    %196 = arith.subf %188, %195 : vector<16x32xf32>
    %197 = arith.mulf %196, %196 : vector<16x32xf32>
    %cst_60 = arith.constant dense<0.000000e+00> : vector<16xf32>
    %198 = vector.multi_reduction <add>, %197, %cst_60 [1] : vector<16x32xf32> to vector<16xf32>
    %199 = vector.shape_cast %198 : vector<16xf32> to vector<16x1xf32>
    %cst_61 = arith.constant 3.200000e+01 : f32
    %200 = vector.broadcast %cst_61 : f32 to vector<16x1xf32>
    %201 = arith.divf %199, %200 : vector<16x1xf32>
    %202 = vector.broadcast %194 : vector<16x1xf32> to vector<16x32xf32>
    %203 = arith.subf %188, %202 : vector<16x32xf32>
    %cst_62 = arith.constant 9.99999996E-13 : f32
    %204 = vector.broadcast %cst_62 : f32 to vector<16x1xf32>
    %205 = arith.addf %201, %204 : vector<16x1xf32>
    %206 = math.rsqrt %205 : vector<16x1xf32>
    %207 = vector.broadcast %206 : vector<16x1xf32> to vector<16x32xf32>
    %208 = arith.mulf %203, %207 : vector<16x32xf32>
    %209 = vector.broadcast %189 : vector<1x32xf32> to vector<16x32xf32>
    %210 = arith.mulf %208, %209 : vector<16x32xf32>
    %211 = vector.broadcast %190 : vector<1x32xf32> to vector<16x32xf32>
    %212 = arith.addf %210, %211 : vector<16x32xf32>
    %c1 = arith.constant 1 : index
    %c0_63 = arith.constant 0 : index
    %c0_64 = arith.constant 0 : index
    %213 = vector.load %arg2[%c1, %c0_63, %c0_64] : memref<2x32x128xbf16, #tpu.memory_space<vmem>>, vector<1x32x128xbf16>
    %214 = vector.shape_cast %213 : vector<1x32x128xbf16> to vector<32x128xbf16>
    %c1_65 = arith.constant 1 : index
    %c0_66 = arith.constant 0 : index
    %c0_67 = arith.constant 0 : index
    %215 = vector.load %arg5[%c1_65, %c0_66, %c0_67] : memref<2x8x128xf32, #tpu.memory_space<vmem>>, vector<1x8x128xf32>
    %216 = vector.shape_cast %215 : vector<1x8x128xf32> to vector<8x128xf32>
    %217 = arith.truncf %212 : vector<16x32xf32> to vector<16x32xbf16>
    %218 = vector.extract_strided_slice %214 {offsets = [0, 0], sizes = [32, 96], strides = [1, 1]} : vector<32x128xbf16> to vector<32x96xbf16>
    %cst_68 = arith.constant dense<0.000000e+00> : vector<16x96xf32>
    %219 = tpu.matmul %217, %218, %cst_68 {dimension_numbers = #tpu.dot_dimension_numbers<[1], [0], [0], [1], [0, 0, 1, 1], [], []>} : vector<16x32xbf16>, vector<32x96xbf16>, vector<16x96xf32> -> vector<16x96xf32>
    %220 = vector.extract_strided_slice %216 {offsets = [0, 0], sizes = [1, 96], strides = [1, 1]} : vector<8x128xf32> to vector<1x96xf32>
    %221 = vector.broadcast %220 : vector<1x96xf32> to vector<16x96xf32>
    %222 = arith.addf %219, %221 : vector<16x96xf32>
    %223 = vector.extract_strided_slice %222 {offsets = [0, 0], sizes = [16, 32], strides = [1, 1]} : vector<16x96xf32> to vector<16x32xf32>
    %224 = vector.extract_strided_slice %222 {offsets = [0, 32], sizes = [16, 32], strides = [1, 1]} : vector<16x96xf32> to vector<16x32xf32>
    %225 = vector.extract_strided_slice %222 {offsets = [0, 64], sizes = [16, 32], strides = [1, 1]} : vector<16x96xf32> to vector<16x32xf32>
    %226 = vector.extract_strided_slice %223 {offsets = [0, 0], sizes = [8, 16], strides = [1, 1]} : vector<16x32xf32> to vector<8x16xf32>
    %227 = arith.truncf %226 : vector<8x16xf32> to vector<8x16xbf16>
    %228 = vector.extract_strided_slice %224 {offsets = [0, 0], sizes = [8, 16], strides = [1, 1]} : vector<16x32xf32> to vector<8x16xf32>
    %229 = arith.truncf %228 : vector<8x16xf32> to vector<8x16xbf16>
    %cst_69 = arith.constant dense<0.000000e+00> : vector<8x8xf32>
    %230 = tpu.matmul %227, %229, %cst_69 {dimension_numbers = #tpu.dot_dimension_numbers<[1], [1], [0], [0], [0, 0, 1, 0], [], []>} : vector<8x16xbf16>, vector<8x16xbf16>, vector<8x8xf32> -> vector<8x8xf32>
    %231 = vector.extract_strided_slice %223 {offsets = [0, 16], sizes = [8, 16], strides = [1, 1]} : vector<16x32xf32> to vector<8x16xf32>
    %232 = arith.truncf %231 : vector<8x16xf32> to vector<8x16xbf16>
    %233 = vector.extract_strided_slice %224 {offsets = [0, 16], sizes = [8, 16], strides = [1, 1]} : vector<16x32xf32> to vector<8x16xf32>
    %234 = arith.truncf %233 : vector<8x16xf32> to vector<8x16xbf16>
    %cst_70 = arith.constant dense<0.000000e+00> : vector<8x8xf32>
    %235 = tpu.matmul %232, %234, %cst_70 {dimension_numbers = #tpu.dot_dimension_numbers<[1], [1], [0], [0], [0, 0, 1, 0], [], []>} : vector<8x16xbf16>, vector<8x16xbf16>, vector<8x8xf32> -> vector<8x8xf32>
    %236 = vector.extract_strided_slice %223 {offsets = [8, 0], sizes = [8, 16], strides = [1, 1]} : vector<16x32xf32> to vector<8x16xf32>
    %237 = arith.truncf %236 : vector<8x16xf32> to vector<8x16xbf16>
    %238 = vector.extract_strided_slice %224 {offsets = [8, 0], sizes = [8, 16], strides = [1, 1]} : vector<16x32xf32> to vector<8x16xf32>
    %239 = arith.truncf %238 : vector<8x16xf32> to vector<8x16xbf16>
    %cst_71 = arith.constant dense<0.000000e+00> : vector<8x8xf32>
    %240 = tpu.matmul %237, %239, %cst_71 {dimension_numbers = #tpu.dot_dimension_numbers<[1], [1], [0], [0], [0, 0, 1, 0], [], []>} : vector<8x16xbf16>, vector<8x16xbf16>, vector<8x8xf32> -> vector<8x8xf32>
    %241 = vector.extract_strided_slice %223 {offsets = [8, 16], sizes = [8, 16], strides = [1, 1]} : vector<16x32xf32> to vector<8x16xf32>
    %242 = arith.truncf %241 : vector<8x16xf32> to vector<8x16xbf16>
    %243 = vector.extract_strided_slice %224 {offsets = [8, 16], sizes = [8, 16], strides = [1, 1]} : vector<16x32xf32> to vector<8x16xf32>
    %244 = arith.truncf %243 : vector<8x16xf32> to vector<8x16xbf16>
    %cst_72 = arith.constant dense<0.000000e+00> : vector<8x8xf32>
    %245 = tpu.matmul %242, %244, %cst_72 {dimension_numbers = #tpu.dot_dimension_numbers<[1], [1], [0], [0], [0, 0, 1, 0], [], []>} : vector<8x16xbf16>, vector<8x16xbf16>, vector<8x8xf32> -> vector<8x8xf32>
    %246 = tpu.concatenate %230, %235, %240, %245 in 0 : vector<8x8xf32>, vector<8x8xf32>, vector<8x8xf32>, vector<8x8xf32> -> vector<32x8xf32>
    %cst_73 = arith.constant dense<0xFF800000> : vector<32xf32>
    %247 = vector.multi_reduction <maximumf>, %246, %cst_73 [1] : vector<32x8xf32> to vector<32xf32>
    %248 = vector.shape_cast %247 : vector<32xf32> to vector<32x1xf32>
    %249 = vector.broadcast %248 : vector<32x1xf32> to vector<32x8xf32>
    %250 = arith.subf %246, %249 : vector<32x8xf32>
    %251 = math.exp %250 : vector<32x8xf32>
    %cst_74 = arith.constant dense<0.000000e+00> : vector<32xf32>
    %252 = vector.multi_reduction <add>, %251, %cst_74 [1] : vector<32x8xf32> to vector<32xf32>
    %253 = vector.shape_cast %252 : vector<32xf32> to vector<32x1xf32>
    %254 = tpu.reciprocal %253 {approx = true} : vector<32x1xf32> -> vector<32x1xf32>
    %255 = vector.broadcast %254 : vector<32x1xf32> to vector<32x8xf32>
    %256 = arith.mulf %251, %255 : vector<32x8xf32>
    %257 = vector.extract_strided_slice %256 {offsets = [0, 0], sizes = [8, 8], strides = [1, 1]} : vector<32x8xf32> to vector<8x8xf32>
    %258 = arith.truncf %257 : vector<8x8xf32> to vector<8x8xbf16>
    %259 = vector.extract_strided_slice %225 {offsets = [0, 0], sizes = [8, 16], strides = [1, 1]} : vector<16x32xf32> to vector<8x16xf32>
    %260 = arith.truncf %259 : vector<8x16xf32> to vector<8x16xbf16>
    %cst_75 = arith.constant dense<0.000000e+00> : vector<8x16xf32>
    %261 = tpu.matmul %258, %260, %cst_75 {dimension_numbers = #tpu.dot_dimension_numbers<[1], [0], [0], [1], [0, 0, 1, 1], [], []>} : vector<8x8xbf16>, vector<8x16xbf16>, vector<8x16xf32> -> vector<8x16xf32>
    %262 = vector.extract_strided_slice %256 {offsets = [8, 0], sizes = [8, 8], strides = [1, 1]} : vector<32x8xf32> to vector<8x8xf32>
    %263 = arith.truncf %262 : vector<8x8xf32> to vector<8x8xbf16>
    %264 = vector.extract_strided_slice %225 {offsets = [0, 16], sizes = [8, 16], strides = [1, 1]} : vector<16x32xf32> to vector<8x16xf32>
    %265 = arith.truncf %264 : vector<8x16xf32> to vector<8x16xbf16>
    %cst_76 = arith.constant dense<0.000000e+00> : vector<8x16xf32>
    %266 = tpu.matmul %263, %265, %cst_76 {dimension_numbers = #tpu.dot_dimension_numbers<[1], [0], [0], [1], [0, 0, 1, 1], [], []>} : vector<8x8xbf16>, vector<8x16xbf16>, vector<8x16xf32> -> vector<8x16xf32>
    %267 = tpu.concatenate %261, %266 in 1 : vector<8x16xf32>, vector<8x16xf32> -> vector<8x32xf32>
    %268 = vector.extract_strided_slice %256 {offsets = [16, 0], sizes = [8, 8], strides = [1, 1]} : vector<32x8xf32> to vector<8x8xf32>
    %269 = arith.truncf %268 : vector<8x8xf32> to vector<8x8xbf16>
    %270 = vector.extract_strided_slice %225 {offsets = [8, 0], sizes = [8, 16], strides = [1, 1]} : vector<16x32xf32> to vector<8x16xf32>
    %271 = arith.truncf %270 : vector<8x16xf32> to vector<8x16xbf16>
    %cst_77 = arith.constant dense<0.000000e+00> : vector<8x16xf32>
    %272 = tpu.matmul %269, %271, %cst_77 {dimension_numbers = #tpu.dot_dimension_numbers<[1], [0], [0], [1], [0, 0, 1, 1], [], []>} : vector<8x8xbf16>, vector<8x16xbf16>, vector<8x16xf32> -> vector<8x16xf32>
    %273 = vector.extract_strided_slice %256 {offsets = [24, 0], sizes = [8, 8], strides = [1, 1]} : vector<32x8xf32> to vector<8x8xf32>
    %274 = arith.truncf %273 : vector<8x8xf32> to vector<8x8xbf16>
    %275 = vector.extract_strided_slice %225 {offsets = [8, 16], sizes = [8, 16], strides = [1, 1]} : vector<16x32xf32> to vector<8x16xf32>
    %276 = arith.truncf %275 : vector<8x16xf32> to vector<8x16xbf16>
    %cst_78 = arith.constant dense<0.000000e+00> : vector<8x16xf32>
    %277 = tpu.matmul %274, %276, %cst_78 {dimension_numbers = #tpu.dot_dimension_numbers<[1], [0], [0], [1], [0, 0, 1, 1], [], []>} : vector<8x8xbf16>, vector<8x16xbf16>, vector<8x16xf32> -> vector<8x16xf32>
    %278 = tpu.concatenate %272, %277 in 1 : vector<8x16xf32>, vector<8x16xf32> -> vector<8x32xf32>
    %279 = tpu.concatenate %267, %278 in 0 : vector<8x32xf32>, vector<8x32xf32> -> vector<16x32xf32>
    %280 = arith.truncf %279 : vector<16x32xf32> to vector<16x32xbf16>
    %281 = vector.extract_strided_slice %214 {offsets = [0, 96], sizes = [32, 32], strides = [1, 1]} : vector<32x128xbf16> to vector<32x32xbf16>
    %cst_79 = arith.constant dense<0.000000e+00> : vector<16x32xf32>
    %282 = tpu.matmul %280, %281, %cst_79 {dimension_numbers = #tpu.dot_dimension_numbers<[1], [0], [0], [1], [0, 0, 1, 1], [], []>} : vector<16x32xbf16>, vector<32x32xbf16>, vector<16x32xf32> -> vector<16x32xf32>
    %283 = vector.extract_strided_slice %216 {offsets = [1, 0], sizes = [1, 32], strides = [1, 1]} : vector<8x128xf32> to vector<1x32xf32>
    %284 = vector.broadcast %283 : vector<1x32xf32> to vector<16x32xf32>
    %285 = arith.addf %282, %284 : vector<16x32xf32>
    %286 = arith.addf %212, %285 : vector<16x32xf32>
    %287 = vector.extract_strided_slice %216 {offsets = [2, 0], sizes = [1, 32], strides = [1, 1]} : vector<8x128xf32> to vector<1x32xf32>
    %288 = vector.extract_strided_slice %216 {offsets = [3, 0], sizes = [1, 32], strides = [1, 1]} : vector<8x128xf32> to vector<1x32xf32>
    %cst_80 = arith.constant dense<0.000000e+00> : vector<16xf32>
    %289 = vector.multi_reduction <add>, %286, %cst_80 [1] : vector<16x32xf32> to vector<16xf32>
    %290 = vector.shape_cast %289 : vector<16xf32> to vector<16x1xf32>
    %cst_81 = arith.constant 3.200000e+01 : f32
    %291 = vector.broadcast %cst_81 : f32 to vector<16x1xf32>
    %292 = arith.divf %290, %291 : vector<16x1xf32>
    %293 = vector.broadcast %292 : vector<16x1xf32> to vector<16x32xf32>
    %294 = arith.subf %286, %293 : vector<16x32xf32>
    %295 = arith.mulf %294, %294 : vector<16x32xf32>
    %cst_82 = arith.constant dense<0.000000e+00> : vector<16xf32>
    %296 = vector.multi_reduction <add>, %295, %cst_82 [1] : vector<16x32xf32> to vector<16xf32>
    %297 = vector.shape_cast %296 : vector<16xf32> to vector<16x1xf32>
    %cst_83 = arith.constant 3.200000e+01 : f32
    %298 = vector.broadcast %cst_83 : f32 to vector<16x1xf32>
    %299 = arith.divf %297, %298 : vector<16x1xf32>
    %300 = vector.broadcast %292 : vector<16x1xf32> to vector<16x32xf32>
    %301 = arith.subf %286, %300 : vector<16x32xf32>
    %cst_84 = arith.constant 9.99999996E-13 : f32
    %302 = vector.broadcast %cst_84 : f32 to vector<16x1xf32>
    %303 = arith.addf %299, %302 : vector<16x1xf32>
    %304 = math.rsqrt %303 : vector<16x1xf32>
    %305 = vector.broadcast %304 : vector<16x1xf32> to vector<16x32xf32>
    %306 = arith.mulf %301, %305 : vector<16x32xf32>
    %307 = vector.broadcast %287 : vector<1x32xf32> to vector<16x32xf32>
    %308 = arith.mulf %306, %307 : vector<16x32xf32>
    %309 = vector.broadcast %288 : vector<1x32xf32> to vector<16x32xf32>
    %310 = arith.addf %308, %309 : vector<16x32xf32>
    %311 = arith.truncf %310 : vector<16x32xf32> to vector<16x32xbf16>
    %c1_85 = arith.constant 1 : index
    %c0_86 = arith.constant 0 : index
    %c0_87 = arith.constant 0 : index
    %312 = vector.load %arg3[%c1_85, %c0_86, %c0_87] : memref<2x32x64xbf16, #tpu.memory_space<vmem>>, vector<1x32x64xbf16>
    %313 = vector.shape_cast %312 : vector<1x32x64xbf16> to vector<32x64xbf16>
    %cst_88 = arith.constant dense<0.000000e+00> : vector<16x64xf32>
    %314 = tpu.matmul %311, %313, %cst_88 {dimension_numbers = #tpu.dot_dimension_numbers<[1], [0], [0], [1], [0, 0, 1, 1], [], []>} : vector<16x32xbf16>, vector<32x64xbf16>, vector<16x64xf32> -> vector<16x64xf32>
    %315 = vector.extract_strided_slice %216 {offsets = [4, 0], sizes = [1, 64], strides = [1, 1]} : vector<8x128xf32> to vector<1x64xf32>
    %316 = vector.broadcast %315 : vector<1x64xf32> to vector<16x64xf32>
    %317 = arith.addf %314, %316 : vector<16x64xf32>
    %cst_89 = arith.constant 5.000000e-01 : f32
    %318 = vector.broadcast %cst_89 : f32 to vector<16x64xf32>
    %319 = arith.mulf %318, %317 : vector<16x64xf32>
    %cst_90 = arith.constant 0.707106769 : f32
    %320 = vector.broadcast %cst_90 : f32 to vector<16x64xf32>
    %321 = arith.mulf %317, %320 : vector<16x64xf32>
    %cst_91 = arith.constant 0.000000e+00 : f32
    %322 = vector.broadcast %cst_91 : f32 to vector<16x64xf32>
    %323 = arith.cmpf oge, %321, %322 : vector<16x64xf32>
    %cst_92 = arith.constant 1.000000e+00 : f32
    %cst_93 = arith.constant -1.000000e+00 : f32
    %324 = vector.broadcast %cst_92 : f32 to vector<16x64xf32>
    %325 = vector.broadcast %cst_93 : f32 to vector<16x64xf32>
    %326 = arith.select %323, %324, %325 : vector<16x64xi1>, vector<16x64xf32>
    %327 = math.absf %321 : vector<16x64xf32>
    %cst_94 = arith.constant 0.327591091 : f32
    %328 = vector.broadcast %cst_94 : f32 to vector<16x64xf32>
    %329 = arith.mulf %328, %327 : vector<16x64xf32>
    %cst_95 = arith.constant 1.000000e+00 : f32
    %330 = vector.broadcast %cst_95 : f32 to vector<16x64xf32>
    %331 = arith.addf %330, %329 : vector<16x64xf32>
    %cst_96 = arith.constant 1.000000e+00 : f32
    %332 = vector.broadcast %cst_96 : f32 to vector<16x64xf32>
    %333 = arith.divf %332, %331 : vector<16x64xf32>
    %cst_97 = arith.constant 1.06140542 : f32
    %334 = vector.broadcast %cst_97 : f32 to vector<16x64xf32>
    %335 = arith.mulf %334, %333 : vector<16x64xf32>
    %cst_98 = arith.constant -1.45315206 : f32
    %336 = vector.broadcast %cst_98 : f32 to vector<16x64xf32>
    %337 = arith.addf %335, %336 : vector<16x64xf32>
    %338 = arith.mulf %337, %333 : vector<16x64xf32>
    %cst_99 = arith.constant 1.42141378 : f32
    %339 = vector.broadcast %cst_99 : f32 to vector<16x64xf32>
    %340 = arith.addf %338, %339 : vector<16x64xf32>
    %341 = arith.mulf %340, %333 : vector<16x64xf32>
    %cst_100 = arith.constant -0.284496725 : f32
    %342 = vector.broadcast %cst_100 : f32 to vector<16x64xf32>
    %343 = arith.addf %341, %342 : vector<16x64xf32>
    %344 = arith.mulf %343, %333 : vector<16x64xf32>
    %cst_101 = arith.constant 0.254829586 : f32
    %345 = vector.broadcast %cst_101 : f32 to vector<16x64xf32>
    %346 = arith.addf %344, %345 : vector<16x64xf32>
    %347 = arith.mulf %346, %333 : vector<16x64xf32>
    %cst_102 = arith.constant 0.000000e+00 : f32
    %348 = vector.broadcast %cst_102 : f32 to vector<16x64xf32>
    %349 = arith.subf %348, %327 : vector<16x64xf32>
    %350 = arith.mulf %349, %327 : vector<16x64xf32>
    %351 = math.exp %350 : vector<16x64xf32>
    %352 = arith.mulf %347, %351 : vector<16x64xf32>
    %cst_103 = arith.constant 1.000000e+00 : f32
    %353 = vector.broadcast %cst_103 : f32 to vector<16x64xf32>
    %354 = arith.subf %353, %352 : vector<16x64xf32>
    %355 = arith.mulf %326, %354 : vector<16x64xf32>
    %cst_104 = arith.constant 1.000000e+00 : f32
    %356 = vector.broadcast %cst_104 : f32 to vector<16x64xf32>
    %357 = arith.addf %356, %355 : vector<16x64xf32>
    %358 = arith.mulf %319, %357 : vector<16x64xf32>
    %359 = arith.truncf %358 : vector<16x64xf32> to vector<16x64xbf16>
    %c1_105 = arith.constant 1 : index
    %c0_106 = arith.constant 0 : index
    %c0_107 = arith.constant 0 : index
    %360 = vector.load %arg4[%c1_105, %c0_106, %c0_107] : memref<2x64x32xbf16, #tpu.memory_space<vmem>>, vector<1x64x32xbf16>
    %361 = vector.shape_cast %360 : vector<1x64x32xbf16> to vector<64x32xbf16>
    %cst_108 = arith.constant dense<0.000000e+00> : vector<16x32xf32>
    %362 = tpu.matmul %359, %361, %cst_108 {dimension_numbers = #tpu.dot_dimension_numbers<[1], [0], [0], [1], [0, 0, 1, 1], [], []>} : vector<16x64xbf16>, vector<64x32xbf16>, vector<16x32xf32> -> vector<16x32xf32>
    %363 = vector.extract_strided_slice %216 {offsets = [5, 0], sizes = [1, 32], strides = [1, 1]} : vector<8x128xf32> to vector<1x32xf32>
    %364 = vector.broadcast %363 : vector<1x32xf32> to vector<16x32xf32>
    %365 = arith.addf %362, %364 : vector<16x32xf32>
    %366 = arith.addf %310, %365 : vector<16x32xf32>
    %367 = vector.extract_strided_slice %216 {offsets = [6, 0], sizes = [1, 32], strides = [1, 1]} : vector<8x128xf32> to vector<1x32xf32>
    %368 = vector.extract_strided_slice %216 {offsets = [7, 0], sizes = [1, 32], strides = [1, 1]} : vector<8x128xf32> to vector<1x32xf32>
    %cst_109 = arith.constant dense<0.000000e+00> : vector<16xf32>
    %369 = vector.multi_reduction <add>, %366, %cst_109 [1] : vector<16x32xf32> to vector<16xf32>
    %370 = vector.shape_cast %369 : vector<16xf32> to vector<16x1xf32>
    %cst_110 = arith.constant 3.200000e+01 : f32
    %371 = vector.broadcast %cst_110 : f32 to vector<16x1xf32>
    %372 = arith.divf %370, %371 : vector<16x1xf32>
    %373 = vector.broadcast %372 : vector<16x1xf32> to vector<16x32xf32>
    %374 = arith.subf %366, %373 : vector<16x32xf32>
    %375 = arith.mulf %374, %374 : vector<16x32xf32>
    %cst_111 = arith.constant dense<0.000000e+00> : vector<16xf32>
    %376 = vector.multi_reduction <add>, %375, %cst_111 [1] : vector<16x32xf32> to vector<16xf32>
    %377 = vector.shape_cast %376 : vector<16xf32> to vector<16x1xf32>
    %cst_112 = arith.constant 3.200000e+01 : f32
    %378 = vector.broadcast %cst_112 : f32 to vector<16x1xf32>
    %379 = arith.divf %377, %378 : vector<16x1xf32>
    %380 = vector.broadcast %372 : vector<16x1xf32> to vector<16x32xf32>
    %381 = arith.subf %366, %380 : vector<16x32xf32>
    %cst_113 = arith.constant 9.99999996E-13 : f32
    %382 = vector.broadcast %cst_113 : f32 to vector<16x1xf32>
    %383 = arith.addf %379, %382 : vector<16x1xf32>
    %384 = math.rsqrt %383 : vector<16x1xf32>
    %385 = vector.broadcast %384 : vector<16x1xf32> to vector<16x32xf32>
    %386 = arith.mulf %381, %385 : vector<16x32xf32>
    %387 = vector.broadcast %367 : vector<1x32xf32> to vector<16x32xf32>
    %388 = arith.mulf %386, %387 : vector<16x32xf32>
    %389 = vector.broadcast %368 : vector<1x32xf32> to vector<16x32xf32>
    %390 = arith.addf %388, %389 : vector<16x32xf32>
    %391 = arith.truncf %390 : vector<16x32xf32> to vector<16x32xbf16>
    %c0_114 = arith.constant 0 : index
    %c0_115 = arith.constant 0 : index
    %392 = vector.load %arg6[%c0_114, %c0_115] : memref<32x256xbf16, #tpu.memory_space<vmem>>, vector<32x256xbf16>
    %cst_116 = arith.constant dense<0.000000e+00> : vector<16x256xf32>
    %393 = tpu.matmul %391, %392, %cst_116 {dimension_numbers = #tpu.dot_dimension_numbers<[1], [0], [0], [1], [0, 0, 1, 1], [], []>} : vector<16x32xbf16>, vector<32x256xbf16>, vector<16x256xf32> -> vector<16x256xf32>
    %c0_117 = arith.constant 0 : index
    %c0_118 = arith.constant 0 : index
    %394 = vector.load %arg9[%c0_117, %c0_118] : memref<4x256xf32, #tpu.memory_space<vmem>>, vector<1x256xf32>
    %395 = vector.broadcast %394 : vector<1x256xf32> to vector<16x256xf32>
    %396 = arith.addf %393, %395 : vector<16x256xf32>
    %397 = arith.truncf %396 : vector<16x256xf32> to vector<16x256xbf16>
    %c0_119 = arith.constant 0 : index
    %c0_120 = arith.constant 0 : index
    %c0_121 = arith.constant 0 : index
    %398 = vector.load %arg7[%c0_119, %c0_120, %c0_121] : memref<2x256x256xbf16, #tpu.memory_space<vmem>>, vector<1x256x256xbf16>
    %399 = vector.shape_cast %398 : vector<1x256x256xbf16> to vector<256x256xbf16>
    %cst_122 = arith.constant dense<0.000000e+00> : vector<16x256xf32>
    %400 = tpu.matmul %397, %399, %cst_122 {dimension_numbers = #tpu.dot_dimension_numbers<[1], [0], [0], [1], [0, 0, 1, 1], [], []>} : vector<16x256xbf16>, vector<256x256xbf16>, vector<16x256xf32> -> vector<16x256xf32>
    %c1_123 = arith.constant 1 : index
    %c0_124 = arith.constant 0 : index
    %401 = vector.load %arg9[%c1_123, %c0_124] : memref<4x256xf32, #tpu.memory_space<vmem>>, vector<1x256xf32>
    %402 = vector.broadcast %401 : vector<1x256xf32> to vector<16x256xf32>
    %403 = arith.addf %400, %402 : vector<16x256xf32>
    %404 = arith.truncf %403 : vector<16x256xf32> to vector<16x256xbf16>
    %c1_125 = arith.constant 1 : index
    %c0_126 = arith.constant 0 : index
    %c0_127 = arith.constant 0 : index
    %405 = vector.load %arg7[%c1_125, %c0_126, %c0_127] : memref<2x256x256xbf16, #tpu.memory_space<vmem>>, vector<1x256x256xbf16>
    %406 = vector.shape_cast %405 : vector<1x256x256xbf16> to vector<256x256xbf16>
    %cst_128 = arith.constant dense<0.000000e+00> : vector<16x256xf32>
    %407 = tpu.matmul %404, %406, %cst_128 {dimension_numbers = #tpu.dot_dimension_numbers<[1], [0], [0], [1], [0, 0, 1, 1], [], []>} : vector<16x256xbf16>, vector<256x256xbf16>, vector<16x256xf32> -> vector<16x256xf32>
    %c2 = arith.constant 2 : index
    %c0_129 = arith.constant 0 : index
    %408 = vector.load %arg9[%c2, %c0_129] : memref<4x256xf32, #tpu.memory_space<vmem>>, vector<1x256xf32>
    %409 = vector.broadcast %408 : vector<1x256xf32> to vector<16x256xf32>
    %410 = arith.addf %407, %409 : vector<16x256xf32>
    %411 = arith.truncf %410 : vector<16x256xf32> to vector<16x256xbf16>
    %c0_130 = arith.constant 0 : index
    %c0_131 = arith.constant 0 : index
    %412 = vector.load %arg8[%c0_130, %c0_131] : memref<256x2xbf16, #tpu.memory_space<vmem>>, vector<256x2xbf16>
    %cst_132 = arith.constant dense<0.000000e+00> : vector<16x2xf32>
    %413 = tpu.matmul %411, %412, %cst_132 {dimension_numbers = #tpu.dot_dimension_numbers<[1], [0], [0], [1], [0, 0, 1, 1], [], []>} : vector<16x256xbf16>, vector<256x2xbf16>, vector<16x2xf32> -> vector<16x2xf32>
    %c3 = arith.constant 3 : index
    %c0_133 = arith.constant 0 : index
    %414 = vector.load %arg9[%c3, %c0_133] : memref<4x256xf32, #tpu.memory_space<vmem>>, vector<1x2xf32>
    %415 = vector.broadcast %414 : vector<1x2xf32> to vector<16x2xf32>
    %416 = arith.addf %413, %415 : vector<16x2xf32>
    %417 = vector.extract_strided_slice %416 {offsets = [0, 0], sizes = [1, 2], strides = [1, 1]} : vector<16x2xf32> to vector<1x2xf32>
    %c0_134 = arith.constant 0 : index
    %c0_135 = arith.constant 0 : index
    %418 = vector.load %arg10[%c0_134, %c0_135] : memref<2x2xf32, #tpu.memory_space<vmem>>, vector<1x2xf32>
    tpu.vector_store %arg10[%c0_134, %c0_135], %417 {strides = array<i32>} : memref<2x2xf32, #tpu.memory_space<vmem>>, vector<1x2xf32>,
    %419 = vector.extract_strided_slice %416 {offsets = [8, 0], sizes = [1, 2], strides = [1, 1]} : vector<16x2xf32> to vector<1x2xf32>
    %c1_136 = arith.constant 1 : index
    %c0_137 = arith.constant 0 : index
    %420 = vector.load %arg10[%c1_136, %c0_137] : memref<2x2xf32, #tpu.memory_space<vmem>>, vector<1x2xf32>
    tpu.vector_store %arg10[%c1_136, %c0_137], %419 {strides = array<i32>} : memref<2x2xf32, #tpu.memory_space<vmem>>, vector<1x2xf32>,
    return
  }
}

</mosaic_0001>

<llo_original>
// kernel: bert_imdb_forward.1
$region0: #{bert_imdb_forward.1}
  #allocation0 [shape = 'u32[]', space=smem, size = 0x4, offset = 0x4, fixed_abs, tag = 'smem constant byte address 0x4 - core index']
  #allocation1 [shape = 'u32[144,128]{1,0:T(1,128)}', space=vmem, size = 0x12000, scoped, tag = 'internal scratch']
  %s0 = inlined_call_operand.vmem [shape: s32[16,1], index: 0, kind: input, shape index: {}]
  %s1 = inlined_call_operand.vmem [shape: f32[82,32], index: 1, kind: input, shape index: {}]
  %s2 = inlined_call_operand.vmem [shape: bf16[2,32,128], index: 2, kind: input, shape index: {}]
  %s3 = inlined_call_operand.vmem [shape: bf16[2,32,64], index: 3, kind: input, shape index: {}]
  %s4 = inlined_call_operand.vmem [shape: bf16[2,64,32], index: 4, kind: input, shape index: {}]
  %s5 = inlined_call_operand.vmem [shape: f32[2,8,128], index: 5, kind: input, shape index: {}]
  %s6 = inlined_call_operand.vmem [shape: bf16[32,256], index: 6, kind: input, shape index: {}]
  %s7 = inlined_call_operand.hbm [shape: bf16[2,256,256], index: 7, kind: input, shape index: {}]
  %s8 = inlined_call_operand.vmem [shape: bf16[256,2], index: 8, kind: input, shape index: {}]
  %s9 = inlined_call_operand.vmem [shape: f32[4,256], index: 9, kind: input, shape index: {}]
  %s10 = inlined_call_operand.hbm [shape: f32[2,2], index: 10, kind: output, shape index: {}]
  %s11 = sld [smem:[#allocation0]]
  $region54: #{bert_imdb_forward.1} parent=0
    _
  %s13 = ssub.s32 1, %s11
  %s14 = scalar_select 0, %s13, %s11
  $region1: #{bert_imdb_forward.1} parent=0
    #allocation2 [shape = 'u8[262144]{0}', space=vmem, size = 0x40000, scoped, tag = 'input window, operand 7, single buffered']
    #allocation3 [shape = 's32[1]{0}', space=sflag, size = 0x4, scoped, tag = 'scoped memory for bert_imdb_forward.1']
    #allocation4 [shape = 's32[1]{0}', space=sflag, size = 0x4, scoped, tag = 'scoped memory for bert_imdb_forward.1']
    #allocation5 [shape = 'u8[1024]{0}', space=vmem, size = 0x400, scoped, tag = 'output window, operand 0, single buffered']
    %15 = vsyncpa [#allocation3], 0
    %16 = vsyncpa [#allocation4], 0
    // Predicated region
    $region2: #{bert_imdb_forward.1} parent=1 // pred_check
      _
    $region3: #{bert_imdb_forward.1} parent=1 // pred_check_branch
      %18 = sbr.rel (0) target = $region5
    $region4: #{bert_imdb_forward.1} parent=1 // pred_region
      _
    $region5: #{bert_imdb_forward.1} parent=1 // pred_fallthru
      _
    // Predicated region
    $region6: #{bert_imdb_forward.1} parent=1 // pred_check
      _
    $region7: #{bert_imdb_forward.1} parent=1 // pred_check_branch
      %20 = sbr.rel (0) target = $region9
    $region8: #{bert_imdb_forward.1} parent=1 // pred_region
      _
    $region9: #{bert_imdb_forward.1} parent=1 // pred_fallthru
      _
    // Predicated region
    $region10: #{bert_imdb_forward.1} parent=1 // pred_check
      _
    $region11: #{bert_imdb_forward.1} parent=1 // pred_check_branch
      %22 = sbr.rel (0) target = $region13
    $region12: #{bert_imdb_forward.1} parent=1 // pred_region
      _
    $region13: #{bert_imdb_forward.1} parent=1 // pred_fallthru
      _
    // Predicated region
    $region14: #{bert_imdb_forward.1} parent=1 // pred_check
      _
    $region15: #{bert_imdb_forward.1} parent=1 // pred_check_branch
      %24 = sbr.rel (0) target = $region17
    $region16: #{bert_imdb_forward.1} parent=1 // pred_region
      _
    $region17: #{bert_imdb_forward.1} parent=1 // pred_fallthru
      _
    // Predicated region
    $region18: #{bert_imdb_forward.1} parent=1 // pred_check
      _
    $region19: #{bert_imdb_forward.1} parent=1 // pred_check_branch
      %26 = sbr.rel (0) target = $region21
    $region20: #{bert_imdb_forward.1} parent=1 // pred_region
      _
    $region21: #{bert_imdb_forward.1} parent=1 // pred_fallthru
      _
    // Predicated region
    $region22: #{bert_imdb_forward.1} parent=1 // pred_check
      _
    $region23: #{bert_imdb_forward.1} parent=1 // pred_check_branch
      %28 = sbr.rel (0) target = $region25
    $region24: #{bert_imdb_forward.1} parent=1 // pred_region
      _
    $region25: #{bert_imdb_forward.1} parent=1 // pred_fallthru
      _
    // Predicated region
    $region26: #{bert_imdb_forward.1} parent=1 // pred_check
      _
    $region27: #{bert_imdb_forward.1} parent=1 // pred_check_branch
      %30 = sbr.rel (0) target = $region29
    $region28: #{bert_imdb_forward.1} parent=1 // pred_region
      _
    $region29: #{bert_imdb_forward.1} parent=1 // pred_fallthru
      _
    // Predicated region
    $region30: #{bert_imdb_forward.1} parent=1 // pred_check
      _
    $region31: #{bert_imdb_forward.1} parent=1 // pred_check_branch
      %32 = sbr.rel (0) target = $region33
    $region32: #{bert_imdb_forward.1} parent=1 // pred_region
      %s34 = ssub.s32 8192, 8192
      %35 = vsyncadd [#allocation3], %s34
      %s36 = sshll.u32 [#allocation2], 4
      %s37 = int_to_ptr.vmem [resolvable:$true] %s36
      %42 = dma.hbm_to_vmem [thread:$0]  %s7, 8192, %s37, [#allocation3], 128, 128, 8
    $region33: #{bert_imdb_forward.1} parent=1 // pred_fallthru
      _
    // Predicated region
    $region34: #{bert_imdb_forward.1} parent=1 // pred_check
      _
    $region35: #{bert_imdb_forward.1} parent=1 // pred_check_branch
      %44 = sbr.rel (0) target = $region37
    $region36: #{bert_imdb_forward.1} parent=1 // pred_region
      _
    $region37: #{bert_imdb_forward.1} parent=1 // pred_fallthru
      _
    // Predicated region
    $region38: #{bert_imdb_forward.1} parent=1 // pred_check
      _
    $region39: #{bert_imdb_forward.1} parent=1 // pred_check_branch
      %46 = sbr.rel (0) target = $region41
    $region40: #{bert_imdb_forward.1} parent=1 // pred_region
      _
    $region41: #{bert_imdb_forward.1} parent=1 // pred_fallthru
      _
    // Predicated region
    $region42: #{bert_imdb_forward.1} parent=1 // pred_check
      _
    $region43: #{bert_imdb_forward.1} parent=1 // pred_check_branch
      %48 = sbr.rel (0) target = $region45
    $region44: #{bert_imdb_forward.1} parent=1 // pred_region
      %49 = dma.done [#allocation3], 8192
    $region45: #{bert_imdb_forward.1} parent=1 // pred_fallthru
      _
    %v51 = vld [vmem:[%s0] sm:$0xff]
    %v52 = vld [vmem:[%s0 + $0x8] sm:$0xff]
    %v53 = vlaneseq
    %v54 = vand.u32 %v53, 127
    %55 = vset.pattern.permute.xlu0 0
    %56 = vperm.xlu0 %55, %v51
    %v57 = vpop.permute.xlu0 %56
    %58 = vset.pattern.permute.xlu0 0
    %59 = vperm.xlu0 %58, %v52
    %v60 = vpop.permute.xlu0 %59
    %vm61 = vcmp.eq.s32.totalorder %v54, %v57
    %vm62 = vcmp.eq.s32.totalorder %v54, %v60
    %v63 = vsel %vm61, 1, 0
    %v64 = vsel %vm62, 1, 0
    %v65 = vcvt.s32.f32 %v63
    %v66 = vcvt.s32.f32 %v64
    %v67 = vld [vmem:[%s1] sm:$0xff]
    %v68 = vld [vmem:[%s1 + $0x8] sm:$0xff]
    %v69 = vld [vmem:[%s1 + $0x10] sm:$0xff]
    %v70 = vld [vmem:[%s1 + $0x18] sm:$0xff]
    %v71 = vld [vmem:[%s1 + $0x20] sm:$0xff]
    %v72 = vld [vmem:[%s1 + $0x28] sm:$0xff]
    %v73 = vld [vmem:[%s1 + $0x30] sm:$0xff]
    %v74 = vld [vmem:[%s1 + $0x38] sm:$0xff]
    %v75 = vld [vmem:[%s1 + $0x40] sm:$0xff]
    %v76 = vld [vmem:[%s1 + $0x50] sm:$0x1]
    %v77 = vld [vmem:[%s1 + $0x51] sm:$0x1]
    %vm78 = vcmask 523264
    %v80 = vsel %vm78, %v65, 0
    %v83 = vsel %vm78, %v66, 0
    %85 = vmatprep.subr.mxu0 0.0
    %86 = vmatpush1.msra.mxu0 %v67
    %87 = vmatprep.subr.mxu0 0.0
    %88 = vmatpush1.msra.mxu0 %v68
    %89 = vmatprep.subr.mxu0 0.0
    %90 = vmatpush1.msra.mxu0 %v69
    %91 = vmatprep.subr.mxu0 0.0
    %92 = vmatpush1.msra.mxu0 %v70
    %93 = vmatprep.subr.mxu0 0.0
    %94 = vmatpush1.msra.mxu0 %v71
    %95 = vmatprep.subr.mxu0 0.0
    %96 = vmatpush1.msra.mxu0 %v72
    %97 = vmatprep.subr.mxu0 0.0
    %98 = vmatpush1.msra.mxu0 %v73
    %99 = vmatprep.subr.mxu0 0.0
    %100 = vmatpush1.msra.mxu0 %v74
    %101 = vmatprep.subr.mxu0 0.0
    %102 = vmatpush1.msra.mxu0 0.0
    %103 = vmatprep.subr.mxu0 0.0
    %104 = vmatpush1.msra.mxu0 0.0
    %105 = vmatprep.subr.mxu0 0.0
    %106 = vmatpush1.msra.mxu0 0.0
    %107 = vmatprep.subr.mxu0 0.0
    %108 = vmatpush1.msra.mxu0 0.0
    %109 = vmatprep.subr.mxu0 0.0
    %110 = vmatpush1.msra.mxu0 0.0
    %111 = vmatprep.subr.mxu0 0.0
    %112 = vmatpush1.msra.mxu0 0.0
    %113 = vmatprep.subr.mxu0 0.0
    %114 = vmatpush1.msra.mxu0 0.0
    %115 = vmatprep.subr.mxu0 0.0
    %116 = vmatpush1.msra.mxu0 0.0
    %117 = vmatprep.subr.mxu0 0.0
    %118 = vmatpush1.msra.mxu0 0.0
    %119 = vmatprep.subr.mxu0 0.0
    %120 = vmatpush1.msra.mxu0 0.0
    %121 = vmatprep.subr.mxu0 0.0
    %122 = vmatpush1.msra.mxu0 0.0
    %123 = vmatprep.subr.mxu0 0.0
    %124 = vmatpush1.msra.mxu0 0.0
    %125 = vmatprep.subr.mxu0 0.0
    %126 = vmatpush1.msra.mxu0 0.0
    %127 = vmatprep.subr.mxu0 0.0
    %128 = vmatpush1.msra.mxu0 0.0
    %129 = vmatprep.subr.mxu0 0.0
    %130 = vmatpush1.msra.mxu0 0.0
    %131 = vmatprep.subr.mxu0 0.0
    %132 = vmatpush1.msra.mxu0 0.0
    %133 = vmatprep.subr.mxu0 0.0
    %134 = vmatpush1.msra.mxu0 0.0
    %135 = vmatprep.subr.mxu0 0.0
    %136 = vmatpush1.msra.mxu0 0.0
    %137 = vmatprep.subr.mxu0 0.0
    %138 = vmatpush1.msra.mxu0 0.0
    %139 = vmatprep.subr.mxu0 0.0
    %140 = vmatpush1.msra.mxu0 0.0
    %141 = vmatprep.subr.mxu0 0.0
    %142 = vmatpush1.msra.mxu0 0.0
    %143 = vmatprep.subr.mxu0 0.0
    %144 = vmatpush1.msra.mxu0 0.0
    %145 = vmatprep.subr.mxu0 0.0
    %146 = vmatpush1.msra.mxu0 0.0
    %147 = vmatprep.subr.mxu0 0.0
    %148 = vmatpush1.msra.mxu0 0.0
    %149 = vmatprep.mubr.f32.mxu0 0.0
    %150 = vmatmul.mubr.f32.gmra.mrb[0].mxu0 %v80
    %v151 = vpop.f32.mrb[0].mxu0
    %v152 = vadd.f32 %v75, %v151
    %v153 = vpop.f32.mrb[0].mxu0
    %154 = vmatprep.mubr.f32.mxu0 0.0
    %155 = vmatmul.mubr.f32.gmra.mrb[0].mxu0 %v83
    %v156 = vpop.f32.mrb[0].mxu0
    %v157 = vadd.f32 %v75, %v156
    %v158 = vpop.f32.mrb[0].mxu0
    %159 = vdwg.mxu0
    %vm160 = vcmask 261120
    %v161 = vsel %vm160, %v152, 0.0
    %162 = vadd.xlane.f32.xlu0 %v161
    %v163 = vpop.xlane.xlu0 %162
    %v164 = vsel %vm160, %v157, 0.0
    %165 = vadd.xlane.f32.xlu0 %v164
    %v166 = vpop.xlane.xlu0 %165
    %v167 = vrcp.pop 32.0
    %v168 = vmul.f32 %v163, %v167
    %v169 = vmul.f32 %v166, %v167
    %v170 = vsub.f32 %v152, %v168
    %v171 = vsub.f32 %v157, %v169
    %v172 = vmul.f32 %v170, %v170
    %v173 = vmul.f32 %v171, %v171
    %v174 = vsel %vm160, %v172, 0.0
    %175 = vadd.xlane.f32.xlu0 %v174
    %v176 = vpop.xlane.xlu0 %175
    %v177 = vsel %vm160, %v173, 0.0
    %178 = vadd.xlane.f32.xlu0 %v177
    %v179 = vpop.xlane.xlu0 %178
    %v180 = vmul.f32 %v176, %v167
    %v181 = vmul.f32 %v179, %v167
    %v182 = vadd.f32 %v180, 1e-12
    %v183 = vadd.f32 %v181, 1e-12
    %v184 = vrsqrt.pop %v182
    %v185 = vrsqrt.pop %v183
    %v186 = vmul.f32 %v170, %v184
    %v187 = vmul.f32 %v171, %v185
    %v188 = vlaneseq
    %v189 = vshrl.u32 %v188, 7
    %v190 = vsub.s32 0, %v189
    %v191 = vrot.slane %v76, %v190
    %v192 = vmul.f32 %v186, %v191
    %v193 = vmul.f32 %v187, %v191
    %v194 = vlaneseq
    %v195 = vshrl.u32 %v194, 7
    %v196 = vsub.s32 0, %v195
    %v197 = vrot.slane %v77, %v196
    %v198 = vadd.f32 %v192, %v197
    %v199 = vadd.f32 %v193, %v197
    %v200 = vld [vmem:[%s2] sm:$0xf]
    %v201 = vld [vmem:[%s2 + $0x4] sm:$0xf]
    %v202 = vld [vmem:[%s2 + $0x8] sm:$0xf]
    %v203 = vld [vmem:[%s2 + $0xc] sm:$0xf]
    %v204 = vld [vmem:[%s5] sm:$0xff]
    %v205 = vpack.c.bf16 %v199, %v198
    %v206 = vlaneseq
    %v207 = vshrl.u32 %v206, 7
    %v208 = vsub.s32 0, %v207
    %v209 = vrot.slane %v204, %v208
    %v214 = vunpack.c.l.b16 %v200
    %v215 = vunpack.c.l.b16 %v201
    %v216 = vunpack.c.l.b16 %v202
    %v217 = vunpack.c.l.b16 %v203
    %v218 = vpack.c.b16 %v215, %v214
    %v219 = vpack.c.b16 %v217, %v216
    %v223 = vsel %vm160, %v205, 0
    %225 = vmatprep.subr.bf16.mxu0 0
    %226 = vmatpush1.bf16.msra.mxu0 %v218
    %227 = vmatprep.subr.bf16.mxu0 0
    %228 = vmatpush1.bf16.msra.mxu0 %v219
    %229 = vmatprep.subr.bf16.mxu0 0
    %230 = vmatpush1.bf16.msra.mxu0 0
    %231 = vmatprep.subr.bf16.mxu0 0
    %232 = vmatpush1.bf16.msra.mxu0 0
    %233 = vmatprep.subr.bf16.mxu0 0
    %234 = vmatpush1.bf16.msra.mxu0 0
    %235 = vmatprep.subr.bf16.mxu0 0
    %236 = vmatpush1.bf16.msra.mxu0 0
    %237 = vmatprep.subr.bf16.mxu0 0
    %238 = vmatpush1.bf16.msra.mxu0 0
    %239 = vmatprep.subr.bf16.mxu0 0
    %240 = vmatpush1.bf16.msra.mxu0 0
    %241 = vmatprep.subr.bf16.mxu0 0
    %242 = vmatpush1.bf16.msra.mxu0 0
    %243 = vmatprep.subr.bf16.mxu0 0
    %244 = vmatpush1.bf16.msra.mxu0 0
    %245 = vmatprep.subr.bf16.mxu0 0
    %246 = vmatpush1.bf16.msra.mxu0 0
    %247 = vmatprep.subr.bf16.mxu0 0
    %248 = vmatpush1.bf16.msra.mxu0 0
    %249 = vmatprep.subr.bf16.mxu0 0
    %250 = vmatpush1.bf16.msra.mxu0 0
    %251 = vmatprep.subr.bf16.mxu0 0
    %252 = vmatpush1.bf16.msra.mxu0 0
    %253 = vmatprep.subr.bf16.mxu0 0
    %254 = vmatpush1.bf16.msra.mxu0 0
    %255 = vmatprep.subr.bf16.mxu0 0
    %256 = vmatpush1.bf16.msra.mxu0 0
    %257 = vmatprep.mubr.bf16.mxu0 0
    %258 = vmatmul.mubr.bf16.gmra.mrb[0].mxu0 %v223
    %v259 = vpop.f32.mrb[0].mxu0
    %v260 = vadd.f32 %v209, %v259
    %v261 = vpop.f32.mrb[0].mxu0
    %v262 = vpop.f32.mrb[0].mxu0
    %v263 = vadd.f32 %v209, %v262
    %v264 = vpop.f32.mrb[0].mxu0
    %265 = vdwg.mxu0
    %v266 = vpack.c.bf16 %v260, %v260
    %268 = vrot.lane.b32.xlu0 %v266, 96
    %v269 = vpop.permute.xlu0 %268
    %vm270 = vcmask 130048
    %v272 = vsel %vm270, %v266, 0
    %v275 = vsel %vm270, %v269, 0
    %277 = vmatprep.subr.bf16.mxu0 0
    %278 = vmatpush1.bf16.xpose.msra.mxu0 %v275
    %279 = vmatprep.subr.bf16.mxu0 0
    %280 = vmatpush1.bf16.xpose.msra.mxu0 0
    %281 = vmatprep.subr.bf16.mxu0 0
    %282 = vmatpush1.bf16.xpose.msra.mxu0 0
    %283 = vmatprep.subr.bf16.mxu0 0
    %284 = vmatpush1.bf16.xpose.msra.mxu0 0
    %285 = vmatprep.subr.bf16.mxu0 0
    %286 = vmatpush1.bf16.xpose.msra.mxu0 0
    %287 = vmatprep.subr.bf16.mxu0 0
    %288 = vmatpush1.bf16.xpose.msra.mxu0 0
    %289 = vmatprep.subr.bf16.mxu0 0
    %290 = vmatpush1.bf16.xpose.msra.mxu0 0
    %291 = vmatprep.subr.bf16.mxu0 0
    %292 = vmatpush1.bf16.xpose.msra.mxu0 0
    %293 = vmatprep.subr.bf16.mxu0 0
    %294 = vmatpush1.bf16.xpose.msra.mxu0 0
    %295 = vmatprep.subr.bf16.mxu0 0
    %296 = vmatpush1.bf16.xpose.msra.mxu0 0
    %297 = vmatprep.subr.bf16.mxu0 0
    %298 = vmatpush1.bf16.xpose.msra.mxu0 0
    %299 = vmatprep.subr.bf16.mxu0 0
    %300 = vmatpush1.bf16.xpose.msra.mxu0 0
    %301 = vmatprep.subr.bf16.mxu0 0
    %302 = vmatpush1.bf16.xpose.msra.mxu0 0
    %303 = vmatprep.subr.bf16.mxu0 0
    %304 = vmatpush1.bf16.xpose.msra.mxu0 0
    %305 = vmatprep.subr.bf16.mxu0 0
    %306 = vmatpush1.bf16.xpose.msra.mxu0 0
    %307 = vmatprep.subr.bf16.mxu0 0
    %308 = vmatpush1.bf16.xpose.msra.mxu0 0
    %309 = vmatprep.mubr.bf16.mxu0 0
    %310 = vmatmul.mubr.bf16.gmra.mrb[0].mxu0 %v272
    %v311 = vpop.f32.mrb[0].mxu0
    %v312 = vadd.f32 0.0, %v311
    %v313 = vpop.f32.mrb[0].mxu0
    %v314 = vpop.f32.mrb[0].mxu0
    %v315 = vpop.f32.mrb[0].mxu0
    %316 = vdwg.mxu0
    %317 = vrot.lane.b32.xlu0 %v266, 112
    %v318 = vpop.permute.xlu0 %317
    %319 = vrot.lane.b32.xlu0 %v266, 80
    %v320 = vpop.permute.xlu0 %319
    %v322 = vsel %vm270, %v318, 0
    %v325 = vsel %vm270, %v320, 0
    %327 = vmatprep.subr.bf16.mxu0 0
    %328 = vmatpush1.bf16.xpose.msra.mxu0 %v325
    %329 = vmatprep.subr.bf16.mxu0 0
    %330 = vmatpush1.bf16.xpose.msra.mxu0 0
    %331 = vmatprep.subr.bf16.mxu0 0
    %332 = vmatpush1.bf16.xpose.msra.mxu0 0
    %333 = vmatprep.subr.bf16.mxu0 0
    %334 = vmatpush1.bf16.xpose.msra.mxu0 0
    %335 = vmatprep.subr.bf16.mxu0 0
    %336 = vmatpush1.bf16.xpose.msra.mxu0 0
    %337 = vmatprep.subr.bf16.mxu0 0
    %338 = vmatpush1.bf16.xpose.msra.mxu0 0
    %339 = vmatprep.subr.bf16.mxu0 0
    %340 = vmatpush1.bf16.xpose.msra.mxu0 0
    %341 = vmatprep.subr.bf16.mxu0 0
    %342 = vmatpush1.bf16.xpose.msra.mxu0 0
    %343 = vmatprep.subr.bf16.mxu0 0
    %344 = vmatpush1.bf16.xpose.msra.mxu0 0
    %345 = vmatprep.subr.bf16.mxu0 0
    %346 = vmatpush1.bf16.xpose.msra.mxu0 0
    %347 = vmatprep.subr.bf16.mxu0 0
    %348 = vmatpush1.bf16.xpose.msra.mxu0 0
    %349 = vmatprep.subr.bf16.mxu0 0
    %350 = vmatpush1.bf16.xpose.msra.mxu0 0
    %351 = vmatprep.subr.bf16.mxu0 0
    %352 = vmatpush1.bf16.xpose.msra.mxu0 0
    %353 = vmatprep.subr.bf16.mxu0 0
    %354 = vmatpush1.bf16.xpose.msra.mxu0 0
    %355 = vmatprep.subr.bf16.mxu0 0
    %356 = vmatpush1.bf16.xpose.msra.mxu0 0
    %357 = vmatprep.subr.bf16.mxu0 0
    %358 = vmatpush1.bf16.xpose.msra.mxu0 0
    %359 = vmatprep.mubr.bf16.mxu0 0
    %360 = vmatmul.mubr.bf16.gmra.mrb[0].mxu0 %v322
    %v361 = vpop.f32.mrb[0].mxu0
    %v362 = vadd.f32 0.0, %v361
    %v363 = vpop.f32.mrb[0].mxu0
    %v364 = vpop.f32.mrb[0].mxu0
    %v365 = vpop.f32.mrb[0].mxu0
    %366 = vdwg.mxu0
    %v367 = vpack.c.bf16 %v263, %v263
    %369 = vrot.lane.b32.xlu0 %v367, 96
    %v370 = vpop.permute.xlu0 %369
    %v372 = vsel %vm270, %v367, 0
    %v375 = vsel %vm270, %v370, 0
    %377 = vmatprep.subr.bf16.mxu0 0
    %378 = vmatpush1.bf16.xpose.msra.mxu0 %v375
    %379 = vmatprep.subr.bf16.mxu0 0
    %380 = vmatpush1.bf16.xpose.msra.mxu0 0
    %381 = vmatprep.subr.bf16.mxu0 0
    %382 = vmatpush1.bf16.xpose.msra.mxu0 0
    %383 = vmatprep.subr.bf16.mxu0 0
    %384 = vmatpush1.bf16.xpose.msra.mxu0 0
    %385 = vmatprep.subr.bf16.mxu0 0
    %386 = vmatpush1.bf16.xpose.msra.mxu0 0
    %387 = vmatprep.subr.bf16.mxu0 0
    %388 = vmatpush1.bf16.xpose.msra.mxu0 0
    %389 = vmatprep.subr.bf16.mxu0 0
    %390 = vmatpush1.bf16.xpose.msra.mxu0 0
    %391 = vmatprep.subr.bf16.mxu0 0
    %392 = vmatpush1.bf16.xpose.msra.mxu0 0
    %393 = vmatprep.subr.bf16.mxu0 0
    %394 = vmatpush1.bf16.xpose.msra.mxu0 0
    %395 = vmatprep.subr.bf16.mxu0 0
    %396 = vmatpush1.bf16.xpose.msra.mxu0 0
    %397 = vmatprep.subr.bf16.mxu0 0
    %398 = vmatpush1.bf16.xpose.msra.mxu0 0
    %399 = vmatprep.subr.bf16.mxu0 0
    %400 = vmatpush1.bf16.xpose.msra.mxu0 0
    %401 = vmatprep.subr.bf16.mxu0 0
    %402 = vmatpush1.bf16.xpose.msra.mxu0 0
    %403 = vmatprep.subr.bf16.mxu0 0
    %404 = vmatpush1.bf16.xpose.msra.mxu0 0
    %405 = vmatprep.subr.bf16.mxu0 0
    %406 = vmatpush1.bf16.xpose.msra.mxu0 0
    %407 = vmatprep.subr.bf16.mxu0 0
    %408 = vmatpush1.bf16.xpose.msra.mxu0 0
    %409 = vmatprep.mubr.bf16.mxu0 0
    %410 = vmatmul.mubr.bf16.gmra.mrb[0].mxu0 %v372
    %v411 = vpop.f32.mrb[0].mxu0
    %v412 = vadd.f32 0.0, %v411
    %v413 = vpop.f32.mrb[0].mxu0
    %v414 = vpop.f32.mrb[0].mxu0
    %v415 = vpop.f32.mrb[0].mxu0
    %416 = vdwg.mxu0
    %417 = vrot.lane.b32.xlu0 %v367, 112
    %v418 = vpop.permute.xlu0 %417
    %419 = vrot.lane.b32.xlu0 %v367, 80
    %v420 = vpop.permute.xlu0 %419
    %v422 = vsel %vm270, %v418, 0
    %v425 = vsel %vm270, %v420, 0
    %427 = vmatprep.subr.bf16.mxu0 0
    %428 = vmatpush1.bf16.xpose.msra.mxu0 %v425
    %429 = vmatprep.subr.bf16.mxu0 0
    %430 = vmatpush1.bf16.xpose.msra.mxu0 0
    %431 = vmatprep.subr.bf16.mxu0 0
    %432 = vmatpush1.bf16.xpose.msra.mxu0 0
    %433 = vmatprep.subr.bf16.mxu0 0
    %434 = vmatpush1.bf16.xpose.msra.mxu0 0
    %435 = vmatprep.subr.bf16.mxu0 0
    %436 = vmatpush1.bf16.xpose.msra.mxu0 0
    %437 = vmatprep.subr.bf16.mxu0 0
    %438 = vmatpush1.bf16.xpose.msra.mxu0 0
    %439 = vmatprep.subr.bf16.mxu0 0
    %440 = vmatpush1.bf16.xpose.msra.mxu0 0
    %441 = vmatprep.subr.bf16.mxu0 0
    %442 = vmatpush1.bf16.xpose.msra.mxu0 0
    %443 = vmatprep.subr.bf16.mxu0 0
    %444 = vmatpush1.bf16.xpose.msra.mxu0 0
    %445 = vmatprep.subr.bf16.mxu0 0
    %446 = vmatpush1.bf16.xpose.msra.mxu0 0
    %447 = vmatprep.subr.bf16.mxu0 0
    %448 = vmatpush1.bf16.xpose.msra.mxu0 0
    %449 = vmatprep.subr.bf16.mxu0 0
    %450 = vmatpush1.bf16.xpose.msra.mxu0 0
    %451 = vmatprep.subr.bf16.mxu0 0
    %452 = vmatpush1.bf16.xpose.msra.mxu0 0
    %453 = vmatprep.subr.bf16.mxu0 0
    %454 = vmatpush1.bf16.xpose.msra.mxu0 0
    %455 = vmatprep.subr.bf16.mxu0 0
    %456 = vmatpush1.bf16.xpose.msra.mxu0 0
    %457 = vmatprep.subr.bf16.mxu0 0
    %458 = vmatpush1.bf16.xpose.msra.mxu0 0
    %459 = vmatprep.mubr.bf16.mxu0 0
    %460 = vmatmul.mubr.bf16.gmra.mrb[0].mxu0 %v422
    %v461 = vpop.f32.mrb[0].mxu0
    %v462 = vadd.f32 0.0, %v461
    %v463 = vpop.f32.mrb[0].mxu0
    %v464 = vpop.f32.mrb[0].mxu0
    %v465 = vpop.f32.mrb[0].mxu0
    %466 = vdwg.mxu0
    %vm467 = vcmask 64512
    %v468 = vsel %vm467, %v312, -inf
    %469 = vmax.xlane.f32.xlu0 %v468
    %v470 = vpop.xlane.xlu0 %469
    %v471 = vsel %vm467, %v362, -inf
    %472 = vmax.xlane.f32.xlu0 %v471
    %v473 = vpop.xlane.xlu0 %472
    %v474 = vsel %vm467, %v412, -inf
    %475 = vmax.xlane.f32.xlu0 %v474
    %v476 = vpop.xlane.xlu0 %475
    %v477 = vsel %vm467, %v462, -inf
    %478 = vmax.xlane.f32.xlu0 %v477
    %v479 = vpop.xlane.xlu0 %478
    %v480 = vsub.f32 %v312, %v470
    %v481 = vsub.f32 %v362, %v473
    %v482 = vsub.f32 %v412, %v476
    %v483 = vsub.f32 %v462, %v479
    %v484 = vmul.f32 %v480, 1.442695
    %v485 = vpow.pop %v484
    %v486 = vmul.f32 %v481, 1.442695
    %v487 = vpow.pop %v486
    %v488 = vmul.f32 %v482, 1.442695
    %v489 = vpow.pop %v488
    %v490 = vmul.f32 %v483, 1.442695
    %v491 = vpow.pop %v490
    %v492 = vsel %vm467, %v485, 0.0
    %493 = vadd.xlane.f32.xlu0 %v492
    %v494 = vpop.xlane.xlu0 %493
    %v495 = vsel %vm467, %v487, 0.0
    %496 = vadd.xlane.f32.xlu0 %v495
    %v497 = vpop.xlane.xlu0 %496
    %v498 = vsel %vm467, %v489, 0.0
    %499 = vadd.xlane.f32.xlu0 %v498
    %v500 = vpop.xlane.xlu0 %499
    %v501 = vsel %vm467, %v491, 0.0
    %502 = vadd.xlane.f32.xlu0 %v501
    %v503 = vpop.xlane.xlu0 %502
    %v504 = vrcp.pop %v494
    %v505 = vrcp.pop %v497
    %v506 = vrcp.pop %v500
    %v507 = vrcp.pop %v503
    %v508 = vmul.f32 %v485, %v504
    %v509 = vmul.f32 %v487, %v505
    %v510 = vmul.f32 %v489, %v506
    %v511 = vmul.f32 %v491, %v507
    %v512 = vpack.c.bf16 %v508, %v508
    %513 = vrot.lane.b32.xlu0 %v266, 64
    %v514 = vpop.permute.xlu0 %513
    %v516 = vsel %vm467, %v512, 0
    %vm518 = vcmask 1043456
    %v520 = vsel %vm518, %v514, 0
    %522 = vmatprep.subr.bf16.mxu0 0
    %523 = vmatpush1.bf16.msra.mxu0 %v520
    %524 = vmatprep.subr.bf16.mxu0 0
    %525 = vmatpush1.bf16.msra.mxu0 0
    %526 = vmatprep.subr.bf16.mxu0 0
    %527 = vmatpush1.bf16.msra.mxu0 0
    %528 = vmatprep.subr.bf16.mxu0 0
    %529 = vmatpush1.bf16.msra.mxu0 0
    %530 = vmatprep.subr.bf16.mxu0 0
    %531 = vmatpush1.bf16.msra.mxu0 0
    %532 = vmatprep.subr.bf16.mxu0 0
    %533 = vmatpush1.bf16.msra.mxu0 0
    %534 = vmatprep.subr.bf16.mxu0 0
    %535 = vmatpush1.bf16.msra.mxu0 0
    %536 = vmatprep.subr.bf16.mxu0 0
    %537 = vmatpush1.bf16.msra.mxu0 0
    %538 = vmatprep.subr.bf16.mxu0 0
    %539 = vmatpush1.bf16.msra.mxu0 0
    %540 = vmatprep.subr.bf16.mxu0 0
    %541 = vmatpush1.bf16.msra.mxu0 0
    %542 = vmatprep.subr.bf16.mxu0 0
    %543 = vmatpush1.bf16.msra.mxu0 0
    %544 = vmatprep.subr.bf16.mxu0 0
    %545 = vmatpush1.bf16.msra.mxu0 0
    %546 = vmatprep.subr.bf16.mxu0 0
    %547 = vmatpush1.bf16.msra.mxu0 0
    %548 = vmatprep.subr.bf16.mxu0 0
    %549 = vmatpush1.bf16.msra.mxu0 0
    %550 = vmatprep.subr.bf16.mxu0 0
    %551 = vmatpush1.bf16.msra.mxu0 0
    %552 = vmatprep.subr.bf16.mxu0 0
    %553 = vmatpush1.bf16.msra.mxu0 0
    %554 = vmatprep.mubr.bf16.mxu0 0
    %555 = vmatmul.mubr.bf16.gmra.mrb[0].mxu0 %v516
    %v556 = vpop.f32.mrb[0].mxu0
    %v557 = vadd.f32 0.0, %v556
    %v558 = vpop.f32.mrb[0].mxu0
    %v559 = vpop.f32.mrb[0].mxu0
    %v560 = vpop.f32.mrb[0].mxu0
    %561 = vdwg.mxu0
    %v562 = vpack.c.bf16 %v509, %v509
    %563 = vrot.lane.b32.xlu0 %v266, 48
    %v564 = vpop.permute.xlu0 %563
    %v566 = vsel %vm467, %v562, 0
    %v569 = vsel %vm518, %v564, 0
    %571 = vmatprep.subr.bf16.mxu0 0
    %572 = vmatpush1.bf16.msra.mxu0 %v569
    %573 = vmatprep.subr.bf16.mxu0 0
    %574 = vmatpush1.bf16.msra.mxu0 0
    %575 = vmatprep.subr.bf16.mxu0 0
    %576 = vmatpush1.bf16.msra.mxu0 0
    %577 = vmatprep.subr.bf16.mxu0 0
    %578 = vmatpush1.bf16.msra.mxu0 0
    %579 = vmatprep.subr.bf16.mxu0 0
    %580 = vmatpush1.bf16.msra.mxu0 0
    %581 = vmatprep.subr.bf16.mxu0 0
    %582 = vmatpush1.bf16.msra.mxu0 0
    %583 = vmatprep.subr.bf16.mxu0 0
    %584 = vmatpush1.bf16.msra.mxu0 0
    %585 = vmatprep.subr.bf16.mxu0 0
    %586 = vmatpush1.bf16.msra.mxu0 0
    %587 = vmatprep.subr.bf16.mxu0 0
    %588 = vmatpush1.bf16.msra.mxu0 0
    %589 = vmatprep.subr.bf16.mxu0 0
    %590 = vmatpush1.bf16.msra.mxu0 0
    %591 = vmatprep.subr.bf16.mxu0 0
    %592 = vmatpush1.bf16.msra.mxu0 0
    %593 = vmatprep.subr.bf16.mxu0 0
    %594 = vmatpush1.bf16.msra.mxu0 0
    %595 = vmatprep.subr.bf16.mxu0 0
    %596 = vmatpush1.bf16.msra.mxu0 0
    %597 = vmatprep.subr.bf16.mxu0 0
    %598 = vmatpush1.bf16.msra.mxu0 0
    %599 = vmatprep.subr.bf16.mxu0 0
    %600 = vmatpush1.bf16.msra.mxu0 0
    %601 = vmatprep.subr.bf16.mxu0 0
    %602 = vmatpush1.bf16.msra.mxu0 0
    %603 = vmatprep.mubr.bf16.mxu0 0
    %604 = vmatmul.mubr.bf16.gmra.mrb[0].mxu0 %v566
    %v605 = vpop.f32.mrb[0].mxu0
    %v606 = vadd.f32 0.0, %v605
    %v607 = vpop.f32.mrb[0].mxu0
    %v608 = vpop.f32.mrb[0].mxu0
    %v609 = vpop.f32.mrb[0].mxu0
    %610 = vdwg.mxu0
    %612 = vrot.lane.b32.xlu0 %v606, 16
    %v613 = vpop.permute.xlu0 %612
    %v615 = vsel %vm270, %v557, %v613
    %v616 = vpack.c.bf16 %v510, %v510
    %617 = vrot.lane.b32.xlu0 %v367, 64
    %v618 = vpop.permute.xlu0 %617
    %v620 = vsel %vm467, %v616, 0
    %v623 = vsel %vm518, %v618, 0
    %625 = vmatprep.subr.bf16.mxu0 0
    %626 = vmatpush1.bf16.msra.mxu0 %v623
    %627 = vmatprep.subr.bf16.mxu0 0
    %628 = vmatpush1.bf16.msra.mxu0 0
    %629 = vmatprep.subr.bf16.mxu0 0
    %630 = vmatpush1.bf16.msra.mxu0 0
    %631 = vmatprep.subr.bf16.mxu0 0
    %632 = vmatpush1.bf16.msra.mxu0 0
    %633 = vmatprep.subr.bf16.mxu0 0
    %634 = vmatpush1.bf16.msra.mxu0 0
    %635 = vmatprep.subr.bf16.mxu0 0
    %636 = vmatpush1.bf16.msra.mxu0 0
    %637 = vmatprep.subr.bf16.mxu0 0
    %638 = vmatpush1.bf16.msra.mxu0 0
    %639 = vmatprep.subr.bf16.mxu0 0
    %640 = vmatpush1.bf16.msra.mxu0 0
    %641 = vmatprep.subr.bf16.mxu0 0
    %642 = vmatpush1.bf16.msra.mxu0 0
    %643 = vmatprep.subr.bf16.mxu0 0
    %644 = vmatpush1.bf16.msra.mxu0 0
    %645 = vmatprep.subr.bf16.mxu0 0
    %646 = vmatpush1.bf16.msra.mxu0 0
    %647 = vmatprep.subr.bf16.mxu0 0
    %648 = vmatpush1.bf16.msra.mxu0 0
    %649 = vmatprep.subr.bf16.mxu0 0
    %650 = vmatpush1.bf16.msra.mxu0 0
    %651 = vmatprep.subr.bf16.mxu0 0
    %652 = vmatpush1.bf16.msra.mxu0 0
    %653 = vmatprep.subr.bf16.mxu0 0
    %654 = vmatpush1.bf16.msra.mxu0 0
    %655 = vmatprep.subr.bf16.mxu0 0
    %656 = vmatpush1.bf16.msra.mxu0 0
    %657 = vmatprep.mubr.bf16.mxu0 0
    %658 = vmatmul.mubr.bf16.gmra.mrb[0].mxu0 %v620
    %v659 = vpop.f32.mrb[0].mxu0
    %v660 = vadd.f32 0.0, %v659
    %v661 = vpop.f32.mrb[0].mxu0
    %v662 = vpop.f32.mrb[0].mxu0
    %v663 = vpop.f32.mrb[0].mxu0
    %664 = vdwg.mxu0
    %v665 = vpack.c.bf16 %v511, %v511
    %666 = vrot.lane.b32.xlu0 %v367, 48
    %v667 = vpop.permute.xlu0 %666
    %v669 = vsel %vm467, %v665, 0
    %v672 = vsel %vm518, %v667, 0
    %674 = vmatprep.subr.bf16.mxu0 0
    %675 = vmatpush1.bf16.msra.mxu0 %v672
    %676 = vmatprep.subr.bf16.mxu0 0
    %677 = vmatpush1.bf16.msra.mxu0 0
    %678 = vmatprep.subr.bf16.mxu0 0
    %679 = vmatpush1.bf16.msra.mxu0 0
    %680 = vmatprep.subr.bf16.mxu0 0
    %681 = vmatpush1.bf16.msra.mxu0 0
    %682 = vmatprep.subr.bf16.mxu0 0
    %683 = vmatpush1.bf16.msra.mxu0 0
    %684 = vmatprep.subr.bf16.mxu0 0
    %685 = vmatpush1.bf16.msra.mxu0 0
    %686 = vmatprep.subr.bf16.mxu0 0
    %687 = vmatpush1.bf16.msra.mxu0 0
    %688 = vmatprep.subr.bf16.mxu0 0
    %689 = vmatpush1.bf16.msra.mxu0 0
    %690 = vmatprep.subr.bf16.mxu0 0
    %691 = vmatpush1.bf16.msra.mxu0 0
    %692 = vmatprep.subr.bf16.mxu0 0
    %693 = vmatpush1.bf16.msra.mxu0 0
    %694 = vmatprep.subr.bf16.mxu0 0
    %695 = vmatpush1.bf16.msra.mxu0 0
    %696 = vmatprep.subr.bf16.mxu0 0
    %697 = vmatpush1.bf16.msra.mxu0 0
    %698 = vmatprep.subr.bf16.mxu0 0
    %699 = vmatpush1.bf16.msra.mxu0 0
    %700 = vmatprep.subr.bf16.mxu0 0
    %701 = vmatpush1.bf16.msra.mxu0 0
    %702 = vmatprep.subr.bf16.mxu0 0
    %703 = vmatpush1.bf16.msra.mxu0 0
    %704 = vmatprep.subr.bf16.mxu0 0
    %705 = vmatpush1.bf16.msra.mxu0 0
    %706 = vmatprep.mubr.bf16.mxu0 0
    %707 = vmatmul.mubr.bf16.gmra.mrb[0].mxu0 %v669
    %v708 = vpop.f32.mrb[0].mxu0
    %v709 = vadd.f32 0.0, %v708
    %v710 = vpop.f32.mrb[0].mxu0
    %v711 = vpop.f32.mrb[0].mxu0
    %v712 = vpop.f32.mrb[0].mxu0
    %713 = vdwg.mxu0
    %715 = vrot.lane.b32.xlu0 %v709, 16
    %v716 = vpop.permute.xlu0 %715
    %v718 = vsel %vm270, %v660, %v716
    %v719 = vpack.c.bf16 %v718, %v615
    %v720 = vlaneseq
    %v721 = vshrl.u32 %v720, 7
    %v722 = vsub.s32 1, %v721
    %v723 = vrot.slane %v204, %v722
    %724 = vrot.lane.b32.xlu0 %v218, 32
    %v725 = vpop.permute.xlu0 %724
    %726 = vrot.lane.b32.xlu0 %v219, 32
    %v727 = vpop.permute.xlu0 %726
    %v731 = vsel %vm160, %v719, 0
    %733 = vmatprep.subr.bf16.mxu0 0
    %734 = vmatpush1.bf16.msra.mxu0 %v725
    %735 = vmatprep.subr.bf16.mxu0 0
    %736 = vmatpush1.bf16.msra.mxu0 %v727
    %737 = vmatprep.subr.bf16.mxu0 0
    %738 = vmatpush1.bf16.msra.mxu0 0
    %739 = vmatprep.subr.bf16.mxu0 0
    %740 = vmatpush1.bf16.msra.mxu0 0
    %741 = vmatprep.subr.bf16.mxu0 0
    %742 = vmatpush1.bf16.msra.mxu0 0
    %743 = vmatprep.subr.bf16.mxu0 0
    %744 = vmatpush1.bf16.msra.mxu0 0
    %745 = vmatprep.subr.bf16.mxu0 0
    %746 = vmatpush1.bf16.msra.mxu0 0
    %747 = vmatprep.subr.bf16.mxu0 0
    %748 = vmatpush1.bf16.msra.mxu0 0
    %749 = vmatprep.subr.bf16.mxu0 0
    %750 = vmatpush1.bf16.msra.mxu0 0
    %751 = vmatprep.subr.bf16.mxu0 0
    %752 = vmatpush1.bf16.msra.mxu0 0
    %753 = vmatprep.subr.bf16.mxu0 0
    %754 = vmatpush1.bf16.msra.mxu0 0
    %755 = vmatprep.subr.bf16.mxu0 0
    %756 = vmatpush1.bf16.msra.mxu0 0
    %757 = vmatprep.subr.bf16.mxu0 0
    %758 = vmatpush1.bf16.msra.mxu0 0
    %759 = vmatprep.subr.bf16.mxu0 0
    %760 = vmatpush1.bf16.msra.mxu0 0
    %761 = vmatprep.subr.bf16.mxu0 0
    %762 = vmatpush1.bf16.msra.mxu0 0
    %763 = vmatprep.subr.bf16.mxu0 0
    %764 = vmatpush1.bf16.msra.mxu0 0
    %765 = vmatprep.mubr.bf16.mxu0 0
    %766 = vmatmul.mubr.bf16.gmra.mrb[0].mxu0 %v731
    %v767 = vpop.f32.mrb[0].mxu0
    %v768 = vadd.f32 %v723, %v767
    %v769 = vpop.f32.mrb[0].mxu0
    %v770 = vpop.f32.mrb[0].mxu0
    %v771 = vadd.f32 %v723, %v770
    %v772 = vpop.f32.mrb[0].mxu0
    %773 = vdwg.mxu0
    %v774 = vadd.f32 %v198, %v768
    %v775 = vadd.f32 %v199, %v771
    %v776 = vsel %vm160, %v774, 0.0
    %777 = vadd.xlane.f32.xlu0 %v776
    %v778 = vpop.xlane.xlu0 %777
    %v779 = vsel %vm160, %v775, 0.0
    %780 = vadd.xlane.f32.xlu0 %v779
    %v781 = vpop.xlane.xlu0 %780
    %v782 = vmul.f32 %v778, %v167
    %v783 = vmul.f32 %v781, %v167
    %v784 = vsub.f32 %v774, %v782
    %v785 = vsub.f32 %v775, %v783
    %v786 = vmul.f32 %v784, %v784
    %v787 = vmul.f32 %v785, %v785
    %v788 = vsel %vm160, %v786, 0.0
    %789 = vadd.xlane.f32.xlu0 %v788
    %v790 = vpop.xlane.xlu0 %789
    %v791 = vsel %vm160, %v787, 0.0
    %792 = vadd.xlane.f32.xlu0 %v791
    %v793 = vpop.xlane.xlu0 %792
    %v794 = vmul.f32 %v790, %v167
    %v795 = vmul.f32 %v793, %v167
    %v796 = vadd.f32 %v794, 1e-12
    %v797 = vadd.f32 %v795, 1e-12
    %v798 = vrsqrt.pop %v796
    %v799 = vrsqrt.pop %v797
    %v800 = vmul.f32 %v784, %v798
    %v801 = vmul.f32 %v785, %v799
    %v802 = vlaneseq
    %v803 = vshrl.u32 %v802, 7
    %v804 = vsub.s32 2, %v803
    %v805 = vrot.slane %v204, %v804
    %v806 = vmul.f32 %v800, %v805
    %v807 = vmul.f32 %v801, %v805
    %v808 = vlaneseq
    %v809 = vshrl.u32 %v808, 7
    %v810 = vsub.s32 3, %v809
    %v811 = vrot.slane %v204, %v810
    %v812 = vadd.f32 %v806, %v811
    %v813 = vadd.f32 %v807, %v811
    %v814 = vpack.c.bf16 %v813, %v812
    %v815 = vld [vmem:[%s3] sm:$0xf]
    %v816 = vld [vmem:[%s3 + $0x4] sm:$0xf]
    %v817 = vld [vmem:[%s3 + $0x8] sm:$0xf]
    %v818 = vld [vmem:[%s3 + $0xc] sm:$0xf]
    %v819 = vlaneseq
    %v820 = vshrl.u32 %v819, 7
    %v821 = vsub.s32 4, %v820
    %v822 = vrot.slane %v204, %v821
    %v827 = vunpack.c.l.b16 %v815
    %v828 = vunpack.c.l.b16 %v816
    %v829 = vunpack.c.l.b16 %v817
    %v830 = vunpack.c.l.b16 %v818
    %v831 = vpack.c.b16 %v828, %v827
    %v832 = vpack.c.b16 %v830, %v829
    %v836 = vsel %vm160, %v814, 0
    %838 = vmatprep.subr.bf16.mxu0 0
    %839 = vmatpush1.bf16.msra.mxu0 %v831
    %840 = vmatprep.subr.bf16.mxu0 0
    %841 = vmatpush1.bf16.msra.mxu0 %v832
    %842 = vmatprep.subr.bf16.mxu0 0
    %843 = vmatpush1.bf16.msra.mxu0 0
    %844 = vmatprep.subr.bf16.mxu0 0
    %845 = vmatpush1.bf16.msra.mxu0 0
    %846 = vmatprep.subr.bf16.mxu0 0
    %847 = vmatpush1.bf16.msra.mxu0 0
    %848 = vmatprep.subr.bf16.mxu0 0
    %849 = vmatpush1.bf16.msra.mxu0 0
    %850 = vmatprep.subr.bf16.mxu0 0
    %851 = vmatpush1.bf16.msra.mxu0 0
    %852 = vmatprep.subr.bf16.mxu0 0
    %853 = vmatpush1.bf16.msra.mxu0 0
    %854 = vmatprep.subr.bf16.mxu0 0
    %855 = vmatpush1.bf16.msra.mxu0 0
    %856 = vmatprep.subr.bf16.mxu0 0
    %857 = vmatpush1.bf16.msra.mxu0 0
    %858 = vmatprep.subr.bf16.mxu0 0
    %859 = vmatpush1.bf16.msra.mxu0 0
    %860 = vmatprep.subr.bf16.mxu0 0
    %861 = vmatpush1.bf16.msra.mxu0 0
    %862 = vmatprep.subr.bf16.mxu0 0
    %863 = vmatpush1.bf16.msra.mxu0 0
    %864 = vmatprep.subr.bf16.mxu0 0
    %865 = vmatpush1.bf16.msra.mxu0 0
    %866 = vmatprep.subr.bf16.mxu0 0
    %867 = vmatpush1.bf16.msra.mxu0 0
    %868 = vmatprep.subr.bf16.mxu0 0
    %869 = vmatpush1.bf16.msra.mxu0 0
    %870 = vmatprep.mubr.bf16.mxu0 0
    %871 = vmatmul.mubr.bf16.gmra.mrb[0].mxu0 %v836
    %v872 = vpop.f32.mrb[0].mxu0
    %v873 = vadd.f32 %v822, %v872
    %v874 = vpop.f32.mrb[0].mxu0
    %v875 = vpop.f32.mrb[0].mxu0
    %v876 = vadd.f32 %v822, %v875
    %v877 = vpop.f32.mrb[0].mxu0
    %878 = vdwg.mxu0
    %v879 = vmul.f32 %v873, 0.5
    %v880 = vmul.f32 %v876, 0.5
    %v881 = vmul.f32 %v873, 0.70710677
    %v882 = vmul.f32 %v876, 0.70710677
    %vm883 = vcmp.ge.f32.partialorder %v881, 0.0
    %vm884 = vcmp.ge.f32.partialorder %v882, 0.0
    %v885 = vsel %vm883, 1.0, -1.0
    %v886 = vsel %vm884, 1.0, -1.0
    %v887 = vand.u32 2147483647, %v881
    %v888 = vand.u32 2147483647, %v882
    %v889 = vmul.f32 %v887, 0.3275911
    %v890 = vmul.f32 %v888, 0.3275911
    %v891 = vadd.f32 %v889, 1.0
    %v892 = vadd.f32 %v890, 1.0
    %v893 = vrcp.pop %v891
    %v894 = vmul.f32 1.0, %v893
    %v895 = vrcp.pop %v892
    %v896 = vmul.f32 1.0, %v895
    %v897 = vmul.f32 %v894, 1.0614054
    %v898 = vmul.f32 %v896, 1.0614054
    %v899 = vadd.f32 %v897, -1.4531521
    %v900 = vadd.f32 %v898, -1.4531521
    %v901 = vmul.f32 %v899, %v894
    %v902 = vmul.f32 %v900, %v896
    %v903 = vadd.f32 %v901, 1.4214138
    %v904 = vadd.f32 %v902, 1.4214138
    %v905 = vmul.f32 %v903, %v894
    %v906 = vmul.f32 %v904, %v896
    %v907 = vadd.f32 %v905, -0.28449672
    %v908 = vadd.f32 %v906, -0.28449672
    %v909 = vmul.f32 %v907, %v894
    %v910 = vmul.f32 %v908, %v896
    %v911 = vadd.f32 %v909, 0.2548296
    %v912 = vadd.f32 %v910, 0.2548296
    %v913 = vmul.f32 %v911, %v894
    %v914 = vmul.f32 %v912, %v896
    %v915 = vsub.f32 0.0, %v887
    %v916 = vsub.f32 0.0, %v888
    %v917 = vmul.f32 %v915, %v887
    %v918 = vmul.f32 %v916, %v888
    %v919 = vmul.f32 %v917, 1.442695
    %v920 = vpow.pop %v919
    %v921 = vmul.f32 %v918, 1.442695
    %v922 = vpow.pop %v921
    %v923 = vmul.f32 %v913, %v920
    %v924 = vmul.f32 %v914, %v922
    %v925 = vsub.f32 1.0, %v923
    %v926 = vsub.f32 1.0, %v924
    %v927 = vmul.f32 %v885, %v925
    %v928 = vmul.f32 %v886, %v926
    %v929 = vadd.f32 %v927, 1.0
    %v930 = vadd.f32 %v928, 1.0
    %v931 = vmul.f32 %v879, %v929
    %v932 = vmul.f32 %v880, %v930
    %v933 = vpack.c.bf16 %v932, %v931
    %v934 = vld [vmem:[%s4] sm:$0xf]
    %v935 = vld [vmem:[%s4 + $0x4] sm:$0xf]
    %v936 = vld [vmem:[%s4 + $0x8] sm:$0xf]
    %v937 = vld [vmem:[%s4 + $0xc] sm:$0xf]
    %v938 = vld [vmem:[%s4 + $0x10] sm:$0xf]
    %v939 = vld [vmem:[%s4 + $0x14] sm:$0xf]
    %v940 = vld [vmem:[%s4 + $0x18] sm:$0xf]
    %v941 = vld [vmem:[%s4 + $0x1c] sm:$0xf]
    %v942 = vlaneseq
    %v943 = vshrl.u32 %v942, 7
    %v944 = vsub.s32 5, %v943
    %v945 = vrot.slane %v204, %v944
    %v954 = vunpack.c.l.b16 %v934
    %v955 = vunpack.c.l.b16 %v935
    %v956 = vunpack.c.l.b16 %v936
    %v957 = vunpack.c.l.b16 %v937
    %v958 = vunpack.c.l.b16 %v938
    %v959 = vunpack.c.l.b16 %v939
    %v960 = vunpack.c.l.b16 %v940
    %v961 = vunpack.c.l.b16 %v941
    %v962 = vpack.c.b16 %v955, %v954
    %v963 = vpack.c.b16 %v957, %v956
    %v964 = vpack.c.b16 %v959, %v958
    %v965 = vpack.c.b16 %v961, %v960
    %v971 = vsel %vm78, %v933, 0
    %973 = vmatprep.subr.bf16.mxu0 0
    %974 = vmatpush1.bf16.msra.mxu0 %v962
    %975 = vmatprep.subr.bf16.mxu0 0
    %976 = vmatpush1.bf16.msra.mxu0 %v963
    %977 = vmatprep.subr.bf16.mxu0 0
    %978 = vmatpush1.bf16.msra.mxu0 %v964
    %979 = vmatprep.subr.bf16.mxu0 0
    %980 = vmatpush1.bf16.msra.mxu0 %v965
    %981 = vmatprep.subr.bf16.mxu0 0
    %982 = vmatpush1.bf16.msra.mxu0 0
    %983 = vmatprep.subr.bf16.mxu0 0
    %984 = vmatpush1.bf16.msra.mxu0 0
    %985 = vmatprep.subr.bf16.mxu0 0
    %986 = vmatpush1.bf16.msra.mxu0 0
    %987 = vmatprep.subr.bf16.mxu0 0
    %988 = vmatpush1.bf16.msra.mxu0 0
    %989 = vmatprep.subr.bf16.mxu0 0
    %990 = vmatpush1.bf16.msra.mxu0 0
    %991 = vmatprep.subr.bf16.mxu0 0
    %992 = vmatpush1.bf16.msra.mxu0 0
    %993 = vmatprep.subr.bf16.mxu0 0
    %994 = vmatpush1.bf16.msra.mxu0 0
    %995 = vmatprep.subr.bf16.mxu0 0
    %996 = vmatpush1.bf16.msra.mxu0 0
    %997 = vmatprep.subr.bf16.mxu0 0
    %998 = vmatpush1.bf16.msra.mxu0 0
    %999 = vmatprep.subr.bf16.mxu0 0
    %1000 = vmatpush1.bf16.msra.mxu0 0
    %1001 = vmatprep.subr.bf16.mxu0 0
    %1002 = vmatpush1.bf16.msra.mxu0 0
    %1003 = vmatprep.subr.bf16.mxu0 0
    %1004 = vmatpush1.bf16.msra.mxu0 0
    %1005 = vmatprep.mubr.bf16.mxu0 0
    %1006 = vmatmul.mubr.bf16.gmra.mrb[0].mxu0 %v971
    %v1007 = vpop.f32.mrb[0].mxu0
    %v1008 = vadd.f32 %v945, %v1007
    %v1009 = vpop.f32.mrb[0].mxu0
    %v1010 = vpop.f32.mrb[0].mxu0
    %v1011 = vadd.f32 %v945, %v1010
    %v1012 = vpop.f32.mrb[0].mxu0
    %1013 = vdwg.mxu0
    %v1014 = vadd.f32 %v812, %v1008
    %v1015 = vadd.f32 %v813, %v1011
    %v1016 = vsel %vm160, %v1014, 0.0
    %1017 = vadd.xlane.f32.xlu0 %v1016
    %v1018 = vpop.xlane.xlu0 %1017
    %v1019 = vsel %vm160, %v1015, 0.0
    %1020 = vadd.xlane.f32.xlu0 %v1019
    %v1021 = vpop.xlane.xlu0 %1020
    %v1022 = vmul.f32 %v1018, %v167
    %v1023 = vmul.f32 %v1021, %v167
    %v1024 = vsub.f32 %v1014, %v1022
    %v1025 = vsub.f32 %v1015, %v1023
    %v1026 = vmul.f32 %v1024, %v1024
    %v1027 = vmul.f32 %v1025, %v1025
    %v1028 = vsel %vm160, %v1026, 0.0
    %1029 = vadd.xlane.f32.xlu0 %v1028
    %v1030 = vpop.xlane.xlu0 %1029
    %v1031 = vsel %vm160, %v1027, 0.0
    %1032 = vadd.xlane.f32.xlu0 %v1031
    %v1033 = vpop.xlane.xlu0 %1032
    %v1034 = vmul.f32 %v1030, %v167
    %v1035 = vmul.f32 %v1033, %v167
    %v1036 = vadd.f32 %v1034, 1e-12
    %v1037 = vadd.f32 %v1035, 1e-12
    %v1038 = vrsqrt.pop %v1036
    %v1039 = vrsqrt.pop %v1037
    %v1040 = vmul.f32 %v1024, %v1038
    %v1041 = vmul.f32 %v1025, %v1039
    %v1042 = vlaneseq
    %v1043 = vshrl.u32 %v1042, 7
    %v1044 = vsub.s32 6, %v1043
    %v1045 = vrot.slane %v204, %v1044
    %v1046 = vmul.f32 %v1040, %v1045
    %v1047 = vmul.f32 %v1041, %v1045
    %v1048 = vlaneseq
    %v1049 = vshrl.u32 %v1048, 7
    %v1050 = vsub.s32 7, %v1049
    %v1051 = vrot.slane %v204, %v1050
    %v1052 = vadd.f32 %v1046, %v1051
    %v1053 = vadd.f32 %v1047, %v1051
    %s1054 = scalar_lea.vmem %s2, 16
    %v1055 = vld [vmem:[%s1054] sm:$0xf]
    %v1056 = vld [vmem:[%s1054 + $0x4] sm:$0xf]
    %v1057 = vld [vmem:[%s1054 + $0x8] sm:$0xf]
    %v1058 = vld [vmem:[%s1054 + $0xc] sm:$0xf]
    %s1059 = scalar_lea.vmem %s5, 8
    %v1060 = vld [vmem:[%s1059] sm:$0xff]
    %v1061 = vpack.c.bf16 %v1053, %v1052
    %v1062 = vlaneseq
    %v1063 = vshrl.u32 %v1062, 7
    %v1064 = vsub.s32 0, %v1063
    %v1065 = vrot.slane %v1060, %v1064
    %v1070 = vunpack.c.l.b16 %v1055
    %v1071 = vunpack.c.l.b16 %v1056
    %v1072 = vunpack.c.l.b16 %v1057
    %v1073 = vunpack.c.l.b16 %v1058
    %v1074 = vpack.c.b16 %v1071, %v1070
    %v1075 = vpack.c.b16 %v1073, %v1072
    %v1079 = vsel %vm160, %v1061, 0
    %1081 = vmatprep.subr.bf16.mxu0 0
    %1082 = vmatpush1.bf16.msra.mxu0 %v1074
    %1083 = vmatprep.subr.bf16.mxu0 0
    %1084 = vmatpush1.bf16.msra.mxu0 %v1075
    %1085 = vmatprep.subr.bf16.mxu0 0
    %1086 = vmatpush1.bf16.msra.mxu0 0
    %1087 = vmatprep.subr.bf16.mxu0 0
    %1088 = vmatpush1.bf16.msra.mxu0 0
    %1089 = vmatprep.subr.bf16.mxu0 0
    %1090 = vmatpush1.bf16.msra.mxu0 0
    %1091 = vmatprep.subr.bf16.mxu0 0
    %1092 = vmatpush1.bf16.msra.mxu0 0
    %1093 = vmatprep.subr.bf16.mxu0 0
    %1094 = vmatpush1.bf16.msra.mxu0 0
    %1095 = vmatprep.subr.bf16.mxu0 0
    %1096 = vmatpush1.bf16.msra.mxu0 0
    %1097 = vmatprep.subr.bf16.mxu0 0
    %1098 = vmatpush1.bf16.msra.mxu0 0
    %1099 = vmatprep.subr.bf16.mxu0 0
    %1100 = vmatpush1.bf16.msra.mxu0 0
    %1101 = vmatprep.subr.bf16.mxu0 0
    %1102 = vmatpush1.bf16.msra.mxu0 0
    %1103 = vmatprep.subr.bf16.mxu0 0
    %1104 = vmatpush1.bf16.msra.mxu0 0
    %1105 = vmatprep.subr.bf16.mxu0 0
    %1106 = vmatpush1.bf16.msra.mxu0 0
    %1107 = vmatprep.subr.bf16.mxu0 0
    %1108 = vmatpush1.bf16.msra.mxu0 0
    %1109 = vmatprep.subr.bf16.mxu0 0
    %1110 = vmatpush1.bf16.msra.mxu0 0
    %1111 = vmatprep.subr.bf16.mxu0 0
    %1112 = vmatpush1.bf16.msra.mxu0 0
    %1113 = vmatprep.mubr.bf16.mxu0 0
    %1114 = vmatmul.mubr.bf16.gmra.mrb[0].mxu0 %v1079
    %v1115 = vpop.f32.mrb[0].mxu0
    %v1116 = vadd.f32 %v1065, %v1115
    %v1117 = vpop.f32.mrb[0].mxu0
    %v1118 = vpop.f32.mrb[0].mxu0
    %v1119 = vadd.f32 %v1065, %v1118
    %v1120 = vpop.f32.mrb[0].mxu0
    %1121 = vdwg.mxu0
    %v1122 = vpack.c.bf16 %v1116, %v1116
    %1124 = vrot.lane.b32.xlu0 %v1122, 96
    %v1125 = vpop.permute.xlu0 %1124
    %v1127 = vsel %vm270, %v1122, 0
    %v1130 = vsel %vm270, %v1125, 0
    %1132 = vmatprep.subr.bf16.mxu0 0
    %1133 = vmatpush1.bf16.xpose.msra.mxu0 %v1130
    %1134 = vmatprep.subr.bf16.mxu0 0
    %1135 = vmatpush1.bf16.xpose.msra.mxu0 0
    %1136 = vmatprep.subr.bf16.mxu0 0
    %1137 = vmatpush1.bf16.xpose.msra.mxu0 0
    %1138 = vmatprep.subr.bf16.mxu0 0
    %1139 = vmatpush1.bf16.xpose.msra.mxu0 0
    %1140 = vmatprep.subr.bf16.mxu0 0
    %1141 = vmatpush1.bf16.xpose.msra.mxu0 0
    %1142 = vmatprep.subr.bf16.mxu0 0
    %1143 = vmatpush1.bf16.xpose.msra.mxu0 0
    %1144 = vmatprep.subr.bf16.mxu0 0
    %1145 = vmatpush1.bf16.xpose.msra.mxu0 0
    %1146 = vmatprep.subr.bf16.mxu0 0
    %1147 = vmatpush1.bf16.xpose.msra.mxu0 0
    %1148 = vmatprep.subr.bf16.mxu0 0
    %1149 = vmatpush1.bf16.xpose.msra.mxu0 0
    %1150 = vmatprep.subr.bf16.mxu0 0
    %1151 = vmatpush1.bf16.xpose.msra.mxu0 0
    %1152 = vmatprep.subr.bf16.mxu0 0
    %1153 = vmatpush1.bf16.xpose.msra.mxu0 0
    %1154 = vmatprep.subr.bf16.mxu0 0
    %1155 = vmatpush1.bf16.xpose.msra.mxu0 0
    %1156 = vmatprep.subr.bf16.mxu0 0
    %1157 = vmatpush1.bf16.xpose.msra.mxu0 0
    %1158 = vmatprep.subr.bf16.mxu0 0
    %1159 = vmatpush1.bf16.xpose.msra.mxu0 0
    %1160 = vmatprep.subr.bf16.mxu0 0
    %1161 = vmatpush1.bf16.xpose.msra.mxu0 0
    %1162 = vmatprep.subr.bf16.mxu0 0
    %1163 = vmatpush1.bf16.xpose.msra.mxu0 0
    %1164 = vmatprep.mubr.bf16.mxu0 0
    %1165 = vmatmul.mubr.bf16.gmra.mrb[0].mxu0 %v1127
    %v1166 = vpop.f32.mrb[0].mxu0
    %v1167 = vadd.f32 0.0, %v1166
    %v1168 = vpop.f32.mrb[0].mxu0
    %v1169 = vpop.f32.mrb[0].mxu0
    %v1170 = vpop.f32.mrb[0].mxu0
    %1171 = vdwg.mxu0
    %1172 = vrot.lane.b32.xlu0 %v1122, 112
    %v1173 = vpop.permute.xlu0 %1172
    %1174 = vrot.lane.b32.xlu0 %v1122, 80
    %v1175 = vpop.permute.xlu0 %1174
    %v1177 = vsel %vm270, %v1173, 0
    %v1180 = vsel %vm270, %v1175, 0
    %1182 = vmatprep.subr.bf16.mxu0 0
    %1183 = vmatpush1.bf16.xpose.msra.mxu0 %v1180
    %1184 = vmatprep.subr.bf16.mxu0 0
    %1185 = vmatpush1.bf16.xpose.msra.mxu0 0
    %1186 = vmatprep.subr.bf16.mxu0 0
    %1187 = vmatpush1.bf16.xpose.msra.mxu0 0
    %1188 = vmatprep.subr.bf16.mxu0 0
    %1189 = vmatpush1.bf16.xpose.msra.mxu0 0
    %1190 = vmatprep.subr.bf16.mxu0 0
    %1191 = vmatpush1.bf16.xpose.msra.mxu0 0
    %1192 = vmatprep.subr.bf16.mxu0 0
    %1193 = vmatpush1.bf16.xpose.msra.mxu0 0
    %1194 = vmatprep.subr.bf16.mxu0 0
    %1195 = vmatpush1.bf16.xpose.msra.mxu0 0
    %1196 = vmatprep.subr.bf16.mxu0 0
    %1197 = vmatpush1.bf16.xpose.msra.mxu0 0
    %1198 = vmatprep.subr.bf16.mxu0 0
    %1199 = vmatpush1.bf16.xpose.msra.mxu0 0
    %1200 = vmatprep.subr.bf16.mxu0 0
    %1201 = vmatpush1.bf16.xpose.msra.mxu0 0
    %1202 = vmatprep.subr.bf16.mxu0 0
    %1203 = vmatpush1.bf16.xpose.msra.mxu0 0
    %1204 = vmatprep.subr.bf16.mxu0 0
    %1205 = vmatpush1.bf16.xpose.msra.mxu0 0
    %1206 = vmatprep.subr.bf16.mxu0 0
    %1207 = vmatpush1.bf16.xpose.msra.mxu0 0
    %1208 = vmatprep.subr.bf16.mxu0 0
    %1209 = vmatpush1.bf16.xpose.msra.mxu0 0
    %1210 = vmatprep.subr.bf16.mxu0 0
    %1211 = vmatpush1.bf16.xpose.msra.mxu0 0
    %1212 = vmatprep.subr.bf16.mxu0 0
    %1213 = vmatpush1.bf16.xpose.msra.mxu0 0
    %1214 = vmatprep.mubr.bf16.mxu0 0
    %1215 = vmatmul.mubr.bf16.gmra.mrb[0].mxu0 %v1177
    %v1216 = vpop.f32.mrb[0].mxu0
    %v1217 = vadd.f32 0.0, %v1216
    %v1218 = vpop.f32.mrb[0].mxu0
    %v1219 = vpop.f32.mrb[0].mxu0
    %v1220 = vpop.f32.mrb[0].mxu0
    %1221 = vdwg.mxu0
    %v1222 = vpack.c.bf16 %v1119, %v1119
    %1224 = vrot.lane.b32.xlu0 %v1222, 96
    %v1225 = vpop.permute.xlu0 %1224
    %v1227 = vsel %vm270, %v1222, 0
    %v1230 = vsel %vm270, %v1225, 0
    %1232 = vmatprep.subr.bf16.mxu0 0
    %1233 = vmatpush1.bf16.xpose.msra.mxu0 %v1230
    %1234 = vmatprep.subr.bf16.mxu0 0
    %1235 = vmatpush1.bf16.xpose.msra.mxu0 0
    %1236 = vmatprep.subr.bf16.mxu0 0
    %1237 = vmatpush1.bf16.xpose.msra.mxu0 0
    %1238 = vmatprep.subr.bf16.mxu0 0
    %1239 = vmatpush1.bf16.xpose.msra.mxu0 0
    %1240 = vmatprep.subr.bf16.mxu0 0
    %1241 = vmatpush1.bf16.xpose.msra.mxu0 0
    %1242 = vmatprep.subr.bf16.mxu0 0
    %1243 = vmatpush1.bf16.xpose.msra.mxu0 0
    %1244 = vmatprep.subr.bf16.mxu0 0
    %1245 = vmatpush1.bf16.xpose.msra.mxu0 0
    %1246 = vmatprep.subr.bf16.mxu0 0
    %1247 = vmatpush1.bf16.xpose.msra.mxu0 0
    %1248 = vmatprep.subr.bf16.mxu0 0
    %1249 = vmatpush1.bf16.xpose.msra.mxu0 0
    %1250 = vmatprep.subr.bf16.mxu0 0
    %1251 = vmatpush1.bf16.xpose.msra.mxu0 0
    %1252 = vmatprep.subr.bf16.mxu0 0
    %1253 = vmatpush1.bf16.xpose.msra.mxu0 0
    %1254 = vmatprep.subr.bf16.mxu0 0
    %1255 = vmatpush1.bf16.xpose.msra.mxu0 0
    %1256 = vmatprep.subr.bf16.mxu0 0
    %1257 = vmatpush1.bf16.xpose.msra.mxu0 0
    %1258 = vmatprep.subr.bf16.mxu0 0
    %1259 = vmatpush1.bf16.xpose.msra.mxu0 0
    %1260 = vmatprep.subr.bf16.mxu0 0
    %1261 = vmatpush1.bf16.xpose.msra.mxu0 0
    %1262 = vmatprep.subr.bf16.mxu0 0
    %1263 = vmatpush1.bf16.xpose.msra.mxu0 0
    %1264 = vmatprep.mubr.bf16.mxu0 0
    %1265 = vmatmul.mubr.bf16.gmra.mrb[0].mxu0 %v1227
    %v1266 = vpop.f32.mrb[0].mxu0
    %v1267 = vadd.f32 0.0, %v1266
    %v1268 = vpop.f32.mrb[0].mxu0
    %v1269 = vpop.f32.mrb[0].mxu0
    %v1270 = vpop.f32.mrb[0].mxu0
    %1271 = vdwg.mxu0
    %1272 = vrot.lane.b32.xlu0 %v1222, 112
    %v1273 = vpop.permute.xlu0 %1272
    %1274 = vrot.lane.b32.xlu0 %v1222, 80
    %v1275 = vpop.permute.xlu0 %1274
    %v1277 = vsel %vm270, %v1273, 0
    %v1280 = vsel %vm270, %v1275, 0
    %1282 = vmatprep.subr.bf16.mxu0 0
    %1283 = vmatpush1.bf16.xpose.msra.mxu0 %v1280
    %1284 = vmatprep.subr.bf16.mxu0 0
    %1285 = vmatpush1.bf16.xpose.msra.mxu0 0
    %1286 = vmatprep.subr.bf16.mxu0 0
    %1287 = vmatpush1.bf16.xpose.msra.mxu0 0
    %1288 = vmatprep.subr.bf16.mxu0 0
    %1289 = vmatpush1.bf16.xpose.msra.mxu0 0
    %1290 = vmatprep.subr.bf16.mxu0 0
    %1291 = vmatpush1.bf16.xpose.msra.mxu0 0
    %1292 = vmatprep.subr.bf16.mxu0 0
    %1293 = vmatpush1.bf16.xpose.msra.mxu0 0
    %1294 = vmatprep.subr.bf16.mxu0 0
    %1295 = vmatpush1.bf16.xpose.msra.mxu0 0
    %1296 = vmatprep.subr.bf16.mxu0 0
    %1297 = vmatpush1.bf16.xpose.msra.mxu0 0
    %1298 = vmatprep.subr.bf16.mxu0 0
    %1299 = vmatpush1.bf16.xpose.msra.mxu0 0
    %1300 = vmatprep.subr.bf16.mxu0 0
    %1301 = vmatpush1.bf16.xpose.msra.mxu0 0
    %1302 = vmatprep.subr.bf16.mxu0 0
    %1303 = vmatpush1.bf16.xpose.msra.mxu0 0
    %1304 = vmatprep.subr.bf16.mxu0 0
    %1305 = vmatpush1.bf16.xpose.msra.mxu0 0
    %1306 = vmatprep.subr.bf16.mxu0 0
    %1307 = vmatpush1.bf16.xpose.msra.mxu0 0
    %1308 = vmatprep.subr.bf16.mxu0 0
    %1309 = vmatpush1.bf16.xpose.msra.mxu0 0
    %1310 = vmatprep.subr.bf16.mxu0 0
    %1311 = vmatpush1.bf16.xpose.msra.mxu0 0
    %1312 = vmatprep.subr.bf16.mxu0 0
    %1313 = vmatpush1.bf16.xpose.msra.mxu0 0
    %1314 = vmatprep.mubr.bf16.mxu0 0
    %1315 = vmatmul.mubr.bf16.gmra.mrb[0].mxu0 %v1277
    %v1316 = vpop.f32.mrb[0].mxu0
    %v1317 = vadd.f32 0.0, %v1316
    %v1318 = vpop.f32.mrb[0].mxu0
    %v1319 = vpop.f32.mrb[0].mxu0
    %v1320 = vpop.f32.mrb[0].mxu0
    %1321 = vdwg.mxu0
    %v1322 = vsel %vm467, %v1167, -inf
    %1323 = vmax.xlane.f32.xlu0 %v1322
    %v1324 = vpop.xlane.xlu0 %1323
    %v1325 = vsel %vm467, %v1217, -inf
    %1326 = vmax.xlane.f32.xlu0 %v1325
    %v1327 = vpop.xlane.xlu0 %1326
    %v1328 = vsel %vm467, %v1267, -inf
    %1329 = vmax.xlane.f32.xlu0 %v1328
    %v1330 = vpop.xlane.xlu0 %1329
    %v1331 = vsel %vm467, %v1317, -inf
    %1332 = vmax.xlane.f32.xlu0 %v1331
    %v1333 = vpop.xlane.xlu0 %1332
    %v1334 = vsub.f32 %v1167, %v1324
    %v1335 = vsub.f32 %v1217, %v1327
    %v1336 = vsub.f32 %v1267, %v1330
    %v1337 = vsub.f32 %v1317, %v1333
    %v1338 = vmul.f32 %v1334, 1.442695
    %v1339 = vpow.pop %v1338
    %v1340 = vmul.f32 %v1335, 1.442695
    %v1341 = vpow.pop %v1340
    %v1342 = vmul.f32 %v1336, 1.442695
    %v1343 = vpow.pop %v1342
    %v1344 = vmul.f32 %v1337, 1.442695
    %v1345 = vpow.pop %v1344
    %v1346 = vsel %vm467, %v1339, 0.0
    %1347 = vadd.xlane.f32.xlu0 %v1346
    %v1348 = vpop.xlane.xlu0 %1347
    %v1349 = vsel %vm467, %v1341, 0.0
    %1350 = vadd.xlane.f32.xlu0 %v1349
    %v1351 = vpop.xlane.xlu0 %1350
    %v1352 = vsel %vm467, %v1343, 0.0
    %1353 = vadd.xlane.f32.xlu0 %v1352
    %v1354 = vpop.xlane.xlu0 %1353
    %v1355 = vsel %vm467, %v1345, 0.0
    %1356 = vadd.xlane.f32.xlu0 %v1355
    %v1357 = vpop.xlane.xlu0 %1356
    %v1358 = vrcp.pop %v1348
    %v1359 = vrcp.pop %v1351
    %v1360 = vrcp.pop %v1354
    %v1361 = vrcp.pop %v1357
    %v1362 = vmul.f32 %v1339, %v1358
    %v1363 = vmul.f32 %v1341, %v1359
    %v1364 = vmul.f32 %v1343, %v1360
    %v1365 = vmul.f32 %v1345, %v1361
    %v1366 = vpack.c.bf16 %v1362, %v1362
    %1367 = vrot.lane.b32.xlu0 %v1122, 64
    %v1368 = vpop.permute.xlu0 %1367
    %v1370 = vsel %vm467, %v1366, 0
    %v1373 = vsel %vm518, %v1368, 0
    %1375 = vmatprep.subr.bf16.mxu0 0
    %1376 = vmatpush1.bf16.msra.mxu0 %v1373
    %1377 = vmatprep.subr.bf16.mxu0 0
    %1378 = vmatpush1.bf16.msra.mxu0 0
    %1379 = vmatprep.subr.bf16.mxu0 0
    %1380 = vmatpush1.bf16.msra.mxu0 0
    %1381 = vmatprep.subr.bf16.mxu0 0
    %1382 = vmatpush1.bf16.msra.mxu0 0
    %1383 = vmatprep.subr.bf16.mxu0 0
    %1384 = vmatpush1.bf16.msra.mxu0 0
    %1385 = vmatprep.subr.bf16.mxu0 0
    %1386 = vmatpush1.bf16.msra.mxu0 0
    %1387 = vmatprep.subr.bf16.mxu0 0
    %1388 = vmatpush1.bf16.msra.mxu0 0
    %1389 = vmatprep.subr.bf16.mxu0 0
    %1390 = vmatpush1.bf16.msra.mxu0 0
    %1391 = vmatprep.subr.bf16.mxu0 0
    %1392 = vmatpush1.bf16.msra.mxu0 0
    %1393 = vmatprep.subr.bf16.mxu0 0
    %1394 = vmatpush1.bf16.msra.mxu0 0
    %1395 = vmatprep.subr.bf16.mxu0 0
    %1396 = vmatpush1.bf16.msra.mxu0 0
    %1397 = vmatprep.subr.bf16.mxu0 0
    %1398 = vmatpush1.bf16.msra.mxu0 0
    %1399 = vmatprep.subr.bf16.mxu0 0
    %1400 = vmatpush1.bf16.msra.mxu0 0
    %1401 = vmatprep.subr.bf16.mxu0 0
    %1402 = vmatpush1.bf16.msra.mxu0 0
    %1403 = vmatprep.subr.bf16.mxu0 0
    %1404 = vmatpush1.bf16.msra.mxu0 0
    %1405 = vmatprep.subr.bf16.mxu0 0
    %1406 = vmatpush1.bf16.msra.mxu0 0
    %1407 = vmatprep.mubr.bf16.mxu0 0
    %1408 = vmatmul.mubr.bf16.gmra.mrb[0].mxu0 %v1370
    %v1409 = vpop.f32.mrb[0].mxu0
    %v1410 = vadd.f32 0.0, %v1409
    %v1411 = vpop.f32.mrb[0].mxu0
    %v1412 = vpop.f32.mrb[0].mxu0
    %v1413 = vpop.f32.mrb[0].mxu0
    %1414 = vdwg.mxu0
    %v1415 = vpack.c.bf16 %v1363, %v1363
    %1416 = vrot.lane.b32.xlu0 %v1122, 48
    %v1417 = vpop.permute.xlu0 %1416
    %v1419 = vsel %vm467, %v1415, 0
    %v1422 = vsel %vm518, %v1417, 0
    %1424 = vmatprep.subr.bf16.mxu0 0
    %1425 = vmatpush1.bf16.msra.mxu0 %v1422
    %1426 = vmatprep.subr.bf16.mxu0 0
    %1427 = vmatpush1.bf16.msra.mxu0 0
    %1428 = vmatprep.subr.bf16.mxu0 0
    %1429 = vmatpush1.bf16.msra.mxu0 0
    %1430 = vmatprep.subr.bf16.mxu0 0
    %1431 = vmatpush1.bf16.msra.mxu0 0
    %1432 = vmatprep.subr.bf16.mxu0 0
    %1433 = vmatpush1.bf16.msra.mxu0 0
    %1434 = vmatprep.subr.bf16.mxu0 0
    %1435 = vmatpush1.bf16.msra.mxu0 0
    %1436 = vmatprep.subr.bf16.mxu0 0
    %1437 = vmatpush1.bf16.msra.mxu0 0
    %1438 = vmatprep.subr.bf16.mxu0 0
    %1439 = vmatpush1.bf16.msra.mxu0 0
    %1440 = vmatprep.subr.bf16.mxu0 0
    %1441 = vmatpush1.bf16.msra.mxu0 0
    %1442 = vmatprep.subr.bf16.mxu0 0
    %1443 = vmatpush1.bf16.msra.mxu0 0
    %1444 = vmatprep.subr.bf16.mxu0 0
    %1445 = vmatpush1.bf16.msra.mxu0 0
    %1446 = vmatprep.subr.bf16.mxu0 0
    %1447 = vmatpush1.bf16.msra.mxu0 0
    %1448 = vmatprep.subr.bf16.mxu0 0
    %1449 = vmatpush1.bf16.msra.mxu0 0
    %1450 = vmatprep.subr.bf16.mxu0 0
    %1451 = vmatpush1.bf16.msra.mxu0 0
    %1452 = vmatprep.subr.bf16.mxu0 0
    %1453 = vmatpush1.bf16.msra.mxu0 0
    %1454 = vmatprep.subr.bf16.mxu0 0
    %1455 = vmatpush1.bf16.msra.mxu0 0
    %1456 = vmatprep.mubr.bf16.mxu0 0
    %1457 = vmatmul.mubr.bf16.gmra.mrb[0].mxu0 %v1419
    %v1458 = vpop.f32.mrb[0].mxu0
    %v1459 = vadd.f32 0.0, %v1458
    %v1460 = vpop.f32.mrb[0].mxu0
    %v1461 = vpop.f32.mrb[0].mxu0
    %v1462 = vpop.f32.mrb[0].mxu0
    %1463 = vdwg.mxu0
    %1465 = vrot.lane.b32.xlu0 %v1459, 16
    %v1466 = vpop.permute.xlu0 %1465
    %v1468 = vsel %vm270, %v1410, %v1466
    %v1469 = vpack.c.bf16 %v1364, %v1364
    %1470 = vrot.lane.b32.xlu0 %v1222, 64
    %v1471 = vpop.permute.xlu0 %1470
    %v1473 = vsel %vm467, %v1469, 0
    %v1476 = vsel %vm518, %v1471, 0
    %1478 = vmatprep.subr.bf16.mxu0 0
    %1479 = vmatpush1.bf16.msra.mxu0 %v1476
    %1480 = vmatprep.subr.bf16.mxu0 0
    %1481 = vmatpush1.bf16.msra.mxu0 0
    %1482 = vmatprep.subr.bf16.mxu0 0
    %1483 = vmatpush1.bf16.msra.mxu0 0
    %1484 = vmatprep.subr.bf16.mxu0 0
    %1485 = vmatpush1.bf16.msra.mxu0 0
    %1486 = vmatprep.subr.bf16.mxu0 0
    %1487 = vmatpush1.bf16.msra.mxu0 0
    %1488 = vmatprep.subr.bf16.mxu0 0
    %1489 = vmatpush1.bf16.msra.mxu0 0
    %1490 = vmatprep.subr.bf16.mxu0 0
    %1491 = vmatpush1.bf16.msra.mxu0 0
    %1492 = vmatprep.subr.bf16.mxu0 0
    %1493 = vmatpush1.bf16.msra.mxu0 0
    %1494 = vmatprep.subr.bf16.mxu0 0
    %1495 = vmatpush1.bf16.msra.mxu0 0
    %1496 = vmatprep.subr.bf16.mxu0 0
    %1497 = vmatpush1.bf16.msra.mxu0 0
    %1498 = vmatprep.subr.bf16.mxu0 0
    %1499 = vmatpush1.bf16.msra.mxu0 0
    %1500 = vmatprep.subr.bf16.mxu0 0
    %1501 = vmatpush1.bf16.msra.mxu0 0
    %1502 = vmatprep.subr.bf16.mxu0 0
    %1503 = vmatpush1.bf16.msra.mxu0 0
    %1504 = vmatprep.subr.bf16.mxu0 0
    %1505 = vmatpush1.bf16.msra.mxu0 0
    %1506 = vmatprep.subr.bf16.mxu0 0
    %1507 = vmatpush1.bf16.msra.mxu0 0
    %1508 = vmatprep.subr.bf16.mxu0 0
    %1509 = vmatpush1.bf16.msra.mxu0 0
    %1510 = vmatprep.mubr.bf16.mxu0 0
    %1511 = vmatmul.mubr.bf16.gmra.mrb[0].mxu0 %v1473
    %v1512 = vpop.f32.mrb[0].mxu0
    %v1513 = vadd.f32 0.0, %v1512
    %v1514 = vpop.f32.mrb[0].mxu0
    %v1515 = vpop.f32.mrb[0].mxu0
    %v1516 = vpop.f32.mrb[0].mxu0
    %1517 = vdwg.mxu0
    %v1518 = vpack.c.bf16 %v1365, %v1365
    %1519 = vrot.lane.b32.xlu0 %v1222, 48
    %v1520 = vpop.permute.xlu0 %1519
    %v1522 = vsel %vm467, %v1518, 0
    %v1525 = vsel %vm518, %v1520, 0
    %1527 = vmatprep.subr.bf16.mxu0 0
    %1528 = vmatpush1.bf16.msra.mxu0 %v1525
    %1529 = vmatprep.subr.bf16.mxu0 0
    %1530 = vmatpush1.bf16.msra.mxu0 0
    %1531 = vmatprep.subr.bf16.mxu0 0
    %1532 = vmatpush1.bf16.msra.mxu0 0
    %1533 = vmatprep.subr.bf16.mxu0 0
    %1534 = vmatpush1.bf16.msra.mxu0 0
    %1535 = vmatprep.subr.bf16.mxu0 0
    %1536 = vmatpush1.bf16.msra.mxu0 0
    %1537 = vmatprep.subr.bf16.mxu0 0
    %1538 = vmatpush1.bf16.msra.mxu0 0
    %1539 = vmatprep.subr.bf16.mxu0 0
    %1540 = vmatpush1.bf16.msra.mxu0 0
    %1541 = vmatprep.subr.bf16.mxu0 0
    %1542 = vmatpush1.bf16.msra.mxu0 0
    %1543 = vmatprep.subr.bf16.mxu0 0
    %1544 = vmatpush1.bf16.msra.mxu0 0
    %1545 = vmatprep.subr.bf16.mxu0 0
    %1546 = vmatpush1.bf16.msra.mxu0 0
    %1547 = vmatprep.subr.bf16.mxu0 0
    %1548 = vmatpush1.bf16.msra.mxu0 0
    %1549 = vmatprep.subr.bf16.mxu0 0
    %1550 = vmatpush1.bf16.msra.mxu0 0
    %1551 = vmatprep.subr.bf16.mxu0 0
    %1552 = vmatpush1.bf16.msra.mxu0 0
    %1553 = vmatprep.subr.bf16.mxu0 0
    %1554 = vmatpush1.bf16.msra.mxu0 0
    %1555 = vmatprep.subr.bf16.mxu0 0
    %1556 = vmatpush1.bf16.msra.mxu0 0
    %1557 = vmatprep.subr.bf16.mxu0 0
    %1558 = vmatpush1.bf16.msra.mxu0 0
    %1559 = vmatprep.mubr.bf16.mxu0 0
    %1560 = vmatmul.mubr.bf16.gmra.mrb[0].mxu0 %v1522
    %v1561 = vpop.f32.mrb[0].mxu0
    %v1562 = vadd.f32 0.0, %v1561
    %v1563 = vpop.f32.mrb[0].mxu0
    %v1564 = vpop.f32.mrb[0].mxu0
    %v1565 = vpop.f32.mrb[0].mxu0
    %1566 = vdwg.mxu0
    %1568 = vrot.lane.b32.xlu0 %v1562, 16
    %v1569 = vpop.permute.xlu0 %1568
    %v1571 = vsel %vm270, %v1513, %v1569
    %v1572 = vpack.c.bf16 %v1571, %v1468
    %v1573 = vlaneseq
    %v1574 = vshrl.u32 %v1573, 7
    %v1575 = vsub.s32 1, %v1574
    %v1576 = vrot.slane %v1060, %v1575
    %1577 = vrot.lane.b32.xlu0 %v1074, 32
    %v1578 = vpop.permute.xlu0 %1577
    %1579 = vrot.lane.b32.xlu0 %v1075, 32
    %v1580 = vpop.permute.xlu0 %1579
    %v1584 = vsel %vm160, %v1572, 0
    %1586 = vmatprep.subr.bf16.mxu0 0
    %1587 = vmatpush1.bf16.msra.mxu0 %v1578
    %1588 = vmatprep.subr.bf16.mxu0 0
    %1589 = vmatpush1.bf16.msra.mxu0 %v1580
    %1590 = vmatprep.subr.bf16.mxu0 0
    %1591 = vmatpush1.bf16.msra.mxu0 0
    %1592 = vmatprep.subr.bf16.mxu0 0
    %1593 = vmatpush1.bf16.msra.mxu0 0
    %1594 = vmatprep.subr.bf16.mxu0 0
    %1595 = vmatpush1.bf16.msra.mxu0 0
    %1596 = vmatprep.subr.bf16.mxu0 0
    %1597 = vmatpush1.bf16.msra.mxu0 0
    %1598 = vmatprep.subr.bf16.mxu0 0
    %1599 = vmatpush1.bf16.msra.mxu0 0
    %1600 = vmatprep.subr.bf16.mxu0 0
    %1601 = vmatpush1.bf16.msra.mxu0 0
    %1602 = vmatprep.subr.bf16.mxu0 0
    %1603 = vmatpush1.bf16.msra.mxu0 0
    %1604 = vmatprep.subr.bf16.mxu0 0
    %1605 = vmatpush1.bf16.msra.mxu0 0
    %1606 = vmatprep.subr.bf16.mxu0 0
    %1607 = vmatpush1.bf16.msra.mxu0 0
    %1608 = vmatprep.subr.bf16.mxu0 0
    %1609 = vmatpush1.bf16.msra.mxu0 0
    %1610 = vmatprep.subr.bf16.mxu0 0
    %1611 = vmatpush1.bf16.msra.mxu0 0
    %1612 = vmatprep.subr.bf16.mxu0 0
    %1613 = vmatpush1.bf16.msra.mxu0 0
    %1614 = vmatprep.subr.bf16.mxu0 0
    %1615 = vmatpush1.bf16.msra.mxu0 0
    %1616 = vmatprep.subr.bf16.mxu0 0
    %1617 = vmatpush1.bf16.msra.mxu0 0
    %1618 = vmatprep.mubr.bf16.mxu0 0
    %1619 = vmatmul.mubr.bf16.gmra.mrb[0].mxu0 %v1584
    %v1620 = vpop.f32.mrb[0].mxu0
    %v1621 = vadd.f32 %v1576, %v1620
    %v1622 = vpop.f32.mrb[0].mxu0
    %v1623 = vpop.f32.mrb[0].mxu0
    %v1624 = vadd.f32 %v1576, %v1623
    %v1625 = vpop.f32.mrb[0].mxu0
    %1626 = vdwg.mxu0
    %v1627 = vadd.f32 %v1052, %v1621
    %v1628 = vadd.f32 %v1053, %v1624
    %v1629 = vsel %vm160, %v1627, 0.0
    %1630 = vadd.xlane.f32.xlu0 %v1629
    %v1631 = vpop.xlane.xlu0 %1630
    %v1632 = vsel %vm160, %v1628, 0.0
    %1633 = vadd.xlane.f32.xlu0 %v1632
    %v1634 = vpop.xlane.xlu0 %1633
    %v1635 = vmul.f32 %v1631, %v167
    %v1636 = vmul.f32 %v1634, %v167
    %v1637 = vsub.f32 %v1627, %v1635
    %v1638 = vsub.f32 %v1628, %v1636
    %v1639 = vmul.f32 %v1637, %v1637
    %v1640 = vmul.f32 %v1638, %v1638
    %v1641 = vsel %vm160, %v1639, 0.0
    %1642 = vadd.xlane.f32.xlu0 %v1641
    %v1643 = vpop.xlane.xlu0 %1642
    %v1644 = vsel %vm160, %v1640, 0.0
    %1645 = vadd.xlane.f32.xlu0 %v1644
    %v1646 = vpop.xlane.xlu0 %1645
    %v1647 = vmul.f32 %v1643, %v167
    %v1648 = vmul.f32 %v1646, %v167
    %v1649 = vadd.f32 %v1647, 1e-12
    %v1650 = vadd.f32 %v1648, 1e-12
    %v1651 = vrsqrt.pop %v1649
    %v1652 = vrsqrt.pop %v1650
    %v1653 = vmul.f32 %v1637, %v1651
    %v1654 = vmul.f32 %v1638, %v1652
    %v1655 = vlaneseq
    %v1656 = vshrl.u32 %v1655, 7
    %v1657 = vsub.s32 2, %v1656
    %v1658 = vrot.slane %v1060, %v1657
    %v1659 = vmul.f32 %v1653, %v1658
    %v1660 = vmul.f32 %v1654, %v1658
    %v1661 = vlaneseq
    %v1662 = vshrl.u32 %v1661, 7
    %v1663 = vsub.s32 3, %v1662
    %v1664 = vrot.slane %v1060, %v1663
    %v1665 = vadd.f32 %v1659, %v1664
    %v1666 = vadd.f32 %v1660, %v1664
    %v1667 = vpack.c.bf16 %v1666, %v1665
    %s1668 = scalar_lea.vmem %s3, 16
    %v1669 = vld [vmem:[%s1668] sm:$0xf]
    %v1670 = vld [vmem:[%s1668 + $0x4] sm:$0xf]
    %v1671 = vld [vmem:[%s1668 + $0x8] sm:$0xf]
    %v1672 = vld [vmem:[%s1668 + $0xc] sm:$0xf]
    %v1673 = vlaneseq
    %v1674 = vshrl.u32 %v1673, 7
    %v1675 = vsub.s32 4, %v1674
    %v1676 = vrot.slane %v1060, %v1675
    %v1681 = vunpack.c.l.b16 %v1669
    %v1682 = vunpack.c.l.b16 %v1670
    %v1683 = vunpack.c.l.b16 %v1671
    %v1684 = vunpack.c.l.b16 %v1672
    %v1685 = vpack.c.b16 %v1682, %v1681
    %v1686 = vpack.c.b16 %v1684, %v1683
    %v1690 = vsel %vm160, %v1667, 0
    %1692 = vmatprep.subr.bf16.mxu0 0
    %1693 = vmatpush1.bf16.msra.mxu0 %v1685
    %1694 = vmatprep.subr.bf16.mxu0 0
    %1695 = vmatpush1.bf16.msra.mxu0 %v1686
    %1696 = vmatprep.subr.bf16.mxu0 0
    %1697 = vmatpush1.bf16.msra.mxu0 0
    %1698 = vmatprep.subr.bf16.mxu0 0
    %1699 = vmatpush1.bf16.msra.mxu0 0
    %1700 = vmatprep.subr.bf16.mxu0 0
    %1701 = vmatpush1.bf16.msra.mxu0 0
    %1702 = vmatprep.subr.bf16.mxu0 0
    %1703 = vmatpush1.bf16.msra.mxu0 0
    %1704 = vmatprep.subr.bf16.mxu0 0
    %1705 = vmatpush1.bf16.msra.mxu0 0
    %1706 = vmatprep.subr.bf16.mxu0 0
    %1707 = vmatpush1.bf16.msra.mxu0 0
    %1708 = vmatprep.subr.bf16.mxu0 0
    %1709 = vmatpush1.bf16.msra.mxu0 0
    %1710 = vmatprep.subr.bf16.mxu0 0
    %1711 = vmatpush1.bf16.msra.mxu0 0
    %1712 = vmatprep.subr.bf16.mxu0 0
    %1713 = vmatpush1.bf16.msra.mxu0 0
    %1714 = vmatprep.subr.bf16.mxu0 0
    %1715 = vmatpush1.bf16.msra.mxu0 0
    %1716 = vmatprep.subr.bf16.mxu0 0
    %1717 = vmatpush1.bf16.msra.mxu0 0
    %1718 = vmatprep.subr.bf16.mxu0 0
    %1719 = vmatpush1.bf16.msra.mxu0 0
    %1720 = vmatprep.subr.bf16.mxu0 0
    %1721 = vmatpush1.bf16.msra.mxu0 0
    %1722 = vmatprep.subr.bf16.mxu0 0
    %1723 = vmatpush1.bf16.msra.mxu0 0
    %1724 = vmatprep.mubr.bf16.mxu0 0
    %1725 = vmatmul.mubr.bf16.gmra.mrb[0].mxu0 %v1690
    %v1726 = vpop.f32.mrb[0].mxu0
    %v1727 = vadd.f32 %v1676, %v1726
    %v1728 = vpop.f32.mrb[0].mxu0
    %v1729 = vpop.f32.mrb[0].mxu0
    %v1730 = vadd.f32 %v1676, %v1729
    %v1731 = vpop.f32.mrb[0].mxu0
    %1732 = vdwg.mxu0
    %v1733 = vmul.f32 %v1727, 0.5
    %v1734 = vmul.f32 %v1730, 0.5
    %v1735 = vmul.f32 %v1727, 0.70710677
    %v1736 = vmul.f32 %v1730, 0.70710677
    %vm1737 = vcmp.ge.f32.partialorder %v1735, 0.0
    %vm1738 = vcmp.ge.f32.partialorder %v1736, 0.0
    %v1739 = vsel %vm1737, 1.0, -1.0
    %v1740 = vsel %vm1738, 1.0, -1.0
    %v1741 = vand.u32 2147483647, %v1735
    %v1742 = vand.u32 2147483647, %v1736
    %v1743 = vmul.f32 %v1741, 0.3275911
    %v1744 = vmul.f32 %v1742, 0.3275911
    %v1745 = vadd.f32 %v1743, 1.0
    %v1746 = vadd.f32 %v1744, 1.0
    %v1747 = vrcp.pop %v1745
    %v1748 = vmul.f32 1.0, %v1747
    %v1749 = vrcp.pop %v1746
    %v1750 = vmul.f32 1.0, %v1749
    %v1751 = vmul.f32 %v1748, 1.0614054
    %v1752 = vmul.f32 %v1750, 1.0614054
    %v1753 = vadd.f32 %v1751, -1.4531521
    %v1754 = vadd.f32 %v1752, -1.4531521
    %v1755 = vmul.f32 %v1753, %v1748
    %v1756 = vmul.f32 %v1754, %v1750
    %v1757 = vadd.f32 %v1755, 1.4214138
    %v1758 = vadd.f32 %v1756, 1.4214138
    %v1759 = vmul.f32 %v1757, %v1748
    %v1760 = vmul.f32 %v1758, %v1750
    %v1761 = vadd.f32 %v1759, -0.28449672
    %v1762 = vadd.f32 %v1760, -0.28449672
    %v1763 = vmul.f32 %v1761, %v1748
    %v1764 = vmul.f32 %v1762, %v1750
    %v1765 = vadd.f32 %v1763, 0.2548296
    %v1766 = vadd.f32 %v1764, 0.2548296
    %v1767 = vmul.f32 %v1765, %v1748
    %v1768 = vmul.f32 %v1766, %v1750
    %v1769 = vsub.f32 0.0, %v1741
    %v1770 = vsub.f32 0.0, %v1742
    %v1771 = vmul.f32 %v1769, %v1741
    %v1772 = vmul.f32 %v1770, %v1742
    %v1773 = vmul.f32 %v1771, 1.442695
    %v1774 = vpow.pop %v1773
    %v1775 = vmul.f32 %v1772, 1.442695
    %v1776 = vpow.pop %v1775
    %v1777 = vmul.f32 %v1767, %v1774
    %v1778 = vmul.f32 %v1768, %v1776
    %v1779 = vsub.f32 1.0, %v1777
    %v1780 = vsub.f32 1.0, %v1778
    %v1781 = vmul.f32 %v1739, %v1779
    %v1782 = vmul.f32 %v1740, %v1780
    %v1783 = vadd.f32 %v1781, 1.0
    %v1784 = vadd.f32 %v1782, 1.0
    %v1785 = vmul.f32 %v1733, %v1783
    %v1786 = vmul.f32 %v1734, %v1784
    %v1787 = vpack.c.bf16 %v1786, %v1785
    %s1788 = scalar_lea.vmem %s4, 32
    %v1789 = vld [vmem:[%s1788] sm:$0xf]
    %v1790 = vld [vmem:[%s1788 + $0x4] sm:$0xf]
    %v1791 = vld [vmem:[%s1788 + $0x8] sm:$0xf]
    %v1792 = vld [vmem:[%s1788 + $0xc] sm:$0xf]
    %v1793 = vld [vmem:[%s1788 + $0x10] sm:$0xf]
    %v1794 = vld [vmem:[%s1788 + $0x14] sm:$0xf]
    %v1795 = vld [vmem:[%s1788 + $0x18] sm:$0xf]
    %v1796 = vld [vmem:[%s1788 + $0x1c] sm:$0xf]
    %v1797 = vlaneseq
    %v1798 = vshrl.u32 %v1797, 7
    %v1799 = vsub.s32 5, %v1798
    %v1800 = vrot.slane %v1060, %v1799
    %v1809 = vunpack.c.l.b16 %v1789
    %v1810 = vunpack.c.l.b16 %v1790
    %v1811 = vunpack.c.l.b16 %v1791
    %v1812 = vunpack.c.l.b16 %v1792
    %v1813 = vunpack.c.l.b16 %v1793
    %v1814 = vunpack.c.l.b16 %v1794
    %v1815 = vunpack.c.l.b16 %v1795
    %v1816 = vunpack.c.l.b16 %v1796
    %v1817 = vpack.c.b16 %v1810, %v1809
    %v1818 = vpack.c.b16 %v1812, %v1811
    %v1819 = vpack.c.b16 %v1814, %v1813
    %v1820 = vpack.c.b16 %v1816, %v1815
    %v1826 = vsel %vm78, %v1787, 0
    %1828 = vmatprep.subr.bf16.mxu0 0
    %1829 = vmatpush1.bf16.msra.mxu0 %v1817
    %1830 = vmatprep.subr.bf16.mxu0 0
    %1831 = vmatpush1.bf16.msra.mxu0 %v1818
    %1832 = vmatprep.subr.bf16.mxu0 0
    %1833 = vmatpush1.bf16.msra.mxu0 %v1819
    %1834 = vmatprep.subr.bf16.mxu0 0
    %1835 = vmatpush1.bf16.msra.mxu0 %v1820
    %1836 = vmatprep.subr.bf16.mxu0 0
    %1837 = vmatpush1.bf16.msra.mxu0 0
    %1838 = vmatprep.subr.bf16.mxu0 0
    %1839 = vmatpush1.bf16.msra.mxu0 0
    %1840 = vmatprep.subr.bf16.mxu0 0
    %1841 = vmatpush1.bf16.msra.mxu0 0
    %1842 = vmatprep.subr.bf16.mxu0 0
    %1843 = vmatpush1.bf16.msra.mxu0 0
    %1844 = vmatprep.subr.bf16.mxu0 0
    %1845 = vmatpush1.bf16.msra.mxu0 0
    %1846 = vmatprep.subr.bf16.mxu0 0
    %1847 = vmatpush1.bf16.msra.mxu0 0
    %1848 = vmatprep.subr.bf16.mxu0 0
    %1849 = vmatpush1.bf16.msra.mxu0 0
    %1850 = vmatprep.subr.bf16.mxu0 0
    %1851 = vmatpush1.bf16.msra.mxu0 0
    %1852 = vmatprep.subr.bf16.mxu0 0
    %1853 = vmatpush1.bf16.msra.mxu0 0
    %1854 = vmatprep.subr.bf16.mxu0 0
    %1855 = vmatpush1.bf16.msra.mxu0 0
    %1856 = vmatprep.subr.bf16.mxu0 0
    %1857 = vmatpush1.bf16.msra.mxu0 0
    %1858 = vmatprep.subr.bf16.mxu0 0
    %1859 = vmatpush1.bf16.msra.mxu0 0
    %1860 = vmatprep.mubr.bf16.mxu0 0
    %1861 = vmatmul.mubr.bf16.gmra.mrb[0].mxu0 %v1826
    %v1862 = vpop.f32.mrb[0].mxu0
    %v1863 = vadd.f32 %v1800, %v1862
    %v1864 = vpop.f32.mrb[0].mxu0
    %v1865 = vpop.f32.mrb[0].mxu0
    %v1866 = vadd.f32 %v1800, %v1865
    %v1867 = vpop.f32.mrb[0].mxu0
    %1868 = vdwg.mxu0
    %v1869 = vadd.f32 %v1665, %v1863
    %v1870 = vadd.f32 %v1666, %v1866
    %v1871 = vsel %vm160, %v1869, 0.0
    %1872 = vadd.xlane.f32.xlu0 %v1871
    %v1873 = vpop.xlane.xlu0 %1872
    %v1874 = vsel %vm160, %v1870, 0.0
    %1875 = vadd.xlane.f32.xlu0 %v1874
    %v1876 = vpop.xlane.xlu0 %1875
    %v1877 = vmul.f32 %v1873, %v167
    %v1878 = vmul.f32 %v1876, %v167
    %v1879 = vsub.f32 %v1869, %v1877
    %v1880 = vsub.f32 %v1870, %v1878
    %v1881 = vmul.f32 %v1879, %v1879
    %v1882 = vmul.f32 %v1880, %v1880
    %v1883 = vsel %vm160, %v1881, 0.0
    %1884 = vadd.xlane.f32.xlu0 %v1883
    %v1885 = vpop.xlane.xlu0 %1884
    %v1886 = vsel %vm160, %v1882, 0.0
    %1887 = vadd.xlane.f32.xlu0 %v1886
    %v1888 = vpop.xlane.xlu0 %1887
    %v1889 = vmul.f32 %v1885, %v167
    %v1890 = vmul.f32 %v1888, %v167
    %v1891 = vadd.f32 %v1889, 1e-12
    %v1892 = vadd.f32 %v1890, 1e-12
    %v1893 = vrsqrt.pop %v1891
    %v1894 = vrsqrt.pop %v1892
    %v1895 = vmul.f32 %v1879, %v1893
    %v1896 = vmul.f32 %v1880, %v1894
    %v1897 = vlaneseq
    %v1898 = vshrl.u32 %v1897, 7
    %v1899 = vsub.s32 6, %v1898
    %v1900 = vrot.slane %v1060, %v1899
    %v1901 = vmul.f32 %v1895, %v1900
    %v1902 = vmul.f32 %v1896, %v1900
    %v1903 = vlaneseq
    %v1904 = vshrl.u32 %v1903, 7
    %v1905 = vsub.s32 7, %v1904
    %v1906 = vrot.slane %v1060, %v1905
    %v1907 = vadd.f32 %v1901, %v1906
    %v1908 = vadd.f32 %v1902, %v1906
    %v1909 = vpack.c.bf16 %v1908, %v1907
    %v1910 = vld [vmem:[%s6] sm:$0xff]
    %v1911 = vld [vmem:[%s6 + $0x8] sm:$0xff]
    %v1912 = vld [vmem:[%s6 + $0x10] sm:$0xff]
    %v1913 = vld [vmem:[%s6 + $0x18] sm:$0xff]
    %v1914 = vld [vmem:[%s9] ss:$4 sm:$0x3]
    %v1916 = vlaneseq
    %v1917 = vshrl.u32 %v1916, 7
    %v1918 = vsub.s32 0, %v1917
    %v1919 = vrot.slane %v1914, %v1918
    %v1920 = vlaneseq
    %v1921 = vshrl.u32 %v1920, 7
    %v1922 = vsub.s32 1, %v1921
    %v1923 = vrot.slane %v1914, %v1922
    %v1930 = vunpack.c.l.b16 %v1910
    %v1931 = vunpack.c.h.b16 %v1910
    %v1932 = vunpack.c.l.b16 %v1911
    %v1933 = vunpack.c.h.b16 %v1911
    %v1934 = vunpack.c.l.b16 %v1912
    %v1935 = vunpack.c.h.b16 %v1912
    %v1936 = vunpack.c.l.b16 %v1913
    %v1937 = vunpack.c.h.b16 %v1913
    %v1938 = vpack.c.b16 %v1932, %v1930
    %v1939 = vpack.c.b16 %v1933, %v1931
    %v1940 = vpack.c.b16 %v1936, %v1934
    %v1941 = vpack.c.b16 %v1937, %v1935
    %v1947 = vsel %vm160, %v1909, 0
    %1949 = vmatprep.subr.bf16.mxu0 %v1939
    %1950 = vmatpush1.bf16.msra.mxu0 %v1938
    %1951 = vmatprep.subr.bf16.mxu0 %v1941
    %1952 = vmatpush1.bf16.msra.mxu0 %v1940
    %1953 = vmatprep.subr.bf16.mxu0 0
    %1954 = vmatpush1.bf16.msra.mxu0 0
    %1955 = vmatprep.subr.bf16.mxu0 0
    %1956 = vmatpush1.bf16.msra.mxu0 0
    %1957 = vmatprep.subr.bf16.mxu0 0
    %1958 = vmatpush1.bf16.msra.mxu0 0
    %1959 = vmatprep.subr.bf16.mxu0 0
    %1960 = vmatpush1.bf16.msra.mxu0 0
    %1961 = vmatprep.subr.bf16.mxu0 0
    %1962 = vmatpush1.bf16.msra.mxu0 0
    %1963 = vmatprep.subr.bf16.mxu0 0
    %1964 = vmatpush1.bf16.msra.mxu0 0
    %1965 = vmatprep.subr.bf16.mxu0 0
    %1966 = vmatpush1.bf16.msra.mxu0 0
    %1967 = vmatprep.subr.bf16.mxu0 0
    %1968 = vmatpush1.bf16.msra.mxu0 0
    %1969 = vmatprep.subr.bf16.mxu0 0
    %1970 = vmatpush1.bf16.msra.mxu0 0
    %1971 = vmatprep.subr.bf16.mxu0 0
    %1972 = vmatpush1.bf16.msra.mxu0 0
    %1973 = vmatprep.subr.bf16.mxu0 0
    %1974 = vmatpush1.bf16.msra.mxu0 0
    %1975 = vmatprep.subr.bf16.mxu0 0
    %1976 = vmatpush1.bf16.msra.mxu0 0
    %1977 = vmatprep.subr.bf16.mxu0 0
    %1978 = vmatpush1.bf16.msra.mxu0 0
    %1979 = vmatprep.subr.bf16.mxu0 0
    %1980 = vmatpush1.bf16.msra.mxu0 0
    %1981 = vmatprep.mubr.bf16.mxu0 0
    %1982 = vmatmul.mubr.bf16.gmra.mrb[0].mxu0 %v1947
    %v1983 = vpop.f32.mrb[0].mxu0
    %v1984 = vadd.f32 %v1919, %v1983
    %v1985 = vpop.f32.mrb[0].mxu0
    %v1986 = vadd.f32 %v1923, %v1985
    %v1987 = vpop.f32.mrb[0].mxu0
    %v1988 = vadd.f32 %v1919, %v1987
    %v1989 = vpop.f32.mrb[0].mxu0
    %v1990 = vadd.f32 %v1923, %v1989
    %1991 = vdwg.mxu0
    %v1992 = vpack.c.bf16 %v1988, %v1984
    %v1993 = vpack.c.bf16 %v1990, %v1986
    %v1994 = vld [vmem:[#allocation2] sm:$0xff]
    %v1995 = vld [vmem:[#allocation2 + $0x8] sm:$0xff]
    %v1996 = vld [vmem:[#allocation2 + $0x10] sm:$0xff]
    %v1997 = vld [vmem:[#allocation2 + $0x18] sm:$0xff]
    %v1998 = vld [vmem:[#allocation2 + $0x20] sm:$0xff]
    %v1999 = vld [vmem:[#allocation2 + $0x28] sm:$0xff]
    %v2000 = vld [vmem:[#allocation2 + $0x30] sm:$0xff]
    %v2001 = vld [vmem:[#allocation2 + $0x38] sm:$0xff]
    %v2002 = vld [vmem:[#allocation2 + $0x40] sm:$0xff]
    %v2003 = vld [vmem:[#allocation2 + $0x48] sm:$0xff]
    %v2004 = vld [vmem:[#allocation2 + $0x50] sm:$0xff]
    %v2005 = vld [vmem:[#allocation2 + $0x58] sm:$0xff]
    %v2006 = vld [vmem:[#allocation2 + $0x60] sm:$0xff]
    %v2007 = vld [vmem:[#allocation2 + $0x68] sm:$0xff]
    %v2008 = vld [vmem:[#allocation2 + $0x70] sm:$0xff]
    %v2009 = vld [vmem:[#allocation2 + $0x78] sm:$0xff]
    %v2010 = vld [vmem:[#allocation2 + $0x80] sm:$0xff]
    %v2011 = vld [vmem:[#allocation2 + $0x88] sm:$0xff]
    %v2012 = vld [vmem:[#allocation2 + $0x90] sm:$0xff]
    %v2013 = vld [vmem:[#allocation2 + $0x98] sm:$0xff]
    %v2014 = vld [vmem:[#allocation2 + $0xa0] sm:$0xff]
    %v2015 = vld [vmem:[#allocation2 + $0xa8] sm:$0xff]
    %v2016 = vld [vmem:[#allocation2 + $0xb0] sm:$0xff]
    %v2017 = vld [vmem:[#allocation2 + $0xb8] sm:$0xff]
    %v2018 = vld [vmem:[#allocation2 + $0xc0] sm:$0xff]
    %v2019 = vld [vmem:[#allocation2 + $0xc8] sm:$0xff]
    %v2020 = vld [vmem:[#allocation2 + $0xd0] sm:$0xff]
    %v2021 = vld [vmem:[#allocation2 + $0xd8] sm:$0xff]
    %v2022 = vld [vmem:[#allocation2 + $0xe0] sm:$0xff]
    %v2023 = vld [vmem:[#allocation2 + $0xe8] sm:$0xff]
    %v2024 = vld [vmem:[#allocation2 + $0xf0] sm:$0xff]
    %v2025 = vld [vmem:[#allocation2 + $0xf8] sm:$0xff]
    %s2026 = scalar_lea.vmem %s9, 1
    %v2027 = vld [vmem:[%s2026] ss:$4 sm:$0x3]
    %v2029 = vlaneseq
    %v2030 = vshrl.u32 %v2029, 7
    %v2031 = vsub.s32 0, %v2030
    %v2032 = vrot.slane %v2027, %v2031
    %v2033 = vlaneseq
    %v2034 = vshrl.u32 %v2033, 7
    %v2035 = vsub.s32 1, %v2034
    %v2036 = vrot.slane %v2027, %v2035
    %v2071 = vunpack.c.l.b16 %v1994
    %v2072 = vunpack.c.h.b16 %v1994
    %v2073 = vunpack.c.l.b16 %v1995
    %v2074 = vunpack.c.h.b16 %v1995
    %v2075 = vunpack.c.l.b16 %v1996
    %v2076 = vunpack.c.h.b16 %v1996
    %v2077 = vunpack.c.l.b16 %v1997
    %v2078 = vunpack.c.h.b16 %v1997
    %v2079 = vunpack.c.l.b16 %v1998
    %v2080 = vunpack.c.h.b16 %v1998
    %v2081 = vunpack.c.l.b16 %v1999
    %v2082 = vunpack.c.h.b16 %v1999
    %v2083 = vunpack.c.l.b16 %v2000
    %v2084 = vunpack.c.h.b16 %v2000
    %v2085 = vunpack.c.l.b16 %v2001
    %v2086 = vunpack.c.h.b16 %v2001
    %v2087 = vunpack.c.l.b16 %v2002
    %v2088 = vunpack.c.h.b16 %v2002
    %v2089 = vunpack.c.l.b16 %v2003
    %v2090 = vunpack.c.h.b16 %v2003
    %v2091 = vunpack.c.l.b16 %v2004
    %v2092 = vunpack.c.h.b16 %v2004
    %v2093 = vunpack.c.l.b16 %v2005
    %v2094 = vunpack.c.h.b16 %v2005
    %v2095 = vunpack.c.l.b16 %v2006
    %v2096 = vunpack.c.h.b16 %v2006
    %v2097 = vunpack.c.l.b16 %v2007
    %v2098 = vunpack.c.h.b16 %v2007
    %v2099 = vunpack.c.l.b16 %v2008
    %v2100 = vunpack.c.h.b16 %v2008
    %v2101 = vunpack.c.l.b16 %v2009
    %v2102 = vunpack.c.h.b16 %v2009
    %v2103 = vunpack.c.l.b16 %v2010
    %v2104 = vunpack.c.h.b16 %v2010
    %v2105 = vunpack.c.l.b16 %v2011
    %v2106 = vunpack.c.h.b16 %v2011
    %v2107 = vunpack.c.l.b16 %v2012
    %v2108 = vunpack.c.h.b16 %v2012
    %v2109 = vunpack.c.l.b16 %v2013
    %v2110 = vunpack.c.h.b16 %v2013
    %v2111 = vunpack.c.l.b16 %v2014
    %v2112 = vunpack.c.h.b16 %v2014
    %v2113 = vunpack.c.l.b16 %v2015
    %v2114 = vunpack.c.h.b16 %v2015
    %v2115 = vunpack.c.l.b16 %v2016
    %v2116 = vunpack.c.h.b16 %v2016
    %v2117 = vunpack.c.l.b16 %v2017
    %v2118 = vunpack.c.h.b16 %v2017
    %v2119 = vunpack.c.l.b16 %v2018
    %v2120 = vunpack.c.h.b16 %v2018
    %v2121 = vunpack.c.l.b16 %v2019
    %v2122 = vunpack.c.h.b16 %v2019
    %v2123 = vunpack.c.l.b16 %v2020
    %v2124 = vunpack.c.h.b16 %v2020
    %v2125 = vunpack.c.l.b16 %v2021
    %v2126 = vunpack.c.h.b16 %v2021
    %v2127 = vunpack.c.l.b16 %v2022
    %v2128 = vunpack.c.h.b16 %v2022
    %v2129 = vunpack.c.l.b16 %v2023
    %v2130 = vunpack.c.h.b16 %v2023
    %v2131 = vunpack.c.l.b16 %v2024
    %v2132 = vunpack.c.h.b16 %v2024
    %v2133 = vunpack.c.l.b16 %v2025
    %v2134 = vunpack.c.h.b16 %v2025
    %v2135 = vpack.c.b16 %v2073, %v2071
    %v2136 = vpack.c.b16 %v2074, %v2072
    %v2137 = vpack.c.b16 %v2077, %v2075
    %v2138 = vpack.c.b16 %v2078, %v2076
    %v2139 = vpack.c.b16 %v2081, %v2079
    %v2140 = vpack.c.b16 %v2082, %v2080
    %v2141 = vpack.c.b16 %v2085, %v2083
    %v2142 = vpack.c.b16 %v2086, %v2084
    %v2143 = vpack.c.b16 %v2089, %v2087
    %v2144 = vpack.c.b16 %v2090, %v2088
    %v2145 = vpack.c.b16 %v2093, %v2091
    %v2146 = vpack.c.b16 %v2094, %v2092
    %v2147 = vpack.c.b16 %v2097, %v2095
    %v2148 = vpack.c.b16 %v2098, %v2096
    %v2149 = vpack.c.b16 %v2101, %v2099
    %v2150 = vpack.c.b16 %v2102, %v2100
    %v2151 = vpack.c.b16 %v2105, %v2103
    %v2152 = vpack.c.b16 %v2106, %v2104
    %v2153 = vpack.c.b16 %v2109, %v2107
    %v2154 = vpack.c.b16 %v2110, %v2108
    %v2155 = vpack.c.b16 %v2113, %v2111
    %v2156 = vpack.c.b16 %v2114, %v2112
    %v2157 = vpack.c.b16 %v2117, %v2115
    %v2158 = vpack.c.b16 %v2118, %v2116
    %v2159 = vpack.c.b16 %v2121, %v2119
    %v2160 = vpack.c.b16 %v2122, %v2120
    %v2161 = vpack.c.b16 %v2125, %v2123
    %v2162 = vpack.c.b16 %v2126, %v2124
    %v2163 = vpack.c.b16 %v2129, %v2127
    %v2164 = vpack.c.b16 %v2130, %v2128
    %v2165 = vpack.c.b16 %v2133, %v2131
    %v2166 = vpack.c.b16 %v2134, %v2132
    %2199 = vmatprep.subr.bf16.mxu0 %v2136
    %2200 = vmatpush1.bf16.msra.mxu0 %v2135
    %2201 = vmatprep.subr.bf16.mxu0 %v2138
    %2202 = vmatpush1.bf16.msra.mxu0 %v2137
    %2203 = vmatprep.subr.bf16.mxu0 %v2140
    %2204 = vmatpush1.bf16.msra.mxu0 %v2139
    %2205 = vmatprep.subr.bf16.mxu0 %v2142
    %2206 = vmatpush1.bf16.msra.mxu0 %v2141
    %2207 = vmatprep.subr.bf16.mxu0 %v2144
    %2208 = vmatpush1.bf16.msra.mxu0 %v2143
    %2209 = vmatprep.subr.bf16.mxu0 %v2146
    %2210 = vmatpush1.bf16.msra.mxu0 %v2145
    %2211 = vmatprep.subr.bf16.mxu0 %v2148
    %2212 = vmatpush1.bf16.msra.mxu0 %v2147
    %2213 = vmatprep.subr.bf16.mxu0 %v2150
    %2214 = vmatpush1.bf16.msra.mxu0 %v2149
    %2215 = vmatprep.subr.bf16.mxu0 %v2152
    %2216 = vmatpush1.bf16.msra.mxu0 %v2151
    %2217 = vmatprep.subr.bf16.mxu0 %v2154
    %2218 = vmatpush1.bf16.msra.mxu0 %v2153
    %2219 = vmatprep.subr.bf16.mxu0 %v2156
    %2220 = vmatpush1.bf16.msra.mxu0 %v2155
    %2221 = vmatprep.subr.bf16.mxu0 %v2158
    %2222 = vmatpush1.bf16.msra.mxu0 %v2157
    %2223 = vmatprep.subr.bf16.mxu0 %v2160
    %2224 = vmatpush1.bf16.msra.mxu0 %v2159
    %2225 = vmatprep.subr.bf16.mxu0 %v2162
    %2226 = vmatpush1.bf16.msra.mxu0 %v2161
    %2227 = vmatprep.subr.bf16.mxu0 %v2164
    %2228 = vmatpush1.bf16.msra.mxu0 %v2163
    %2229 = vmatprep.subr.bf16.mxu0 %v2166
    %2230 = vmatpush1.bf16.msra.mxu0 %v2165
    %2231 = vmatprep.mubr.bf16.mxu0 %v1993
    %2232 = vmatmul.mubr.bf16.gmra.mrb[0].mxu0 %v1992
    %v2233 = vpop.f32.mrb[0].mxu0
    %v2234 = vadd.f32 %v2032, %v2233
    %v2235 = vpop.f32.mrb[0].mxu0
    %v2236 = vadd.f32 %v2036, %v2235
    %v2237 = vpop.f32.mrb[0].mxu0
    %v2238 = vadd.f32 %v2032, %v2237
    %v2239 = vpop.f32.mrb[0].mxu0
    %v2240 = vadd.f32 %v2036, %v2239
    %2241 = vdwg.mxu0
    %v2242 = vpack.c.bf16 %v2238, %v2234
    %v2243 = vpack.c.bf16 %v2240, %v2236
    %s2244 = scalar_lea.vmem [#allocation2], 256
    %v2245 = vld [vmem:[%s2244] sm:$0xff]
    %v2246 = vld [vmem:[%s2244 + $0x8] sm:$0xff]
    %v2247 = vld [vmem:[%s2244 + $0x10] sm:$0xff]
    %v2248 = vld [vmem:[%s2244 + $0x18] sm:$0xff]
    %v2249 = vld [vmem:[%s2244 + $0x20] sm:$0xff]
    %v2250 = vld [vmem:[%s2244 + $0x28] sm:$0xff]
    %v2251 = vld [vmem:[%s2244 + $0x30] sm:$0xff]
    %v2252 = vld [vmem:[%s2244 + $0x38] sm:$0xff]
    %v2253 = vld [vmem:[%s2244 + $0x40] sm:$0xff]
    %v2254 = vld [vmem:[%s2244 + $0x48] sm:$0xff]
    %v2255 = vld [vmem:[%s2244 + $0x50] sm:$0xff]
    %v2256 = vld [vmem:[%s2244 + $0x58] sm:$0xff]
    %v2257 = vld [vmem:[%s2244 + $0x60] sm:$0xff]
    %v2258 = vld [vmem:[%s2244 + $0x68] sm:$0xff]
    %v2259 = vld [vmem:[%s2244 + $0x70] sm:$0xff]
    %v2260 = vld [vmem:[%s2244 + $0x78] sm:$0xff]
    %v2261 = vld [vmem:[%s2244 + $0x80] sm:$0xff]
    %v2262 = vld [vmem:[%s2244 + $0x88] sm:$0xff]
    %v2263 = vld [vmem:[%s2244 + $0x90] sm:$0xff]
    %v2264 = vld [vmem:[%s2244 + $0x98] sm:$0xff]
    %v2265 = vld [vmem:[%s2244 + $0xa0] sm:$0xff]
    %v2266 = vld [vmem:[%s2244 + $0xa8] sm:$0xff]
    %v2267 = vld [vmem:[%s2244 + $0xb0] sm:$0xff]
    %v2268 = vld [vmem:[%s2244 + $0xb8] sm:$0xff]
    %v2269 = vld [vmem:[%s2244 + $0xc0] sm:$0xff]
    %v2270 = vld [vmem:[%s2244 + $0xc8] sm:$0xff]
    %v2271 = vld [vmem:[%s2244 + $0xd0] sm:$0xff]
    %v2272 = vld [vmem:[%s2244 + $0xd8] sm:$0xff]
    %v2273 = vld [vmem:[%s2244 + $0xe0] sm:$0xff]
    %v2274 = vld [vmem:[%s2244 + $0xe8] sm:$0xff]
    %v2275 = vld [vmem:[%s2244 + $0xf0] sm:$0xff]
    %v2276 = vld [vmem:[%s2244 + $0xf8] sm:$0xff]
    %s2277 = scalar_lea.vmem %s9, 2
    %v2278 = vld [vmem:[%s2277] ss:$4 sm:$0x3]
    %v2280 = vlaneseq
    %v2281 = vshrl.u32 %v2280, 7
    %v2282 = vsub.s32 0, %v2281
    %v2283 = vrot.slane %v2278, %v2282
    %v2284 = vlaneseq
    %v2285 = vshrl.u32 %v2284, 7
    %v2286 = vsub.s32 1, %v2285
    %v2287 = vrot.slane %v2278, %v2286
    %v2322 = vunpack.c.l.b16 %v2245
    %v2323 = vunpack.c.h.b16 %v2245
    %v2324 = vunpack.c.l.b16 %v2246
    %v2325 = vunpack.c.h.b16 %v2246
    %v2326 = vunpack.c.l.b16 %v2247
    %v2327 = vunpack.c.h.b16 %v2247
    %v2328 = vunpack.c.l.b16 %v2248
    %v2329 = vunpack.c.h.b16 %v2248
    %v2330 = vunpack.c.l.b16 %v2249
    %v2331 = vunpack.c.h.b16 %v2249
    %v2332 = vunpack.c.l.b16 %v2250
    %v2333 = vunpack.c.h.b16 %v2250
    %v2334 = vunpack.c.l.b16 %v2251
    %v2335 = vunpack.c.h.b16 %v2251
    %v2336 = vunpack.c.l.b16 %v2252
    %v2337 = vunpack.c.h.b16 %v2252
    %v2338 = vunpack.c.l.b16 %v2253
    %v2339 = vunpack.c.h.b16 %v2253
    %v2340 = vunpack.c.l.b16 %v2254
    %v2341 = vunpack.c.h.b16 %v2254
    %v2342 = vunpack.c.l.b16 %v2255
    %v2343 = vunpack.c.h.b16 %v2255
    %v2344 = vunpack.c.l.b16 %v2256
    %v2345 = vunpack.c.h.b16 %v2256
    %v2346 = vunpack.c.l.b16 %v2257
    %v2347 = vunpack.c.h.b16 %v2257
    %v2348 = vunpack.c.l.b16 %v2258
    %v2349 = vunpack.c.h.b16 %v2258
    %v2350 = vunpack.c.l.b16 %v2259
    %v2351 = vunpack.c.h.b16 %v2259
    %v2352 = vunpack.c.l.b16 %v2260
    %v2353 = vunpack.c.h.b16 %v2260
    %v2354 = vunpack.c.l.b16 %v2261
    %v2355 = vunpack.c.h.b16 %v2261
    %v2356 = vunpack.c.l.b16 %v2262
    %v2357 = vunpack.c.h.b16 %v2262
    %v2358 = vunpack.c.l.b16 %v2263
    %v2359 = vunpack.c.h.b16 %v2263
    %v2360 = vunpack.c.l.b16 %v2264
    %v2361 = vunpack.c.h.b16 %v2264
    %v2362 = vunpack.c.l.b16 %v2265
    %v2363 = vunpack.c.h.b16 %v2265
    %v2364 = vunpack.c.l.b16 %v2266
    %v2365 = vunpack.c.h.b16 %v2266
    %v2366 = vunpack.c.l.b16 %v2267
    %v2367 = vunpack.c.h.b16 %v2267
    %v2368 = vunpack.c.l.b16 %v2268
    %v2369 = vunpack.c.h.b16 %v2268
    %v2370 = vunpack.c.l.b16 %v2269
    %v2371 = vunpack.c.h.b16 %v2269
    %v2372 = vunpack.c.l.b16 %v2270
    %v2373 = vunpack.c.h.b16 %v2270
    %v2374 = vunpack.c.l.b16 %v2271
    %v2375 = vunpack.c.h.b16 %v2271
    %v2376 = vunpack.c.l.b16 %v2272
    %v2377 = vunpack.c.h.b16 %v2272
    %v2378 = vunpack.c.l.b16 %v2273
    %v2379 = vunpack.c.h.b16 %v2273
    %v2380 = vunpack.c.l.b16 %v2274
    %v2381 = vunpack.c.h.b16 %v2274
    %v2382 = vunpack.c.l.b16 %v2275
    %v2383 = vunpack.c.h.b16 %v2275
    %v2384 = vunpack.c.l.b16 %v2276
    %v2385 = vunpack.c.h.b16 %v2276
    %v2386 = vpack.c.b16 %v2324, %v2322
    %v2387 = vpack.c.b16 %v2325, %v2323
    %v2388 = vpack.c.b16 %v2328, %v2326
    %v2389 = vpack.c.b16 %v2329, %v2327
    %v2390 = vpack.c.b16 %v2332, %v2330
    %v2391 = vpack.c.b16 %v2333, %v2331
    %v2392 = vpack.c.b16 %v2336, %v2334
    %v2393 = vpack.c.b16 %v2337, %v2335
    %v2394 = vpack.c.b16 %v2340, %v2338
    %v2395 = vpack.c.b16 %v2341, %v2339
    %v2396 = vpack.c.b16 %v2344, %v2342
    %v2397 = vpack.c.b16 %v2345, %v2343
    %v2398 = vpack.c.b16 %v2348, %v2346
    %v2399 = vpack.c.b16 %v2349, %v2347
    %v2400 = vpack.c.b16 %v2352, %v2350
    %v2401 = vpack.c.b16 %v2353, %v2351
    %v2402 = vpack.c.b16 %v2356, %v2354
    %v2403 = vpack.c.b16 %v2357, %v2355
    %v2404 = vpack.c.b16 %v2360, %v2358
    %v2405 = vpack.c.b16 %v2361, %v2359
    %v2406 = vpack.c.b16 %v2364, %v2362
    %v2407 = vpack.c.b16 %v2365, %v2363
    %v2408 = vpack.c.b16 %v2368, %v2366
    %v2409 = vpack.c.b16 %v2369, %v2367
    %v2410 = vpack.c.b16 %v2372, %v2370
    %v2411 = vpack.c.b16 %v2373, %v2371
    %v2412 = vpack.c.b16 %v2376, %v2374
    %v2413 = vpack.c.b16 %v2377, %v2375
    %v2414 = vpack.c.b16 %v2380, %v2378
    %v2415 = vpack.c.b16 %v2381, %v2379
    %v2416 = vpack.c.b16 %v2384, %v2382
    %v2417 = vpack.c.b16 %v2385, %v2383
    %2450 = vmatprep.subr.bf16.mxu0 %v2387
    %2451 = vmatpush1.bf16.msra.mxu0 %v2386
    %2452 = vmatprep.subr.bf16.mxu0 %v2389
    %2453 = vmatpush1.bf16.msra.mxu0 %v2388
    %2454 = vmatprep.subr.bf16.mxu0 %v2391
    %2455 = vmatpush1.bf16.msra.mxu0 %v2390
    %2456 = vmatprep.subr.bf16.mxu0 %v2393
    %2457 = vmatpush1.bf16.msra.mxu0 %v2392
    %2458 = vmatprep.subr.bf16.mxu0 %v2395
    %2459 = vmatpush1.bf16.msra.mxu0 %v2394
    %2460 = vmatprep.subr.bf16.mxu0 %v2397
    %2461 = vmatpush1.bf16.msra.mxu0 %v2396
    %2462 = vmatprep.subr.bf16.mxu0 %v2399
    %2463 = vmatpush1.bf16.msra.mxu0 %v2398
    %2464 = vmatprep.subr.bf16.mxu0 %v2401
    %2465 = vmatpush1.bf16.msra.mxu0 %v2400
    %2466 = vmatprep.subr.bf16.mxu0 %v2403
    %2467 = vmatpush1.bf16.msra.mxu0 %v2402
    %2468 = vmatprep.subr.bf16.mxu0 %v2405
    %2469 = vmatpush1.bf16.msra.mxu0 %v2404
    %2470 = vmatprep.subr.bf16.mxu0 %v2407
    %2471 = vmatpush1.bf16.msra.mxu0 %v2406
    %2472 = vmatprep.subr.bf16.mxu0 %v2409
    %2473 = vmatpush1.bf16.msra.mxu0 %v2408
    %2474 = vmatprep.subr.bf16.mxu0 %v2411
    %2475 = vmatpush1.bf16.msra.mxu0 %v2410
    %2476 = vmatprep.subr.bf16.mxu0 %v2413
    %2477 = vmatpush1.bf16.msra.mxu0 %v2412
    %2478 = vmatprep.subr.bf16.mxu0 %v2415
    %2479 = vmatpush1.bf16.msra.mxu0 %v2414
    %2480 = vmatprep.subr.bf16.mxu0 %v2417
    %2481 = vmatpush1.bf16.msra.mxu0 %v2416
    %2482 = vmatprep.mubr.bf16.mxu0 %v2243
    %2483 = vmatmul.mubr.bf16.gmra.mrb[0].mxu0 %v2242
    %v2484 = vpop.f32.mrb[0].mxu0
    %v2485 = vadd.f32 %v2283, %v2484
    %v2486 = vpop.f32.mrb[0].mxu0
    %v2487 = vadd.f32 %v2287, %v2486
    %v2488 = vpop.f32.mrb[0].mxu0
    %v2489 = vadd.f32 %v2283, %v2488
    %v2490 = vpop.f32.mrb[0].mxu0
    %v2491 = vadd.f32 %v2287, %v2490
    %2492 = vdwg.mxu0
    %v2493 = vpack.c.bf16 %v2489, %v2485
    %v2494 = vpack.c.bf16 %v2491, %v2487
    %v2495 = vld [vmem:[%s8] sm:$0xf]
    %v2496 = vld [vmem:[%s8 + $0x4] sm:$0xf]
    %v2497 = vld [vmem:[%s8 + $0x8] sm:$0xf]
    %v2498 = vld [vmem:[%s8 + $0xc] sm:$0xf]
    %v2499 = vld [vmem:[%s8 + $0x10] sm:$0xf]
    %v2500 = vld [vmem:[%s8 + $0x14] sm:$0xf]
    %v2501 = vld [vmem:[%s8 + $0x18] sm:$0xf]
    %v2502 = vld [vmem:[%s8 + $0x1c] sm:$0xf]
    %v2503 = vld [vmem:[%s8 + $0x20] sm:$0xf]
    %v2504 = vld [vmem:[%s8 + $0x24] sm:$0xf]
    %v2505 = vld [vmem:[%s8 + $0x28] sm:$0xf]
    %v2506 = vld [vmem:[%s8 + $0x2c] sm:$0xf]
    %v2507 = vld [vmem:[%s8 + $0x30] sm:$0xf]
    %v2508 = vld [vmem:[%s8 + $0x34] sm:$0xf]
    %v2509 = vld [vmem:[%s8 + $0x38] sm:$0xf]
    %v2510 = vld [vmem:[%s8 + $0x3c] sm:$0xf]
    %v2511 = vld [vmem:[%s8 + $0x40] sm:$0xf]
    %v2512 = vld [vmem:[%s8 + $0x44] sm:$0xf]
    %v2513 = vld [vmem:[%s8 + $0x48] sm:$0xf]
    %v2514 = vld [vmem:[%s8 + $0x4c] sm:$0xf]
    %v2515 = vld [vmem:[%s8 + $0x50] sm:$0xf]
    %v2516 = vld [vmem:[%s8 + $0x54] sm:$0xf]
    %v2517 = vld [vmem:[%s8 + $0x58] sm:$0xf]
    %v2518 = vld [vmem:[%s8 + $0x5c] sm:$0xf]
    %v2519 = vld [vmem:[%s8 + $0x60] sm:$0xf]
    %v2520 = vld [vmem:[%s8 + $0x64] sm:$0xf]
    %v2521 = vld [vmem:[%s8 + $0x68] sm:$0xf]
    %v2522 = vld [vmem:[%s8 + $0x6c] sm:$0xf]
    %v2523 = vld [vmem:[%s8 + $0x70] sm:$0xf]
    %v2524 = vld [vmem:[%s8 + $0x74] sm:$0xf]
    %v2525 = vld [vmem:[%s8 + $0x78] sm:$0xf]
    %v2526 = vld [vmem:[%s8 + $0x7c] sm:$0xf]
    %v2527 = vld [vmem:[%s9 + $0x3] sm:$0x1]
    %v2528 = vlaneseq
    %v2529 = vshrl.u32 %v2528, 7
    %v2530 = vsub.s32 0, %v2529
    %v2531 = vrot.slane %v2527, %v2530
    %v2564 = vunpack.c.l.b16 %v2495
    %v2565 = vunpack.c.l.b16 %v2496
    %v2566 = vunpack.c.l.b16 %v2497
    %v2567 = vunpack.c.l.b16 %v2498
    %v2568 = vunpack.c.l.b16 %v2499
    %v2569 = vunpack.c.l.b16 %v2500
    %v2570 = vunpack.c.l.b16 %v2501
    %v2571 = vunpack.c.l.b16 %v2502
    %v2572 = vunpack.c.l.b16 %v2503
    %v2573 = vunpack.c.l.b16 %v2504
    %v2574 = vunpack.c.l.b16 %v2505
    %v2575 = vunpack.c.l.b16 %v2506
    %v2576 = vunpack.c.l.b16 %v2507
    %v2577 = vunpack.c.l.b16 %v2508
    %v2578 = vunpack.c.l.b16 %v2509
    %v2579 = vunpack.c.l.b16 %v2510
    %v2580 = vunpack.c.l.b16 %v2511
    %v2581 = vunpack.c.l.b16 %v2512
    %v2582 = vunpack.c.l.b16 %v2513
    %v2583 = vunpack.c.l.b16 %v2514
    %v2584 = vunpack.c.l.b16 %v2515
    %v2585 = vunpack.c.l.b16 %v2516
    %v2586 = vunpack.c.l.b16 %v2517
    %v2587 = vunpack.c.l.b16 %v2518
    %v2588 = vunpack.c.l.b16 %v2519
    %v2589 = vunpack.c.l.b16 %v2520
    %v2590 = vunpack.c.l.b16 %v2521
    %v2591 = vunpack.c.l.b16 %v2522
    %v2592 = vunpack.c.l.b16 %v2523
    %v2593 = vunpack.c.l.b16 %v2524
    %v2594 = vunpack.c.l.b16 %v2525
    %v2595 = vunpack.c.l.b16 %v2526
    %v2596 = vpack.c.b16 %v2565, %v2564
    %v2597 = vpack.c.b16 %v2567, %v2566
    %v2598 = vpack.c.b16 %v2569, %v2568
    %v2599 = vpack.c.b16 %v2571, %v2570
    %v2600 = vpack.c.b16 %v2573, %v2572
    %v2601 = vpack.c.b16 %v2575, %v2574
    %v2602 = vpack.c.b16 %v2577, %v2576
    %v2603 = vpack.c.b16 %v2579, %v2578
    %v2604 = vpack.c.b16 %v2581, %v2580
    %v2605 = vpack.c.b16 %v2583, %v2582
    %v2606 = vpack.c.b16 %v2585, %v2584
    %v2607 = vpack.c.b16 %v2587, %v2586
    %v2608 = vpack.c.b16 %v2589, %v2588
    %v2609 = vpack.c.b16 %v2591, %v2590
    %v2610 = vpack.c.b16 %v2593, %v2592
    %v2611 = vpack.c.b16 %v2595, %v2594
    %2628 = vmatprep.subr.bf16.mxu0 0
    %2629 = vmatpush1.bf16.msra.mxu0 %v2596
    %2630 = vmatprep.subr.bf16.mxu0 0
    %2631 = vmatpush1.bf16.msra.mxu0 %v2597
    %2632 = vmatprep.subr.bf16.mxu0 0
    %2633 = vmatpush1.bf16.msra.mxu0 %v2598
    %2634 = vmatprep.subr.bf16.mxu0 0
    %2635 = vmatpush1.bf16.msra.mxu0 %v2599
    %2636 = vmatprep.subr.bf16.mxu0 0
    %2637 = vmatpush1.bf16.msra.mxu0 %v2600
    %2638 = vmatprep.subr.bf16.mxu0 0
    %2639 = vmatpush1.bf16.msra.mxu0 %v2601
    %2640 = vmatprep.subr.bf16.mxu0 0
    %2641 = vmatpush1.bf16.msra.mxu0 %v2602
    %2642 = vmatprep.subr.bf16.mxu0 0
    %2643 = vmatpush1.bf16.msra.mxu0 %v2603
    %2644 = vmatprep.subr.bf16.mxu0 0
    %2645 = vmatpush1.bf16.msra.mxu0 %v2604
    %2646 = vmatprep.subr.bf16.mxu0 0
    %2647 = vmatpush1.bf16.msra.mxu0 %v2605
    %2648 = vmatprep.subr.bf16.mxu0 0
    %2649 = vmatpush1.bf16.msra.mxu0 %v2606
    %2650 = vmatprep.subr.bf16.mxu0 0
    %2651 = vmatpush1.bf16.msra.mxu0 %v2607
    %2652 = vmatprep.subr.bf16.mxu0 0
    %2653 = vmatpush1.bf16.msra.mxu0 %v2608
    %2654 = vmatprep.subr.bf16.mxu0 0
    %2655 = vmatpush1.bf16.msra.mxu0 %v2609
    %2656 = vmatprep.subr.bf16.mxu0 0
    %2657 = vmatpush1.bf16.msra.mxu0 %v2610
    %2658 = vmatprep.subr.bf16.mxu0 0
    %2659 = vmatpush1.bf16.msra.mxu0 %v2611
    %2660 = vmatprep.mubr.bf16.mxu0 %v2494
    %2661 = vmatmul.mubr.bf16.gmra.mrb[0].mxu0 %v2493
    %v2662 = vpop.f32.mrb[0].mxu0
    %v2663 = vadd.f32 %v2531, %v2662
    %v2664 = vpop.f32.mrb[0].mxu0
    %v2665 = vpop.f32.mrb[0].mxu0
    %v2666 = vadd.f32 %v2531, %v2665
    %v2667 = vpop.f32.mrb[0].mxu0
    %2668 = vdwg.mxu0
    %vm2669 = vcmask 8192
    %2670 = vst.msk [vmem:[#allocation5] sm:$0x1] %vm2669, %v2663
    %2671 = vst.msk [vmem:[#allocation5 + $0x1] sm:$0x1] %vm2669, %v2666
    // Predicated region
    $region46: #{bert_imdb_forward.1} parent=1 // pred_check
      _
    $region47: #{bert_imdb_forward.1} parent=1 // pred_check_branch
      %2673 = sbr.rel (0) target = $region49
    $region48: #{bert_imdb_forward.1} parent=1 // pred_region
      %s2675 = ssub.s32 32, 32
      %2676 = vsyncadd [#allocation4], %s2675
      %s2678 = sshll.u32 [#allocation5], 4
      %s2679 = int_to_ptr.vmem [resolvable:$true] %s2678
      %2681 = dma.vmem_to_hbm [thread:$0]  %s2679, 32, %s10, [#allocation4]
    $region49: #{bert_imdb_forward.1} parent=1 // pred_fallthru
      _
    // Predicated region
    $region50: #{bert_imdb_forward.1} parent=1 // pred_check
      _
    $region51: #{bert_imdb_forward.1} parent=1 // pred_check_branch
      %2683 = sbr.rel (0) target = $region53
    $region52: #{bert_imdb_forward.1} parent=1 // pred_region
      %2684 = dma.done [#allocation4], 32
    $region53: #{bert_imdb_forward.1} parent=1 // pred_fallthru
      _
    %2685 = vsyncpa [#allocation3], 1
    %2686 = vsyncpa [#allocation4], 1

</llo_original>
